<compile_context>
chip_gen: v7x
topology: tpu7x:2x2x1
jax: 0.10.0
libtpu: 0.0.40
codegen_flags: <defaults>
</compile_context>

<pallas_src>
import functools

import jax
import jax.numpy as jnp
from jax.experimental import pallas as pl
from jax.experimental.pallas import tpu as pltpu


FC_TK = 4096   # K-tile for the fc1 reduction (multiple of 128).  At real size
               # (fc_in ~ 160k) this keeps the grid ~40 steps while each bf16
               # w1 tile is a contiguous ~1 MiB DMA per hidden half.
CONV_TL = 512  # default L-tile for the conv layers (multiple of 16).


def _round_up(x, m):
    return (x + m - 1) // m * m


# --------------------------------------------------------------------------
# Conv1d(k=3, pad=1) + ReLU + MaxPool1d(2, 2), one (batch, L-tile) per grid
# step.  Even/odd output rows are computed separately so the pool is fused.
# No lane-offset im2col concatenates: per-tap accumulating dots only.
# --------------------------------------------------------------------------
def conv_relu_pool_kernel(x_ref, ph_ref, nh_ref, w_ref, b_ref, o_ref, *,
                          cin, valid_out):
    # x_ref: (TL, Cin) input tile          ph_ref/nh_ref: (1, Cin) halo rows
    # w_ref: (3*Cin, Cout) taps stacked    b_ref: (1, Cout)
    # o_ref: (TL//2, Cout) pooled output tile
    half, cout = o_ref.shape

    # Even / odd input rows of this tile (strided sublane reads from VMEM).
    x_e = x_ref[pl.ds(0, half, 2), :]                            # x[2m]
    x_o = x_ref[pl.ds(1, half, 2), :]                            # x[2m+1]
    x_om1 = jnp.concatenate([ph_ref[...], x_o[:-1, :]], axis=0)  # x[2m-1]
    x_ep1 = jnp.concatenate([x_e[1:, :], nh_ref[...]], axis=0)   # x[2m+2]

    w = w_ref[...]
    if cin == 1:
        # VPU stencil: K=1 matmuls are the worst MXU shape, so the first layer
        # is three broadcast multiply-adds on the vector unit.
        # TODO(synk): fusing this lane-sparse Cin=1 layer into the second conv
        # (or folding L into lanes) would save one HBM round trip at large B.
        y_e = x_om1 * w[0:1, :] + x_e * w[1:2, :] + x_o * w[2:3, :]
        y_o = x_e * w[0:1, :] + x_o * w[1:2, :] + x_ep1 * w[2:3, :]
    else:
        # Per-tap accumulating dots (no lane-offset im2col copies).
        w0, w1, w2 = w[:cin, :], w[cin:2 * cin, :], w[2 * cin:, :]
        y_e = (jnp.dot(x_om1, w0, preferred_element_type=jnp.float32)
               + jnp.dot(x_e, w1, preferred_element_type=jnp.float32)
               + jnp.dot(x_o, w2, preferred_element_type=jnp.float32))
        y_o = (jnp.dot(x_e, w0, preferred_element_type=jnp.float32)
               + jnp.dot(x_o, w1, preferred_element_type=jnp.float32)
               + jnp.dot(x_ep1, w2, preferred_element_type=jnp.float32))

    # MaxPool1d(2,2) fused with ReLU: relu(max(y_e, y_o) + b) == pool(relu(y+b)).
    out = jnp.maximum(jnp.maximum(y_e, y_o) + b_ref[...], 0.0)

    if valid_out is not None:
        # Zero the L-padding rows so the next layer's zero-pad conv semantics
        # (and PyTorch's floor-pooling drop) are exactly reproduced.
        row = (pl.program_id(1) * half
               + jax.lax.broadcasted_iota(jnp.int32, (half, cout), 0))
        out = jnp.where(row < valid_out, out, 0.0)

    o_ref[...] = out


def conv_relu_pool(x, w, b, valid_in, *, tl=CONV_TL):
    """Conv1d(k=3, pad=1) + ReLU + MaxPool1d(2,2).

    x: (B, L_in, Cin), rows >= valid_in are zero.  Returns ((B, L_out, Cout),
    valid_out) where L_out = round_up(L_in, tile)//2 and valid_out = valid_in//2;
    rows >= valid_out of the output are zero.
    """
    B, L_in, Cin = x.shape
    K, Cin_w, Cout = w.shape
    assert K == 3 and Cin_w == Cin and 0 < valid_in <= L_in

    # Tile: multiple of 16, capped by the (rounded) layer length; L is padded
    # to a multiple of it so layers 2-3 stay multi-tile (pipelined) at real
    # lengths like 5000 / 2500.
    tl = max(16, min(_round_up(tl, 16), _round_up(L_in, 16)))
    L_pad = _round_up(L_in, tl)
    if L_pad > L_in:
        x = jnp.pad(x, ((0, 0), (0, L_pad - L_in), (0, 0)))
    nt = L_pad // tl
    half = tl // 2
    valid_out = valid_in // 2
    needs_mask = (L_pad // 2) > valid_out

    w2d = w.reshape(3 * Cin, Cout)                               # taps stacked on rows

    # 1-row halos for every L-tile (zero rows at the sequence edges == pad=1).
    # (Merging halos into the main block would break (8,128) alignment; the two
    #  tiny side DMAs per step are a minor fixed cost.)
    zrow = jnp.zeros((B, 1, Cin), x.dtype)
    prev_halo = jnp.concatenate([zrow, x[:, tl - 1:L_pad - tl:tl, :]], axis=1)
    next_halo = jnp.concatenate([x[:, tl::tl, :], zrow], axis=1)
    prev_halo = prev_halo[:, :, None, :]                         # (B, nt, 1, Cin)
    next_halo = next_halo[:, :, None, :]

    kernel = functools.partial(conv_relu_pool_kernel, cin=Cin,
                               valid_out=valid_out if needs_mask else None)
    out = pl.pallas_call(
        kernel,
        out_shape=jax.ShapeDtypeStruct((B, L_pad // 2, Cout), jnp.float32),
        grid=(B, nt),
        in_specs=[
            pl.BlockSpec((None, tl, Cin), lambda i, j: (i, j, 0)),
            pl.BlockSpec((None, None, 1, Cin), lambda i, j: (i, j, 0, 0)),
            pl.BlockSpec((None, None, 1, Cin), lambda i, j: (i, j, 0, 0)),
            pl.BlockSpec((3 * Cin, Cout), lambda i, j: (0, 0)),
            pl.BlockSpec((1, Cout), lambda i, j: (0, 0)),
        ],
        out_specs=pl.BlockSpec((None, half, Cout), lambda i, j: (i, j, 0)),
        compiler_params=pltpu.CompilerParams(
            dimension_semantics=("parallel", "parallel")),
    )(x, prev_halo, next_halo, w2d, b)
    return out, valid_out


# --------------------------------------------------------------------------
# FC head: relu(x @ W1 + b1) @ W2 + b2.
#  * fc1 reduction is K-tiled (bf16 W1 streamed from HBM, f32 accumulator).
#  * hidden=256 is split into 128-wide column blocks on a "parallel" axis so
#    both v7x TensorCores stream disjoint halves of W1; each half does its own
#    ReLU + fc2 partial, summed in the wrapper.
# --------------------------------------------------------------------------
def mlp_kernel(x_ref, w1_ref, b1_ref, w2_ref, b2_ref, o_ref, acc_ref):
    j = pl.program_id(0)          # hidden-column block
    k = pl.program_id(1)          # K tile of the fc1 reduction

    @pl.when(k == 0)
    def _():
        acc_ref[...] = jnp.zeros_like(acc_ref)

    acc_ref[...] += jnp.dot(x_ref[...], w1_ref[...],
                            preferred_element_type=jnp.float32)

    @pl.when(k == pl.num_programs(1) - 1)
    def _():
        h = jnp.maximum(acc_ref[...] + b1_ref[...], 0.0)
        part = jnp.dot(h, w2_ref[...], preferred_element_type=jnp.float32)
        # fc2 bias is added exactly once (with the j == 0 partial).
        o_ref[...] = part + jnp.where(j == 0, 1.0, 0.0) * b2_ref[...]


def mlp(x, w1, b1, w2, b2, *, tk=FC_TK):
    B, kin = x.shape
    kin_w, hidden = w1.shape
    nc = w2.shape[-1]
    assert kin == kin_w and kin % tk == 0 and hidden % 128 == 0
    nk = kin // tk
    nj = hidden // 128
    slab = pl.pallas_call(
        mlp_kernel,
        out_shape=jax.ShapeDtypeStruct((nj, B, nc), jnp.float32),
        grid=(nj, nk),
        in_specs=[
            pl.BlockSpec((B, tk), lambda j, k: (0, k)),        # bf16 activations
            pl.BlockSpec((tk, 128), lambda j, k: (k, j)),      # bf16 W1 stream
            pl.BlockSpec((1, 128), lambda j, k: (0, j)),
            pl.BlockSpec((128, nc), lambda j, k: (j, 0)),
            pl.BlockSpec((1, nc), lambda j, k: (0, 0)),
        ],
        out_specs=pl.BlockSpec((None, B, nc), lambda j, k: (j, 0, 0)),
        scratch_shapes=[pltpu.VMEM((B, 128), jnp.float32)],
        compiler_params=pltpu.CompilerParams(
            dimension_semantics=("parallel", "arbitrary"),
            # Re-derived for v7x's 64 MiB VMEM: bf16 (tk,128) tiles double-
            # buffered are ~2 MiB at tk=4096 (<=4 MiB at tk=8192); 48 MiB
            # leaves ample headroom on all generations.
            vmem_limit_bytes=48 * 1024 * 1024),
    )(x, w1, b1, w2, b2)
    return jnp.sum(slab, axis=0)       # combine per-hidden-half fc2 partials


# --------------------------------------------------------------------------
# Full forward pass (matches CNNModel.forward in eval mode).
# --------------------------------------------------------------------------
def cnn_forward(params, x, *, conv_tl=CONV_TL, fc_tk=FC_TK):
    # x: (B, L) float32.  L may be odd (e.g. 9999): pooling floors like PyTorch.
    # TODO(synk): train-mode Dropout(0.5) is not implemented (eval => identity).
    B, L = x.shape
    h = x[:, :, None].astype(jnp.float32)                        # (B, L, 1)
    h, v = conv_relu_pool(h, params["w1"], params["b1"], L, tl=conv_tl)
    h, v = conv_relu_pool(h, params["w2"], params["b2"], v, tl=conv_tl)
    h, v = conv_relu_pool(h, params["w3"], params["b3"], v, tl=conv_tl)

    # Channels-last flatten: wf1 rows are stored in this (position, channel)
    # order (one-time permutation of PyTorch fc1.weight), so no transpose here.
    h = h.reshape(B, -1)
    k_pad = params["wf1"].shape[0]                               # multiple of fc_tk
    if h.shape[1] < k_pad:
        h = jnp.pad(h, ((0, 0), (0, k_pad - h.shape[1])))
    elif h.shape[1] > k_pad:
        h = h[:, :k_pad]          # only zeroed (masked L-pad) columns are dropped

    # Stream the fc1 operands in bf16 (the MLP is HBM-bandwidth bound on W1).
    return mlp(h.astype(jnp.bfloat16), params["wf1"], params["bf1"],
               params["wf2"], params["bf2"], tk=fc_tk)           # (B, num_classes)


def init_params(key, seq_len, num_classes, fc_tk=FC_TK):
    # Conv weights stored as (K=3, Cin, Cout)  <=>  torch weight[co, ci, k].T.
    # wf1 rows are in channels-last flatten order, zero-padded to a multiple of
    # fc_tk along the reduction dim, and stored in bf16 (f32 accumulation in
    # the kernel).
    def uniform(k, shape, fan_in):
        bound = 1.0 / float(fan_in) ** 0.5
        return jax.random.uniform(k, shape, jnp.float32, -bound, bound)

    ks = jax.random.split(key, 10)
    fc_in = 128 * (seq_len // 2 // 2 // 2)
    fc_in_pad = _round_up(fc_in, fc_tk)
    wf1 = uniform(ks[6], (fc_in_pad, 256), fc_in)
    wf1 = wf1 * (jnp.arange(fc_in_pad)[:, None] < fc_in)         # zero padded rows
    return {
        "w1": uniform(ks[0], (3, 1, 32), 1 * 3),
        "b1": uniform(ks[1], (1, 32), 1 * 3),
        "w2": uniform(ks[2], (3, 32, 64), 32 * 3),
        "b2": uniform(ks[3], (1, 64), 32 * 3),
        "w3": uniform(ks[4], (3, 64, 128), 64 * 3),
        "b3": uniform(ks[5], (1, 128), 64 * 3),
        "wf1": wf1.astype(jnp.bfloat16),
        "bf1": uniform(ks[7], (1, 256), fc_in),
        "wf2": uniform(ks[8], (256, num_classes), 256),
        "bf2": uniform(ks[9], (1, num_classes), 256),
    }


# Pure-JAX reference (same parameter layout, PyTorch floor-pool semantics).
def _conv_relu_pool_ref(x, w, b):
    B, L, _ = x.shape
    xp = jnp.pad(x, ((0, 0), (1, 1), (0, 0)))
    y = (jnp.einsum("blc,cd->bld", xp[:, :-2, :], w[0])
         + jnp.einsum("blc,cd->bld", xp[:, 1:-1, :], w[1])
         + jnp.einsum("blc,cd->bld", xp[:, 2:, :], w[2]) + b)
    y = jnp.maximum(y, 0.0)
    lp = (L // 2) * 2
    return jnp.max(y[:, :lp].reshape(B, L // 2, 2, y.shape[-1]), axis=2)


def cnn_forward_ref(params, x):
    B = x.shape[0]
    h = x[:, :, None]
    h = _conv_relu_pool_ref(h, params["w1"], params["b1"])
    h = _conv_relu_pool_ref(h, params["w2"], params["b2"])
    h = _conv_relu_pool_ref(h, params["w3"], params["b3"])
    h = h.reshape(B, -1)
    w1 = params["wf1"][:h.shape[1]].astype(jnp.float32)
    h = h.astype(jnp.bfloat16).astype(jnp.float32)               # match bf16 stream
    h = jnp.maximum(h @ w1 + params["bf1"], 0.0)
    return h @ params["wf2"] + params["bf2"]


if __name__ == "__main__":
    key = jax.random.PRNGKey(0)
    pkey, xkey = jax.random.split(key)

    # Small stand-in shapes (the real model uses L=9999).  L=63 is odd so the
    # PyTorch floor-pool / in-kernel pad-row masking path is exercised;
    # conv_tl=32 and fc_tk=256 exercise multi-tile pipelining and the K-tiled
    # fc1 accumulator at toy size (use the 512 / 4096 defaults at real size).
    B, L, num_classes = 2, 63, 5
    fc_tk = 256
    params = init_params(pkey, L, num_classes, fc_tk=fc_tk)
    x = jax.random.normal(xkey, (B, L), dtype=jnp.float32)

    fwd = jax.jit(functools.partial(cnn_forward, conv_tl=32, fc_tk=fc_tk))
    out = fwd(params, x)
    jax.block_until_ready(out)
    assert out.shape == (B, num_classes), out.shape

    ref = cnn_forward_ref(params, x)
    max_err = float(jnp.max(jnp.abs(out - ref)))
    assert jnp.allclose(out, ref, rtol=1e-2, atol=1e-2), max_err
    print("KERNEL_OK")
</pallas_src>

<mosaic_0001>
module attributes {stable_mosaic.version = 11 : i64} {
  func.func @conv_relu_pool_kernel(%arg0: i32, %arg1: i32, %arg2: memref<1x32x1xf32, #tpu.memory_space<vmem>>, %arg3: memref<1x1x1x1xf32, #tpu.memory_space<vmem>>, %arg4: memref<1x1x1x1xf32, #tpu.memory_space<vmem>>, %arg5: memref<3x32xf32, #tpu.memory_space<vmem>>, %arg6: memref<1x32xf32, #tpu.memory_space<vmem>>, %arg7: memref<1x16x32xf32, #tpu.memory_space<vmem>>) attributes {dimension_semantics = [#tpu.dimension_semantics<parallel>, #tpu.dimension_semantics<parallel>], iteration_bounds = array<i64: 2, 2>, scalar_prefetch = 0 : i64, scratch_operands = 0 : i64, tpu.core_type = #tpu.core_type<tc>, window_params = [{transform_indices = @transform_0, window_bounds = array<i64: 1, 32, 1>}, {transform_indices = @transform_1, window_bounds = array<i64: 1, 1, 1, 1>}, {transform_indices = @transform_2, window_bounds = array<i64: 1, 1, 1, 1>}, {pipeline_mode = #tpu.pipeline_mode<synchronous>, transform_indices = @transform_3, window_bounds = array<i64: 3, 32>}, {pipeline_mode = #tpu.pipeline_mode<synchronous>, transform_indices = @transform_4, window_bounds = array<i64: 1, 32>}, {transform_indices = @transform_5, window_bounds = array<i64: 1, 16, 32>}]} {
    %c0 = arith.constant 0 : index
    %c0_0 = arith.constant 0 : index
    %c0_1 = arith.constant 0 : index
    %0 = tpu.strided_load %arg2[%c0, %c0_0, %c0_1] {strides = array<i32: 1, 2, 1>} : memref<1x32x1xf32, #tpu.memory_space<vmem>>, vector<1x16x1xf32>
    %1 = vector.shape_cast %0 : vector<1x16x1xf32> to vector<16x1xf32>
    %c0_2 = arith.constant 0 : index
    %c1 = arith.constant 1 : index
    %c0_3 = arith.constant 0 : index
    %2 = tpu.strided_load %arg2[%c0_2, %c1, %c0_3] {strides = array<i32: 1, 2, 1>} : memref<1x32x1xf32, #tpu.memory_space<vmem>>, vector<1x16x1xf32>
    %3 = vector.shape_cast %2 : vector<1x16x1xf32> to vector<16x1xf32>
    %c0_4 = arith.constant 0 : index
    %c0_5 = arith.constant 0 : index
    %c0_6 = arith.constant 0 : index
    %c0_7 = arith.constant 0 : index
    %4 = vector.load %arg3[%c0_4, %c0_5, %c0_6, %c0_7] : memref<1x1x1x1xf32, #tpu.memory_space<vmem>>, vector<1x1x1x1xf32>
    %5 = vector.shape_cast %4 : vector<1x1x1x1xf32> to vector<1x1xf32>
    %6 = vector.extract_strided_slice %3 {offsets = [0, 0], sizes = [15, 1], strides = [1, 1]} : vector<16x1xf32> to vector<15x1xf32>
    %7 = tpu.concatenate %5, %6 in 0 : vector<1x1xf32>, vector<15x1xf32> -> vector<16x1xf32>
    %8 = vector.extract_strided_slice %1 {offsets = [1, 0], sizes = [15, 1], strides = [1, 1]} : vector<16x1xf32> to vector<15x1xf32>
    %c0_8 = arith.constant 0 : index
    %c0_9 = arith.constant 0 : index
    %c0_10 = arith.constant 0 : index
    %c0_11 = arith.constant 0 : index
    %9 = vector.load %arg4[%c0_8, %c0_9, %c0_10, %c0_11] : memref<1x1x1x1xf32, #tpu.memory_space<vmem>>, vector<1x1x1x1xf32>
    %10 = vector.shape_cast %9 : vector<1x1x1x1xf32> to vector<1x1xf32>
    %11 = tpu.concatenate %8, %10 in 0 : vector<15x1xf32>, vector<1x1xf32> -> vector<16x1xf32>
    %c0_12 = arith.constant 0 : index
    %c0_13 = arith.constant 0 : index
    %12 = vector.load %arg5[%c0_12, %c0_13] : memref<3x32xf32, #tpu.memory_space<vmem>>, vector<3x32xf32>
    %13 = vector.extract_strided_slice %12 {offsets = [0, 0], sizes = [1, 32], strides = [1, 1]} : vector<3x32xf32> to vector<1x32xf32>
    %14 = vector.broadcast %7 : vector<16x1xf32> to vector<16x32xf32>
    %15 = vector.broadcast %13 : vector<1x32xf32> to vector<16x32xf32>
    %16 = arith.mulf %14, %15 : vector<16x32xf32>
    %17 = vector.extract_strided_slice %12 {offsets = [1, 0], sizes = [1, 32], strides = [1, 1]} : vector<3x32xf32> to vector<1x32xf32>
    %18 = vector.broadcast %1 : vector<16x1xf32> to vector<16x32xf32>
    %19 = vector.broadcast %17 : vector<1x32xf32> to vector<16x32xf32>
    %20 = arith.mulf %18, %19 : vector<16x32xf32>
    %21 = arith.addf %16, %20 : vector<16x32xf32>
    %22 = vector.extract_strided_slice %12 {offsets = [2, 0], sizes = [1, 32], strides = [1, 1]} : vector<3x32xf32> to vector<1x32xf32>
    %23 = vector.broadcast %3 : vector<16x1xf32> to vector<16x32xf32>
    %24 = vector.broadcast %22 : vector<1x32xf32> to vector<16x32xf32>
    %25 = arith.mulf %23, %24 : vector<16x32xf32>
    %26 = arith.addf %21, %25 : vector<16x32xf32>
    %27 = vector.extract_strided_slice %12 {offsets = [0, 0], sizes = [1, 32], strides = [1, 1]} : vector<3x32xf32> to vector<1x32xf32>
    %28 = vector.broadcast %1 : vector<16x1xf32> to vector<16x32xf32>
    %29 = vector.broadcast %27 : vector<1x32xf32> to vector<16x32xf32>
    %30 = arith.mulf %28, %29 : vector<16x32xf32>
    %31 = vector.extract_strided_slice %12 {offsets = [1, 0], sizes = [1, 32], strides = [1, 1]} : vector<3x32xf32> to vector<1x32xf32>
    %32 = vector.broadcast %3 : vector<16x1xf32> to vector<16x32xf32>
    %33 = vector.broadcast %31 : vector<1x32xf32> to vector<16x32xf32>
    %34 = arith.mulf %32, %33 : vector<16x32xf32>
    %35 = arith.addf %30, %34 : vector<16x32xf32>
    %36 = vector.extract_strided_slice %12 {offsets = [2, 0], sizes = [1, 32], strides = [1, 1]} : vector<3x32xf32> to vector<1x32xf32>
    %37 = vector.broadcast %11 : vector<16x1xf32> to vector<16x32xf32>
    %38 = vector.broadcast %36 : vector<1x32xf32> to vector<16x32xf32>
    %39 = arith.mulf %37, %38 : vector<16x32xf32>
    %40 = arith.addf %35, %39 : vector<16x32xf32>
    %41 = arith.maximumf %26, %40 : vector<16x32xf32>
    %c0_14 = arith.constant 0 : index
    %c0_15 = arith.constant 0 : index
    %42 = vector.load %arg6[%c0_14, %c0_15] : memref<1x32xf32, #tpu.memory_space<vmem>>, vector<1x32xf32>
    %43 = vector.broadcast %42 : vector<1x32xf32> to vector<16x32xf32>
    %44 = arith.addf %41, %43 : vector<16x32xf32>
    %cst = arith.constant 0.000000e+00 : f32
    %45 = vector.broadcast %cst : f32 to vector<16x32xf32>
    %46 = arith.maximumf %44, %45 : vector<16x32xf32>
    %c16_i32 = arith.constant 16 : i32
    %47 = arith.muli %arg1, %c16_i32 : i32
    %48 = tpu.iota {dimensions = array<i32: 0>} : vector<16x32xi32>
    %49 = vector.broadcast %47 : i32 to vector<16x32xi32>
    %50 = arith.addi %49, %48 : vector<16x32xi32>
    %c31_i32 = arith.constant 31 : i32
    %51 = vector.broadcast %c31_i32 : i32 to vector<16x32xi32>
    %52 = arith.cmpi slt, %50, %51 : vector<16x32xi32>
    %cst_16 = arith.constant 0.000000e+00 : f32
    %53 = vector.broadcast %cst_16 : f32 to vector<16x32xf32>
    %54 = arith.select %52, %46, %53 : vector<16x32xi1>, vector<16x32xf32>
    %c0_17 = arith.constant 0 : index
    %c0_18 = arith.constant 0 : index
    %c0_19 = arith.constant 0 : index
    %55 = vector.load %arg7[%c0_17, %c0_18, %c0_19] : memref<1x16x32xf32, #tpu.memory_space<vmem>>, vector<1x16x32xf32>
    %56 = vector.shape_cast %55 : vector<1x16x32xf32> to vector<16x32xf32>
    %57 = vector.shape_cast %54 : vector<16x32xf32> to vector<1x16x32xf32>
    tpu.vector_store %arg7[%c0_17, %c0_18, %c0_19], %57 {strides = array<i32>} : memref<1x16x32xf32, #tpu.memory_space<vmem>>, vector<1x16x32xf32>,
    return
  }
  func.func @transform_0(%arg0: i32, %arg1: i32) -> (i32, i32, i32) {
    %c0_i32 = arith.constant 0 : i32
    %c0_i32_0 = arith.constant 0 : i32
    return %arg0, %arg1, %c0_i32 : i32, i32, i32
  }
  func.func @transform_1(%arg0: i32, %arg1: i32) -> (i32, i32, i32, i32) {
    %c0_i32 = arith.constant 0 : i32
    %c0_i32_0 = arith.constant 0 : i32
    %c0_i32_1 = arith.constant 0 : i32
    return %arg0, %arg1, %c0_i32, %c0_i32_0 : i32, i32, i32, i32
  }
  func.func @transform_2(%arg0: i32, %arg1: i32) -> (i32, i32, i32, i32) {
    %c0_i32 = arith.constant 0 : i32
    %c0_i32_0 = arith.constant 0 : i32
    %c0_i32_1 = arith.constant 0 : i32
    return %arg0, %arg1, %c0_i32, %c0_i32_0 : i32, i32, i32, i32
  }
  func.func @transform_3(%arg0: i32, %arg1: i32) -> (i32, i32) {
    %c0_i32 = arith.constant 0 : i32
    %c0_i32_0 = arith.constant 0 : i32
    %c0_i32_1 = arith.constant 0 : i32
    return %c0_i32, %c0_i32_0 : i32, i32
  }
  func.func @transform_4(%arg0: i32, %arg1: i32) -> (i32, i32) {
    %c0_i32 = arith.constant 0 : i32
    %c0_i32_0 = arith.constant 0 : i32
    %c0_i32_1 = arith.constant 0 : i32
    return %c0_i32, %c0_i32_0 : i32, i32
  }
  func.func @transform_5(%arg0: i32, %arg1: i32) -> (i32, i32, i32) {
    %c0_i32 = arith.constant 0 : i32
    %c0_i32_0 = arith.constant 0 : i32
    return %arg0, %arg1, %c0_i32 : i32, i32, i32
  }
}

module attributes {stable_mosaic.version = 11 : i64} {
  func.func @conv_relu_pool_kernel(%arg0: i32, %arg1: i32, %arg2: memref<1x32x32xf32, #tpu.memory_space<vmem>>, %arg3: memref<1x1x1x32xf32, #tpu.memory_space<vmem>>, %arg4: memref<1x1x1x32xf32, #tpu.memory_space<vmem>>, %arg5: memref<96x64xf32, #tpu.memory_space<vmem>>, %arg6: memref<1x64xf32, #tpu.memory_space<vmem>>, %arg7: memref<1x16x64xf32, #tpu.memory_space<vmem>>) attributes {dimension_semantics = [#tpu.dimension_semantics<parallel>, #tpu.dimension_semantics<parallel>], iteration_bounds = array<i64: 2, 1>, scalar_prefetch = 0 : i64, scratch_operands = 0 : i64, tpu.core_type = #tpu.core_type<tc>, window_params = [{transform_indices = @transform_0, window_bounds = array<i64: 1, 32, 32>}, {transform_indices = @transform_1, window_bounds = array<i64: 1, 1, 1, 32>}, {transform_indices = @transform_2, window_bounds = array<i64: 1, 1, 1, 32>}, {pipeline_mode = #tpu.pipeline_mode<synchronous>, transform_indices = @transform_3, window_bounds = array<i64: 96, 64>}, {pipeline_mode = #tpu.pipeline_mode<synchronous>, transform_indices = @transform_4, window_bounds = array<i64: 1, 64>}, {transform_indices = @transform_5, window_bounds = array<i64: 1, 16, 64>}]} {
    %c0 = arith.constant 0 : index
    %c0_0 = arith.constant 0 : index
    %c0_1 = arith.constant 0 : index
    %0 = tpu.strided_load %arg2[%c0, %c0_0, %c0_1] {strides = array<i32: 1, 2, 1>} : memref<1x32x32xf32, #tpu.memory_space<vmem>>, vector<1x16x32xf32>
    %1 = vector.shape_cast %0 : vector<1x16x32xf32> to vector<16x32xf32>
    %c0_2 = arith.constant 0 : index
    %c1 = arith.constant 1 : index
    %c0_3 = arith.constant 0 : index
    %2 = tpu.strided_load %arg2[%c0_2, %c1, %c0_3] {strides = array<i32: 1, 2, 1>} : memref<1x32x32xf32, #tpu.memory_space<vmem>>, vector<1x16x32xf32>
    %3 = vector.shape_cast %2 : vector<1x16x32xf32> to vector<16x32xf32>
    %c0_4 = arith.constant 0 : index
    %c0_5 = arith.constant 0 : index
    %c0_6 = arith.constant 0 : index
    %c0_7 = arith.constant 0 : index
    %4 = vector.load %arg3[%c0_4, %c0_5, %c0_6, %c0_7] : memref<1x1x1x32xf32, #tpu.memory_space<vmem>>, vector<1x1x1x32xf32>
    %5 = vector.shape_cast %4 : vector<1x1x1x32xf32> to vector<1x32xf32>
    %6 = vector.extract_strided_slice %3 {offsets = [0, 0], sizes = [15, 32], strides = [1, 1]} : vector<16x32xf32> to vector<15x32xf32>
    %7 = tpu.concatenate %5, %6 in 0 : vector<1x32xf32>, vector<15x32xf32> -> vector<16x32xf32>
    %8 = vector.extract_strided_slice %1 {offsets = [1, 0], sizes = [15, 32], strides = [1, 1]} : vector<16x32xf32> to vector<15x32xf32>
    %c0_8 = arith.constant 0 : index
    %c0_9 = arith.constant 0 : index
    %c0_10 = arith.constant 0 : index
    %c0_11 = arith.constant 0 : index
    %9 = vector.load %arg4[%c0_8, %c0_9, %c0_10, %c0_11] : memref<1x1x1x32xf32, #tpu.memory_space<vmem>>, vector<1x1x1x32xf32>
    %10 = vector.shape_cast %9 : vector<1x1x1x32xf32> to vector<1x32xf32>
    %11 = tpu.concatenate %8, %10 in 0 : vector<15x32xf32>, vector<1x32xf32> -> vector<16x32xf32>
    %c0_12 = arith.constant 0 : index
    %c0_13 = arith.constant 0 : index
    %12 = vector.load %arg5[%c0_12, %c0_13] : memref<96x64xf32, #tpu.memory_space<vmem>>, vector<96x64xf32>
    %13 = vector.extract_strided_slice %12 {offsets = [0, 0], sizes = [32, 64], strides = [1, 1]} : vector<96x64xf32> to vector<32x64xf32>
    %14 = vector.extract_strided_slice %12 {offsets = [32, 0], sizes = [32, 64], strides = [1, 1]} : vector<96x64xf32> to vector<32x64xf32>
    %15 = vector.extract_strided_slice %12 {offsets = [64, 0], sizes = [32, 64], strides = [1, 1]} : vector<96x64xf32> to vector<32x64xf32>
    %cst = arith.constant dense<0.000000e+00> : vector<16x64xf32>
    %16 = tpu.matmul %7, %13, %cst {dimension_numbers = #tpu.dot_dimension_numbers<[1], [0], [0], [1], [0, 0, 1, 1], [], []>} : vector<16x32xf32>, vector<32x64xf32>, vector<16x64xf32> -> vector<16x64xf32>
    %cst_14 = arith.constant dense<0.000000e+00> : vector<16x64xf32>
    %17 = tpu.matmul %1, %14, %cst_14 {dimension_numbers = #tpu.dot_dimension_numbers<[1], [0], [0], [1], [0, 0, 1, 1], [], []>} : vector<16x32xf32>, vector<32x64xf32>, vector<16x64xf32> -> vector<16x64xf32>
    %18 = arith.addf %16, %17 : vector<16x64xf32>
    %cst_15 = arith.constant dense<0.000000e+00> : vector<16x64xf32>
    %19 = tpu.matmul %3, %15, %cst_15 {dimension_numbers = #tpu.dot_dimension_numbers<[1], [0], [0], [1], [0, 0, 1, 1], [], []>} : vector<16x32xf32>, vector<32x64xf32>, vector<16x64xf32> -> vector<16x64xf32>
    %20 = arith.addf %18, %19 : vector<16x64xf32>
    %cst_16 = arith.constant dense<0.000000e+00> : vector<16x64xf32>
    %21 = tpu.matmul %1, %13, %cst_16 {dimension_numbers = #tpu.dot_dimension_numbers<[1], [0], [0], [1], [0, 0, 1, 1], [], []>} : vector<16x32xf32>, vector<32x64xf32>, vector<16x64xf32> -> vector<16x64xf32>
    %cst_17 = arith.constant dense<0.000000e+00> : vector<16x64xf32>
    %22 = tpu.matmul %3, %14, %cst_17 {dimension_numbers = #tpu.dot_dimension_numbers<[1], [0], [0], [1], [0, 0, 1, 1], [], []>} : vector<16x32xf32>, vector<32x64xf32>, vector<16x64xf32> -> vector<16x64xf32>
    %23 = arith.addf %21, %22 : vector<16x64xf32>
    %cst_18 = arith.constant dense<0.000000e+00> : vector<16x64xf32>
    %24 = tpu.matmul %11, %15, %cst_18 {dimension_numbers = #tpu.dot_dimension_numbers<[1], [0], [0], [1], [0, 0, 1, 1], [], []>} : vector<16x32xf32>, vector<32x64xf32>, vector<16x64xf32> -> vector<16x64xf32>
    %25 = arith.addf %23, %24 : vector<16x64xf32>
    %26 = arith.maximumf %20, %25 : vector<16x64xf32>
    %c0_19 = arith.constant 0 : index
    %c0_20 = arith.constant 0 : index
    %27 = vector.load %arg6[%c0_19, %c0_20] : memref<1x64xf32, #tpu.memory_space<vmem>>, vector<1x64xf32>
    %28 = vector.broadcast %27 : vector<1x64xf32> to vector<16x64xf32>
    %29 = arith.addf %26, %28 : vector<16x64xf32>
    %cst_21 = arith.constant 0.000000e+00 : f32
    %30 = vector.broadcast %cst_21 : f32 to vector<16x64xf32>
    %31 = arith.maximumf %29, %30 : vector<16x64xf32>
    %c16_i32 = arith.constant 16 : i32
    %32 = arith.muli %arg1, %c16_i32 : i32
    %33 = tpu.iota {dimensions = array<i32: 0>} : vector<16x64xi32>
    %34 = vector.broadcast %32 : i32 to vector<16x64xi32>
    %35 = arith.addi %34, %33 : vector<16x64xi32>
    %c15_i32 = arith.constant 15 : i32
    %36 = vector.broadcast %c15_i32 : i32 to vector<16x64xi32>
    %37 = arith.cmpi slt, %35, %36 : vector<16x64xi32>
    %cst_22 = arith.constant 0.000000e+00 : f32
    %38 = vector.broadcast %cst_22 : f32 to vector<16x64xf32>
    %39 = arith.select %37, %31, %38 : vector<16x64xi1>, vector<16x64xf32>
    %c0_23 = arith.constant 0 : index
    %c0_24 = arith.constant 0 : index
    %c0_25 = arith.constant 0 : index
    %40 = vector.load %arg7[%c0_23, %c0_24, %c0_25] : memref<1x16x64xf32, #tpu.memory_space<vmem>>, vector<1x16x64xf32>
    %41 = vector.shape_cast %40 : vector<1x16x64xf32> to vector<16x64xf32>
    %42 = vector.shape_cast %39 : vector<16x64xf32> to vector<1x16x64xf32>
    tpu.vector_store %arg7[%c0_23, %c0_24, %c0_25], %42 {strides = array<i32>} : memref<1x16x64xf32, #tpu.memory_space<vmem>>, vector<1x16x64xf32>,
    return
  }
  func.func @transform_0(%arg0: i32, %arg1: i32) -> (i32, i32, i32) {
    %c0_i32 = arith.constant 0 : i32
    %c0_i32_0 = arith.constant 0 : i32
    return %arg0, %arg1, %c0_i32 : i32, i32, i32
  }
  func.func @transform_1(%arg0: i32, %arg1: i32) -> (i32, i32, i32, i32) {
    %c0_i32 = arith.constant 0 : i32
    %c0_i32_0 = arith.constant 0 : i32
    %c0_i32_1 = arith.constant 0 : i32
    return %arg0, %arg1, %c0_i32, %c0_i32_0 : i32, i32, i32, i32
  }
  func.func @transform_2(%arg0: i32, %arg1: i32) -> (i32, i32, i32, i32) {
    %c0_i32 = arith.constant 0 : i32
    %c0_i32_0 = arith.constant 0 : i32
    %c0_i32_1 = arith.constant 0 : i32
    return %arg0, %arg1, %c0_i32, %c0_i32_0 : i32, i32, i32, i32
  }
  func.func @transform_3(%arg0: i32, %arg1: i32) -> (i32, i32) {
    %c0_i32 = arith.constant 0 : i32
    %c0_i32_0 = arith.constant 0 : i32
    %c0_i32_1 = arith.constant 0 : i32
    return %c0_i32, %c0_i32_0 : i32, i32
  }
  func.func @transform_4(%arg0: i32, %arg1: i32) -> (i32, i32) {
    %c0_i32 = arith.constant 0 : i32
    %c0_i32_0 = arith.constant 0 : i32
    %c0_i32_1 = arith.constant 0 : i32
    return %c0_i32, %c0_i32_0 : i32, i32
  }
  func.func @transform_5(%arg0: i32, %arg1: i32) -> (i32, i32, i32) {
    %c0_i32 = arith.constant 0 : i32
    %c0_i32_0 = arith.constant 0 : i32
    return %arg0, %arg1, %c0_i32 : i32, i32, i32
  }
}

module attributes {stable_mosaic.version = 11 : i64} {
  func.func @conv_relu_pool_kernel(%arg0: i32, %arg1: i32, %arg2: memref<1x16x64xf32, #tpu.memory_space<vmem>>, %arg3: memref<1x1x1x64xf32, #tpu.memory_space<vmem>>, %arg4: memref<1x1x1x64xf32, #tpu.memory_space<vmem>>, %arg5: memref<192x128xf32, #tpu.memory_space<vmem>>, %arg6: memref<1x128xf32, #tpu.memory_space<vmem>>, %arg7: memref<1x8x128xf32, #tpu.memory_space<vmem>>) attributes {dimension_semantics = [#tpu.dimension_semantics<parallel>, #tpu.dimension_semantics<parallel>], iteration_bounds = array<i64: 2, 1>, scalar_prefetch = 0 : i64, scratch_operands = 0 : i64, tpu.core_type = #tpu.core_type<tc>, window_params = [{transform_indices = @transform_0, window_bounds = array<i64: 1, 16, 64>}, {transform_indices = @transform_1, window_bounds = array<i64: 1, 1, 1, 64>}, {transform_indices = @transform_2, window_bounds = array<i64: 1, 1, 1, 64>}, {pipeline_mode = #tpu.pipeline_mode<synchronous>, transform_indices = @transform_3, window_bounds = array<i64: 192, 128>}, {pipeline_mode = #tpu.pipeline_mode<synchronous>, transform_indices = @transform_4, window_bounds = array<i64: 1, 128>}, {transform_indices = @transform_5, window_bounds = array<i64: 1, 8, 128>}]} {
    %c0 = arith.constant 0 : index
    %c0_0 = arith.constant 0 : index
    %c0_1 = arith.constant 0 : index
    %0 = tpu.strided_load %arg2[%c0, %c0_0, %c0_1] {strides = array<i32: 1, 2, 1>} : memref<1x16x64xf32, #tpu.memory_space<vmem>>, vector<1x8x64xf32>
    %1 = vector.shape_cast %0 : vector<1x8x64xf32> to vector<8x64xf32>
    %c0_2 = arith.constant 0 : index
    %c1 = arith.constant 1 : index
    %c0_3 = arith.constant 0 : index
    %2 = tpu.strided_load %arg2[%c0_2, %c1, %c0_3] {strides = array<i32: 1, 2, 1>} : memref<1x16x64xf32, #tpu.memory_space<vmem>>, vector<1x8x64xf32>
    %3 = vector.shape_cast %2 : vector<1x8x64xf32> to vector<8x64xf32>
    %c0_4 = arith.constant 0 : index
    %c0_5 = arith.constant 0 : index
    %c0_6 = arith.constant 0 : index
    %c0_7 = arith.constant 0 : index
    %4 = vector.load %arg3[%c0_4, %c0_5, %c0_6, %c0_7] : memref<1x1x1x64xf32, #tpu.memory_space<vmem>>, vector<1x1x1x64xf32>
    %5 = vector.shape_cast %4 : vector<1x1x1x64xf32> to vector<1x64xf32>
    %6 = vector.extract_strided_slice %3 {offsets = [0, 0], sizes = [7, 64], strides = [1, 1]} : vector<8x64xf32> to vector<7x64xf32>
    %7 = tpu.concatenate %5, %6 in 0 : vector<1x64xf32>, vector<7x64xf32> -> vector<8x64xf32>
    %8 = vector.extract_strided_slice %1 {offsets = [1, 0], sizes = [7, 64], strides = [1, 1]} : vector<8x64xf32> to vector<7x64xf32>
    %c0_8 = arith.constant 0 : index
    %c0_9 = arith.constant 0 : index
    %c0_10 = arith.constant 0 : index
    %c0_11 = arith.constant 0 : index
    %9 = vector.load %arg4[%c0_8, %c0_9, %c0_10, %c0_11] : memref<1x1x1x64xf32, #tpu.memory_space<vmem>>, vector<1x1x1x64xf32>
    %10 = vector.shape_cast %9 : vector<1x1x1x64xf32> to vector<1x64xf32>
    %11 = tpu.concatenate %8, %10 in 0 : vector<7x64xf32>, vector<1x64xf32> -> vector<8x64xf32>
    %c0_12 = arith.constant 0 : index
    %c0_13 = arith.constant 0 : index
    %12 = vector.load %arg5[%c0_12, %c0_13] : memref<192x128xf32, #tpu.memory_space<vmem>>, vector<192x128xf32>
    %13 = vector.extract_strided_slice %12 {offsets = [0, 0], sizes = [64, 128], strides = [1, 1]} : vector<192x128xf32> to vector<64x128xf32>
    %14 = vector.extract_strided_slice %12 {offsets = [64, 0], sizes = [64, 128], strides = [1, 1]} : vector<192x128xf32> to vector<64x128xf32>
    %15 = vector.extract_strided_slice %12 {offsets = [128, 0], sizes = [64, 128], strides = [1, 1]} : vector<192x128xf32> to vector<64x128xf32>
    %cst = arith.constant dense<0.000000e+00> : vector<8x128xf32>
    %16 = tpu.matmul %7, %13, %cst {dimension_numbers = #tpu.dot_dimension_numbers<[1], [0], [0], [1], [0, 0, 1, 1], [], []>} : vector<8x64xf32>, vector<64x128xf32>, vector<8x128xf32> -> vector<8x128xf32>
    %cst_14 = arith.constant dense<0.000000e+00> : vector<8x128xf32>
    %17 = tpu.matmul %1, %14, %cst_14 {dimension_numbers = #tpu.dot_dimension_numbers<[1], [0], [0], [1], [0, 0, 1, 1], [], []>} : vector<8x64xf32>, vector<64x128xf32>, vector<8x128xf32> -> vector<8x128xf32>
    %18 = arith.addf %16, %17 : vector<8x128xf32>
    %cst_15 = arith.constant dense<0.000000e+00> : vector<8x128xf32>
    %19 = tpu.matmul %3, %15, %cst_15 {dimension_numbers = #tpu.dot_dimension_numbers<[1], [0], [0], [1], [0, 0, 1, 1], [], []>} : vector<8x64xf32>, vector<64x128xf32>, vector<8x128xf32> -> vector<8x128xf32>
    %20 = arith.addf %18, %19 : vector<8x128xf32>
    %cst_16 = arith.constant dense<0.000000e+00> : vector<8x128xf32>
    %21 = tpu.matmul %1, %13, %cst_16 {dimension_numbers = #tpu.dot_dimension_numbers<[1], [0], [0], [1], [0, 0, 1, 1], [], []>} : vector<8x64xf32>, vector<64x128xf32>, vector<8x128xf32> -> vector<8x128xf32>
    %cst_17 = arith.constant dense<0.000000e+00> : vector<8x128xf32>
    %22 = tpu.matmul %3, %14, %cst_17 {dimension_numbers = #tpu.dot_dimension_numbers<[1], [0], [0], [1], [0, 0, 1, 1], [], []>} : vector<8x64xf32>, vector<64x128xf32>, vector<8x128xf32> -> vector<8x128xf32>
    %23 = arith.addf %21, %22 : vector<8x128xf32>
    %cst_18 = arith.constant dense<0.000000e+00> : vector<8x128xf32>
    %24 = tpu.matmul %11, %15, %cst_18 {dimension_numbers = #tpu.dot_dimension_numbers<[1], [0], [0], [1], [0, 0, 1, 1], [], []>} : vector<8x64xf32>, vector<64x128xf32>, vector<8x128xf32> -> vector<8x128xf32>
    %25 = arith.addf %23, %24 : vector<8x128xf32>
    %26 = arith.maximumf %20, %25 : vector<8x128xf32>
    %c0_19 = arith.constant 0 : index
    %c0_20 = arith.constant 0 : index
    %27 = vector.load %arg6[%c0_19, %c0_20] : memref<1x128xf32, #tpu.memory_space<vmem>>, vector<1x128xf32>
    %28 = vector.broadcast %27 : vector<1x128xf32> to vector<8x128xf32>
    %29 = arith.addf %26, %28 : vector<8x128xf32>
    %cst_21 = arith.constant 0.000000e+00 : f32
    %30 = vector.broadcast %cst_21 : f32 to vector<8x128xf32>
    %31 = arith.maximumf %29, %30 : vector<8x128xf32>
    %c8_i32 = arith.constant 8 : i32
    %32 = arith.muli %arg1, %c8_i32 : i32
    %33 = tpu.iota {dimensions = array<i32: 0>} : vector<8x128xi32>
    %34 = vector.broadcast %32 : i32 to vector<8x128xi32>
    %35 = arith.addi %34, %33 : vector<8x128xi32>
    %c7_i32 = arith.constant 7 : i32
    %36 = vector.broadcast %c7_i32 : i32 to vector<8x128xi32>
    %37 = arith.cmpi slt, %35, %36 : vector<8x128xi32>
    %cst_22 = arith.constant 0.000000e+00 : f32
    %38 = vector.broadcast %cst_22 : f32 to vector<8x128xf32>
    %39 = arith.select %37, %31, %38 : vector<8x128xi1>, vector<8x128xf32>
    %c0_23 = arith.constant 0 : index
    %c0_24 = arith.constant 0 : index
    %c0_25 = arith.constant 0 : index
    %40 = vector.load %arg7[%c0_23, %c0_24, %c0_25] : memref<1x8x128xf32, #tpu.memory_space<vmem>>, vector<1x8x128xf32>
    %41 = vector.shape_cast %40 : vector<1x8x128xf32> to vector<8x128xf32>
    %42 = vector.shape_cast %39 : vector<8x128xf32> to vector<1x8x128xf32>
    tpu.vector_store %arg7[%c0_23, %c0_24, %c0_25], %42 {strides = array<i32>} : memref<1x8x128xf32, #tpu.memory_space<vmem>>, vector<1x8x128xf32>,
    return
  }
  func.func @transform_0(%arg0: i32, %arg1: i32) -> (i32, i32, i32) {
    %c0_i32 = arith.constant 0 : i32
    %c0_i32_0 = arith.constant 0 : i32
    return %arg0, %arg1, %c0_i32 : i32, i32, i32
  }
  func.func @transform_1(%arg0: i32, %arg1: i32) -> (i32, i32, i32, i32) {
    %c0_i32 = arith.constant 0 : i32
    %c0_i32_0 = arith.constant 0 : i32
    %c0_i32_1 = arith.constant 0 : i32
    return %arg0, %arg1, %c0_i32, %c0_i32_0 : i32, i32, i32, i32
  }
  func.func @transform_2(%arg0: i32, %arg1: i32) -> (i32, i32, i32, i32) {
    %c0_i32 = arith.constant 0 : i32
    %c0_i32_0 = arith.constant 0 : i32
    %c0_i32_1 = arith.constant 0 : i32
    return %arg0, %arg1, %c0_i32, %c0_i32_0 : i32, i32, i32, i32
  }
  func.func @transform_3(%arg0: i32, %arg1: i32) -> (i32, i32) {
    %c0_i32 = arith.constant 0 : i32
    %c0_i32_0 = arith.constant 0 : i32
    %c0_i32_1 = arith.constant 0 : i32
    return %c0_i32, %c0_i32_0 : i32, i32
  }
  func.func @transform_4(%arg0: i32, %arg1: i32) -> (i32, i32) {
    %c0_i32 = arith.constant 0 : i32
    %c0_i32_0 = arith.constant 0 : i32
    %c0_i32_1 = arith.constant 0 : i32
    return %c0_i32, %c0_i32_0 : i32, i32
  }
  func.func @transform_5(%arg0: i32, %arg1: i32) -> (i32, i32, i32) {
    %c0_i32 = arith.constant 0 : i32
    %c0_i32_0 = arith.constant 0 : i32
    return %arg0, %arg1, %c0_i32 : i32, i32, i32
  }
}

module attributes {stable_mosaic.version = 11 : i64} {
  func.func @mlp_kernel(%arg0: i32, %arg1: i32, %arg2: memref<2x256xbf16, #tpu.memory_space<vmem>>, %arg3: memref<256x128xbf16, #tpu.memory_space<vmem>>, %arg4: memref<1x128xf32, #tpu.memory_space<vmem>>, %arg5: memref<128x5xf32, #tpu.memory_space<vmem>>, %arg6: memref<1x5xf32, #tpu.memory_space<vmem>>, %arg7: memref<1x2x5xf32, #tpu.memory_space<vmem>>, %arg8: memref<2x128xf32, #tpu.memory_space<vmem>>) attributes {dimension_semantics = [#tpu.dimension_semantics<parallel>, #tpu.dimension_semantics<arbitrary>], iteration_bounds = array<i64: 2, 4>, scalar_prefetch = 0 : i64, scratch_operands = 1 : i64, tpu.core_type = #tpu.core_type<tc>, window_params = [{transform_indices = @transform_0, window_bounds = array<i64: 2, 256>}, {transform_indices = @transform_1, window_bounds = array<i64: 256, 128>}, {transform_indices = @transform_2, window_bounds = array<i64: 1, 128>}, {transform_indices = @transform_3, window_bounds = array<i64: 128, 5>}, {pipeline_mode = #tpu.pipeline_mode<synchronous>, transform_indices = @transform_4, window_bounds = array<i64: 1, 5>}, {transform_indices = @transform_5, window_bounds = array<i64: 1, 2, 5>}]} {
    %c0_i32 = arith.constant 0 : i32
    %0 = arith.cmpi eq, %arg1, %c0_i32 : i32
    %1 = arith.extui %0 : i1 to i32
    %c0_i32_0 = arith.constant 0 : i32
    %2 = arith.cmpi ne, %1, %c0_i32_0 : i32
    scf.if %2 {
      %cst_9 = arith.constant 0.000000e+00 : f32
      %12 = vector.broadcast %cst_9 : f32 to vector<2x128xf32>
      %c0_10 = arith.constant 0 : index
      %c0_11 = arith.constant 0 : index
      %13 = vector.load %arg8[%c0_10, %c0_11] : memref<2x128xf32, #tpu.memory_space<vmem>>, vector<2x128xf32>
      tpu.vector_store %arg8[%c0_10, %c0_11], %12 {strides = array<i32>} : memref<2x128xf32, #tpu.memory_space<vmem>>, vector<2x128xf32>,
    } else {
    }
    %c0 = arith.constant 0 : index
    %c0_1 = arith.constant 0 : index
    %3 = vector.load %arg8[%c0, %c0_1] : memref<2x128xf32, #tpu.memory_space<vmem>>, vector<2x128xf32>
    %c0_2 = arith.constant 0 : index
    %c0_3 = arith.constant 0 : index
    %4 = vector.load %arg2[%c0_2, %c0_3] : memref<2x256xbf16, #tpu.memory_space<vmem>>, vector<2x256xbf16>
    %c0_4 = arith.constant 0 : index
    %c0_5 = arith.constant 0 : index
    %5 = vector.load %arg3[%c0_4, %c0_5] : memref<256x128xbf16, #tpu.memory_space<vmem>>, vector<256x128xbf16>
    %cst = arith.constant dense<0.000000e+00> : vector<2x128xf32>
    %6 = tpu.matmul %4, %5, %cst {dimension_numbers = #tpu.dot_dimension_numbers<[1], [0], [0], [1], [0, 0, 1, 1], [], []>} : vector<2x256xbf16>, vector<256x128xbf16>, vector<2x128xf32> -> vector<2x128xf32>
    %7 = arith.addf %3, %6 : vector<2x128xf32>
    %c0_6 = arith.constant 0 : index
    %c0_7 = arith.constant 0 : index
    %8 = vector.load %arg8[%c0_6, %c0_7] : memref<2x128xf32, #tpu.memory_space<vmem>>, vector<2x128xf32>
    tpu.vector_store %arg8[%c0_6, %c0_7], %7 {strides = array<i32>} : memref<2x128xf32, #tpu.memory_space<vmem>>, vector<2x128xf32>,
    %c3_i32 = arith.constant 3 : i32
    %9 = arith.cmpi eq, %arg1, %c3_i32 : i32
    %10 = arith.extui %9 : i1 to i32
    %c0_i32_8 = arith.constant 0 : i32
    %11 = arith.cmpi ne, %10, %c0_i32_8 : i32
    scf.if %11 {
      %c0_9 = arith.constant 0 : index
      %c0_10 = arith.constant 0 : index
      %12 = vector.load %arg8[%c0_9, %c0_10] : memref<2x128xf32, #tpu.memory_space<vmem>>, vector<2x128xf32>
      %c0_11 = arith.constant 0 : index
      %c0_12 = arith.constant 0 : index
      %13 = vector.load %arg4[%c0_11, %c0_12] : memref<1x128xf32, #tpu.memory_space<vmem>>, vector<1x128xf32>
      %14 = vector.broadcast %13 : vector<1x128xf32> to vector<2x128xf32>
      %15 = arith.addf %12, %14 : vector<2x128xf32>
      %cst_13 = arith.constant 0.000000e+00 : f32
      %16 = vector.broadcast %cst_13 : f32 to vector<2x128xf32>
      %17 = arith.maximumf %15, %16 : vector<2x128xf32>
      %c0_14 = arith.constant 0 : index
      %c0_15 = arith.constant 0 : index
      %18 = vector.load %arg5[%c0_14, %c0_15] : memref<128x5xf32, #tpu.memory_space<vmem>>, vector<128x5xf32>
      %cst_16 = arith.constant dense<0.000000e+00> : vector<2x5xf32>
      %19 = tpu.matmul %17, %18, %cst_16 {dimension_numbers = #tpu.dot_dimension_numbers<[1], [0], [0], [1], [0, 0, 1, 1], [], []>} : vector<2x128xf32>, vector<128x5xf32>, vector<2x5xf32> -> vector<2x5xf32>
      %c0_i32_17 = arith.constant 0 : i32
      %20 = arith.cmpi eq, %arg0, %c0_i32_17 : i32
      %cst_18 = arith.constant 1.000000e+00 : f32
      %cst_19 = arith.constant 0.000000e+00 : f32
      %21 = arith.select %20, %cst_18, %cst_19 : f32
      %c0_20 = arith.constant 0 : index
      %c0_21 = arith.constant 0 : index
      %22 = vector.load %arg6[%c0_20, %c0_21] : memref<1x5xf32, #tpu.memory_space<vmem>>, vector<1x5xf32>
      %23 = vector.broadcast %21 : f32 to vector<1x5xf32>
      %24 = arith.mulf %23, %22 : vector<1x5xf32>
      %25 = vector.broadcast %24 : vector<1x5xf32> to vector<2x5xf32>
      %26 = arith.addf %19, %25 : vector<2x5xf32>
      %c0_22 = arith.constant 0 : index
      %c0_23 = arith.constant 0 : index
      %c0_24 = arith.constant 0 : index
      %27 = vector.load %arg7[%c0_22, %c0_23, %c0_24] : memref<1x2x5xf32, #tpu.memory_space<vmem>>, vector<1x2x5xf32>
      %28 = vector.shape_cast %27 : vector<1x2x5xf32> to vector<2x5xf32>
      %29 = vector.shape_cast %26 : vector<2x5xf32> to vector<1x2x5xf32>
      tpu.vector_store %arg7[%c0_22, %c0_23, %c0_24], %29 {strides = array<i32>} : memref<1x2x5xf32, #tpu.memory_space<vmem>>, vector<1x2x5xf32>,
    } else {
    }
    return
  }
  func.func @transform_0(%arg0: i32, %arg1: i32) -> (i32, i32) {
    %c0_i32 = arith.constant 0 : i32
    %c0_i32_0 = arith.constant 0 : i32
    return %c0_i32, %arg1 : i32, i32
  }
  func.func @transform_1(%arg0: i32, %arg1: i32) -> (i32, i32) {
    %c0_i32 = arith.constant 0 : i32
    return %arg1, %arg0 : i32, i32
  }
  func.func @transform_2(%arg0: i32, %arg1: i32) -> (i32, i32) {
    %c0_i32 = arith.constant 0 : i32
    %c0_i32_0 = arith.constant 0 : i32
    return %c0_i32, %arg0 : i32, i32
  }
  func.func @transform_3(%arg0: i32, %arg1: i32) -> (i32, i32) {
    %c0_i32 = arith.constant 0 : i32
    %c0_i32_0 = arith.constant 0 : i32
    return %arg0, %c0_i32 : i32, i32
  }
  func.func @transform_4(%arg0: i32, %arg1: i32) -> (i32, i32) {
    %c0_i32 = arith.constant 0 : i32
    %c0_i32_0 = arith.constant 0 : i32
    %c0_i32_1 = arith.constant 0 : i32
    return %c0_i32, %c0_i32_0 : i32, i32
  }
  func.func @transform_5(%arg0: i32, %arg1: i32) -> (i32, i32, i32) {
    %c0_i32 = arith.constant 0 : i32
    %c0_i32_0 = arith.constant 0 : i32
    %c0_i32_1 = arith.constant 0 : i32
    return %arg0, %c0_i32, %c0_i32_0 : i32, i32, i32
  }
}

</mosaic_0001>

<llo_original>
// kernel: cnn_forward.4
$region0: #{cnn_forward.4}
  #allocation0 [shape = 'u32[]', space=smem, size = 0x4, offset = 0x4, fixed_abs, tag = 'smem constant byte address 0x4 - core index']
  #allocation1 [shape = 'u32[144,128]{1,0:T(1,128)}', space=vmem, size = 0x12000, scoped, tag = 'internal scratch']
  %s0 = inlined_call_operand.vmem [shape: f32[2,64,1], index: 0, kind: input, shape index: {}]
  %s1 = inlined_call_operand.vmem [shape: f32[2,2,1,1], index: 1, kind: input, shape index: {}]
  %s2 = inlined_call_operand.vmem [shape: f32[2,2,1,1], index: 2, kind: input, shape index: {}]
  %s3 = inlined_call_operand.vmem [shape: f32[3,32], index: 3, kind: input, shape index: {}]
  %s4 = inlined_call_operand.vmem [shape: f32[1,32], index: 4, kind: input, shape index: {}]
  %s5 = inlined_call_operand.vmem [shape: f32[2,32,32], index: 5, kind: output, shape index: {}]
  %s6 = sld [smem:[#allocation0]]
  $region53: #{cnn_forward.4} parent=0
    _
  %s8 = ssub.s32 1, %s6
  %s9 = scalar_select 0, %s8, %s6
  loop: start=0, step=1, limit=6
  $region2: #{cnn_forward.4} parent=0 // loop_pre_header
    _
  $region3: #{cnn_forward.4} parent=0 // loop_header
    %s11 = sphi 0, %s15
    %p12 = scmp.ge.s32.totalorder %s11, 6
    %s18 = sphi 0, %s30
    %s19 = sphi 0, %s26
    %s20 = sphi 0, %s18
    %s21 = sphi 0, %s19
    %s22 = sphi 0, %s20
    %s23 = sphi 0, %s21
    %s35 = sphi 0, %s37
    %s38 = sphi 0, %s35
    %s39 = sphi 0, %s38
    %s55 = sphi 0, %s39
    %s63 = sphi 0, %s65
    %s66 = sphi 0, %s63
    %s67 = sphi 0, %s66
    %s83 = sphi 0, %s67
    %s91 = sphi 0, %s93
    %s94 = sphi 0, %s91
    %s95 = sphi 0, %s94
    %s111 = sphi 0, %s95
    %s115 = sphi 0, %s115
    %s117 = sphi 0, %s115
    %s118 = sphi 0, %s117
    %s132 = sphi 0, %s118
    %s136 = sphi 0, %s136
    %s138 = sphi 0, %s136
    %s139 = sphi 0, %s138
    %s153 = sphi 0, %s139
    %s161 = sphi 0, %s163
    %s164 = sphi 0, %s161
    %s165 = sphi 0, %s164
    %s181 = sphi 0, %s165
  $region4: #{cnn_forward.4} parent=0 // loop_header_branch
    %14 = sbr.rel (%p12) target = $region8
  $region5: #{cnn_forward.4} parent=0 // loop_body
    %s16 = ssub.s32 %s11, 1
    %s17 = ssub.s32 %s11, 2
    %s24 = sadd.s32 1, %s19
    %p25 = scmp.ge.s32.totalorder %s24, 2
    %s26 = scalar_select %p25, 0, %s24
    %s27 = sadd.s32 1, %s18
    %s28 = scalar_select %p25, %s27, %s18
    %p29 = scmp.ge.s32.totalorder %s28, 2
    %s30 = scalar_select %p29, 0, %s28
    %s31 = ssub.s32 %s18, %s30
    %s32 = ssub.s32 %s19, %s26
    %s33 = sor.u32 %s31, %s32
    %p34 = scmp.eq.s32.totalorder %s33, 0
    %s36 = sadd.s32 %s35, 1
    %s37 = scalar_select %p34, %s35, %s36
    %p40 = pneg %p34
    %p41 = scmp.eq.s32.totalorder %s11, 3
    %p42 = por %p40, %p41
    %p43 = scmp.ne.s32.totalorder %s35, %s38
    %p44 = scmp.eq.s32.totalorder %s11, 0
    %p45 = por %p43, %p44
    %p46 = scmp.ne.s32.totalorder %s35, %s38
    %p47 = scmp.eq.s32.totalorder %s16, 3
    %p48 = por %p46, %p47
    %p49 = scmp.ne.s32.totalorder %s38, %s39
    %p50 = scmp.eq.s32.totalorder %s16, 0
    %p51 = por %p49, %p50
    %p52 = scmp.ne.s32.totalorder %s38, %s39
    %p53 = scmp.eq.s32.totalorder %s17, 3
    %p54 = por %p52, %p53
    %p56 = scmp.ne.s32.totalorder %s39, %s55
    %p57 = scmp.eq.s32.totalorder %s17, 0
    %p58 = por %p56, %p57
    %s59 = ssub.s32 %s18, %s30
    %s60 = ssub.s32 %s19, %s26
    %s61 = sor.u32 %s59, %s60
    %p62 = scmp.eq.s32.totalorder %s61, 0
    %s64 = sadd.s32 %s63, 1
    %s65 = scalar_select %p62, %s63, %s64
    %p68 = pneg %p62
    %p69 = scmp.eq.s32.totalorder %s11, 3
    %p70 = por %p68, %p69
    %p71 = scmp.ne.s32.totalorder %s63, %s66
    %p72 = scmp.eq.s32.totalorder %s11, 0
    %p73 = por %p71, %p72
    %p74 = scmp.ne.s32.totalorder %s63, %s66
    %p75 = scmp.eq.s32.totalorder %s16, 3
    %p76 = por %p74, %p75
    %p77 = scmp.ne.s32.totalorder %s66, %s67
    %p78 = scmp.eq.s32.totalorder %s16, 0
    %p79 = por %p77, %p78
    %p80 = scmp.ne.s32.totalorder %s66, %s67
    %p81 = scmp.eq.s32.totalorder %s17, 3
    %p82 = por %p80, %p81
    %p84 = scmp.ne.s32.totalorder %s67, %s83
    %p85 = scmp.eq.s32.totalorder %s17, 0
    %p86 = por %p84, %p85
    %s87 = ssub.s32 %s18, %s30
    %s88 = ssub.s32 %s19, %s26
    %s89 = sor.u32 %s87, %s88
    %p90 = scmp.eq.s32.totalorder %s89, 0
    %s92 = sadd.s32 %s91, 1
    %s93 = scalar_select %p90, %s91, %s92
    %p96 = pneg %p90
    %p97 = scmp.eq.s32.totalorder %s11, 3
    %p98 = por %p96, %p97
    %p99 = scmp.ne.s32.totalorder %s91, %s94
    %p100 = scmp.eq.s32.totalorder %s11, 0
    %p101 = por %p99, %p100
    %p102 = scmp.ne.s32.totalorder %s91, %s94
    %p103 = scmp.eq.s32.totalorder %s16, 3
    %p104 = por %p102, %p103
    %p105 = scmp.ne.s32.totalorder %s94, %s95
    %p106 = scmp.eq.s32.totalorder %s16, 0
    %p107 = por %p105, %p106
    %p108 = scmp.ne.s32.totalorder %s94, %s95
    %p109 = scmp.eq.s32.totalorder %s17, 3
    %p110 = por %p108, %p109
    %p112 = scmp.ne.s32.totalorder %s95, %s111
    %p113 = scmp.eq.s32.totalorder %s17, 0
    %p114 = por %p112, %p113
    %s116 = sadd.s32 %s115, 1
    %p119 = scmp.eq.s32.totalorder %s11, 3
    %p120 = scmp.ne.s32.totalorder %s115, %s117
    %p121 = scmp.eq.s32.totalorder %s11, 0
    %p122 = por %p120, %p121
    %p123 = scmp.ne.s32.totalorder %s115, %s117
    %p124 = scmp.eq.s32.totalorder %s16, 3
    %p125 = por %p123, %p124
    %p126 = scmp.ne.s32.totalorder %s117, %s118
    %p127 = scmp.eq.s32.totalorder %s16, 0
    %p128 = por %p126, %p127
    %p129 = scmp.ne.s32.totalorder %s117, %s118
    %p130 = scmp.eq.s32.totalorder %s17, 3
    %p131 = por %p129, %p130
    %p133 = scmp.ne.s32.totalorder %s118, %s132
    %p134 = scmp.eq.s32.totalorder %s17, 0
    %p135 = por %p133, %p134
    %s137 = sadd.s32 %s136, 1
    %p140 = scmp.eq.s32.totalorder %s11, 3
    %p141 = scmp.ne.s32.totalorder %s136, %s138
    %p142 = scmp.eq.s32.totalorder %s11, 0
    %p143 = por %p141, %p142
    %p144 = scmp.ne.s32.totalorder %s136, %s138
    %p145 = scmp.eq.s32.totalorder %s16, 3
    %p146 = por %p144, %p145
    %p147 = scmp.ne.s32.totalorder %s138, %s139
    %p148 = scmp.eq.s32.totalorder %s16, 0
    %p149 = por %p147, %p148
    %p150 = scmp.ne.s32.totalorder %s138, %s139
    %p151 = scmp.eq.s32.totalorder %s17, 3
    %p152 = por %p150, %p151
    %p154 = scmp.ne.s32.totalorder %s139, %s153
    %p155 = scmp.eq.s32.totalorder %s17, 0
    %p156 = por %p154, %p155
    %s157 = ssub.s32 %s18, %s30
    %s158 = ssub.s32 %s19, %s26
    %s159 = sor.u32 %s157, %s158
    %p160 = scmp.eq.s32.totalorder %s159, 0
    %s162 = sadd.s32 %s161, 1
    %s163 = scalar_select %p160, %s161, %s162
    %p166 = pneg %p160
    %p167 = scmp.eq.s32.totalorder %s11, 3
    %p168 = por %p166, %p167
    %p169 = scmp.ne.s32.totalorder %s161, %s164
    %p170 = scmp.eq.s32.totalorder %s11, 0
    %p171 = por %p169, %p170
    %p172 = scmp.ne.s32.totalorder %s161, %s164
    %p173 = scmp.eq.s32.totalorder %s16, 3
    %p174 = por %p172, %p173
    %p175 = scmp.ne.s32.totalorder %s164, %s165
    %p176 = scmp.eq.s32.totalorder %s16, 0
    %p177 = por %p175, %p176
    %p178 = scmp.ne.s32.totalorder %s164, %s165
    %p179 = scmp.eq.s32.totalorder %s17, 3
    %p180 = por %p178, %p179
    %p182 = scmp.ne.s32.totalorder %s165, %s181
    %p183 = scmp.eq.s32.totalorder %s17, 0
    %p184 = por %p182, %p183
    %p185 = scmp.le.s32.totalorder 1, %s11
    %p186 = scmp.lt.s32.totalorder %s11, 5
    %p187 = pnand %p185, %p186
    %p188 = pneg %p187
    // Predicated region
    $region9: #{cnn_forward.4} parent=5 // pred_check
      _
    $region10: #{cnn_forward.4} parent=5 // pred_check_branch
      %190 = sbr.rel (%p187) target = $region12
    $region11: #{cnn_forward.4} parent=5 // pred_region
      %s191 = ssub.s32 %s11, 1
      // Predicated region
      $region13: #{cnn_forward.4} parent=11 // pred_check
        %p192 = pneg %p128
      $region14: #{cnn_forward.4} parent=11 // pred_check_branch
        %194 = sbr.rel (%p192) target = $region16
      $region15: #{cnn_forward.4} parent=11 // pred_region
        _
      $region16: #{cnn_forward.4} parent=11 // pred_fallthru
        _
      // Predicated region
      $region17: #{cnn_forward.4} parent=11 // pred_check
        %p195 = pneg %p149
      $region18: #{cnn_forward.4} parent=11 // pred_check_branch
        %197 = sbr.rel (%p195) target = $region20
      $region19: #{cnn_forward.4} parent=11 // pred_region
        _
      $region20: #{cnn_forward.4} parent=11 // pred_fallthru
        _
    $region12: #{cnn_forward.4} parent=5 // pred_fallthru
      _
    %p198 = scmp.lt.s32.totalorder %s11, 4
    // Predicated region
    $region21: #{cnn_forward.4} parent=5 // pred_check
      %p199 = pneg %p198
    $region22: #{cnn_forward.4} parent=5 // pred_check_branch
      %201 = sbr.rel (%p199) target = $region24
    $region23: #{cnn_forward.4} parent=5 // pred_region
      // Predicated region
      $region25: #{cnn_forward.4} parent=23 // pred_check
        %p202 = pneg %p45
      $region26: #{cnn_forward.4} parent=23 // pred_check_branch
        %204 = sbr.rel (%p202) target = $region28
      $region27: #{cnn_forward.4} parent=23 // pred_region
        %s205 = smul.u32 4, %s19
        %p206 = scmp.lt.s32.totalorder %s18, 1
        %s207 = scalar_select %p206, %s18, 1
        %p208 = scmp.lt.s32.totalorder %s205, 7
        %s209 = scalar_select %p208, %s205, 7
        %s210 = smul.addr %s207, 8
        %s211 = sadd.s32 %s209, %s210
        %s212 = smul.addr %s211, 8
        %s213 = scalar_lea.vmem %s0, %s212
        %s214 = smul.u32 4, %s19
      $region28: #{cnn_forward.4} parent=23 // pred_fallthru
        _
      // Predicated region
      $region29: #{cnn_forward.4} parent=23 // pred_check
        %p215 = pneg %p73
      $region30: #{cnn_forward.4} parent=23 // pred_check_branch
        %217 = sbr.rel (%p215) target = $region32
      $region31: #{cnn_forward.4} parent=23 // pred_region
        %p218 = scmp.lt.s32.totalorder %s18, 1
        %s219 = scalar_select %p218, %s18, 1
        %p220 = scmp.lt.s32.totalorder %s19, 1
        %s221 = scalar_select %p220, %s19, 1
        %s222 = smul.addr %s219, 2
        %s223 = sadd.s32 %s221, %s222
        %s224 = scalar_lea.vmem %s1, %s223
      $region32: #{cnn_forward.4} parent=23 // pred_fallthru
        _
      // Predicated region
      $region33: #{cnn_forward.4} parent=23 // pred_check
        %p225 = pneg %p101
      $region34: #{cnn_forward.4} parent=23 // pred_check_branch
        %227 = sbr.rel (%p225) target = $region36
      $region35: #{cnn_forward.4} parent=23 // pred_region
        %p228 = scmp.lt.s32.totalorder %s18, 1
        %s229 = scalar_select %p228, %s18, 1
        %p230 = scmp.lt.s32.totalorder %s19, 1
        %s231 = scalar_select %p230, %s19, 1
        %s232 = smul.addr %s229, 2
        %s233 = sadd.s32 %s231, %s232
        %s234 = scalar_lea.vmem %s2, %s233
      $region36: #{cnn_forward.4} parent=23 // pred_fallthru
        _
    $region24: #{cnn_forward.4} parent=5 // pred_fallthru
      _
    %p235 = scmp.le.s32.totalorder 1, %s11
    %p236 = scmp.lt.s32.totalorder %s11, 5
    %p237 = pnand %p235, %p236
    %p238 = pneg %p237
    // Predicated region
    $region37: #{cnn_forward.4} parent=5 // pred_check
      _
    $region38: #{cnn_forward.4} parent=5 // pred_check_branch
      %240 = sbr.rel (%p237) target = $region40
    $region39: #{cnn_forward.4} parent=5 // pred_region
      %s241 = ssub.s32 %s11, 1
      %s242 = smul.u32 4, %s21
      %p243 = scmp.lt.s32.totalorder %s20, 1
      %s244 = scalar_select %p243, %s20, 1
      %p245 = scmp.lt.s32.totalorder %s242, 7
      %s246 = scalar_select %p245, %s242, 7
      %s247 = smul.addr %s244, 8
      %s248 = sadd.s32 %s246, %s247
      %s249 = smul.addr %s248, 8
      %s250 = scalar_lea.vmem %s0, %s249
      %p251 = pneg %p51
      %p252 = pneg %p48
      %p253 = scmp.lt.s32.totalorder %s20, 1
      %s254 = scalar_select %p253, %s20, 1
      %p255 = scmp.lt.s32.totalorder %s21, 1
      %s256 = scalar_select %p255, %s21, 1
      %s257 = smul.addr %s254, 2
      %s258 = sadd.s32 %s256, %s257
      %s259 = scalar_lea.vmem %s1, %s258
      %p260 = pneg %p79
      %p261 = pneg %p76
      %p262 = scmp.lt.s32.totalorder %s20, 1
      %s263 = scalar_select %p262, %s20, 1
      %p264 = scmp.lt.s32.totalorder %s21, 1
      %s265 = scalar_select %p264, %s21, 1
      %s266 = smul.addr %s263, 2
      %s267 = sadd.s32 %s265, %s266
      %s268 = scalar_lea.vmem %s2, %s267
      %p269 = pneg %p107
      %p270 = pneg %p104
      %p271 = pneg %p128
      %p272 = pneg %p125
      %p273 = pneg %p149
      %p274 = pneg %p146
      %p275 = pneg %p177
      %p276 = pneg %p174
      %s277 = smul.u32 2, %s21
      %p278 = scmp.lt.s32.totalorder %s20, 1
      %s279 = scalar_select %p278, %s20, 1
      %p280 = scmp.lt.s32.totalorder %s277, 3
      %s281 = scalar_select %p280, %s277, 3
      %s282 = smul.addr %s279, 4
      %s283 = sadd.s32 %s281, %s282
      %s284 = smul.addr %s283, 8
      %s285 = scalar_lea.vmem %s5, %s284
      %s286 = smul.u32 4, %s21
      %p287 = scmp.lt.s32.totalorder %s20, 1
      %s288 = scalar_select %p287, %s20, 1
      %p289 = scmp.lt.s32.totalorder %s286, 7
      %s290 = scalar_select %p289, %s286, 7
      %s291 = smul.addr %s288, 8
      %s292 = sadd.s32 %s290, %s291
      %s293 = smul.addr %s292, 8
      %s294 = scalar_lea.vmem %s0, %s293
      %s295 = smul.u32 4, %s21
      %p296 = scmp.lt.s32.totalorder %s20, 1
      %s297 = scalar_select %p296, %s20, 1
      %p298 = scmp.lt.s32.totalorder %s21, 1
      %s299 = scalar_select %p298, %s21, 1
      %s300 = smul.addr %s297, 2
      %s301 = sadd.s32 %s299, %s300
      %s302 = scalar_lea.vmem %s1, %s301
      %p303 = scmp.lt.s32.totalorder %s20, 1
      %s304 = scalar_select %p303, %s20, 1
      %p305 = scmp.lt.s32.totalorder %s21, 1
      %s306 = scalar_select %p305, %s21, 1
      %s307 = smul.addr %s304, 2
      %s308 = sadd.s32 %s306, %s307
      %s309 = scalar_lea.vmem %s2, %s308
      %s310 = smul.u32 2, %s21
      %p311 = scmp.lt.s32.totalorder %s20, 1
      %s312 = scalar_select %p311, %s20, 1
      %p313 = scmp.lt.s32.totalorder %s310, 3
      %s314 = scalar_select %p313, %s310, 3
      %s315 = smul.addr %s312, 4
      %s316 = sadd.s32 %s314, %s315
      %s317 = smul.addr %s316, 8
      %s318 = scalar_lea.vmem %s5, %s317
      %s319 = smul.u32 2, %s21
      %v320 = vld [vmem:[%s294] ss:$2 sm:$0xff]
      %s321 = scalar_lea.vmem %s294, 16
      %v322 = vld [vmem:[%s321] ss:$2 sm:$0xff]
      %s323 = scalar_lea.vmem %s294, 1
      %v324 = vld [vmem:[%s323] ss:$2 sm:$0xff]
      %s325 = scalar_lea.vmem %s294, 17
      %v326 = vld [vmem:[%s325] ss:$2 sm:$0xff]
      %v327 = vld [vmem:[%s302] sm:$0x1]
      %vm330 = vcmask 1040384
      %v331 = vrot.slane %v324, 7
      %v332 = vrot.slane %v326, 7
      %v333 = vsel %vm330, %v331, %v332
      %v335 = vsel %vm330, %v327, %v331
      %v336 = vld [vmem:[%s309] sm:$0x1]
      %vm339 = vcmask 1046528
      %v340 = vrot.slane %v320, 1
      %v341 = vrot.slane %v322, 1
      %v342 = vsel %vm339, %v340, %v341
      %v345 = vlaneseq
      %v346 = vshrl.u32 %v345, 7
      %v347 = vsub.s32 0, %v346
      %v348 = vrot.slane %v336, %v347
      %v350 = vsel %vm339, %v341, %v348
      %v351 = vld [vmem:[%s3] sm:$0x7]
      %353 = vset.pattern.permute.xlu0 0
      %354 = vperm.xlu0 %353, %v335
      %v355 = vpop.permute.xlu0 %354
      %357 = vset.pattern.permute.xlu0 0
      %358 = vperm.xlu0 %357, %v333
      %v359 = vpop.permute.xlu0 %358
      %v361 = vlaneseq
      %v362 = vshrl.u32 %v361, 7
      %v363 = vsub.s32 0, %v362
      %v364 = vrot.slane %v351, %v363
      %v365 = vmul.f32 %v355, %v364
      %v366 = vmul.f32 %v359, %v364
      %367 = vset.pattern.permute.xlu0 0
      %368 = vperm.xlu0 %367, %v320
      %v369 = vpop.permute.xlu0 %368
      %371 = vset.pattern.permute.xlu0 0
      %372 = vperm.xlu0 %371, %v322
      %v373 = vpop.permute.xlu0 %372
      %v375 = vlaneseq
      %v376 = vshrl.u32 %v375, 7
      %v377 = vsub.s32 1, %v376
      %v378 = vrot.slane %v351, %v377
      %v379 = vmul.f32 %v369, %v378
      %v380 = vmul.f32 %v373, %v378
      %v381 = vadd.f32 %v365, %v379
      %v382 = vadd.f32 %v366, %v380
      %383 = vset.pattern.permute.xlu0 0
      %384 = vperm.xlu0 %383, %v324
      %v385 = vpop.permute.xlu0 %384
      %387 = vset.pattern.permute.xlu0 0
      %388 = vperm.xlu0 %387, %v326
      %v389 = vpop.permute.xlu0 %388
      %v391 = vlaneseq
      %v392 = vshrl.u32 %v391, 7
      %v393 = vsub.s32 2, %v392
      %v394 = vrot.slane %v351, %v393
      %v395 = vmul.f32 %v385, %v394
      %v396 = vmul.f32 %v389, %v394
      %v397 = vadd.f32 %v381, %v395
      %v398 = vadd.f32 %v382, %v396
      %v399 = vmul.f32 %v369, %v364
      %v400 = vmul.f32 %v373, %v364
      %v401 = vmul.f32 %v385, %v378
      %v402 = vmul.f32 %v389, %v378
      %v403 = vadd.f32 %v399, %v401
      %v404 = vadd.f32 %v400, %v402
      %405 = vset.pattern.permute.xlu0 0
      %406 = vperm.xlu0 %405, %v342
      %v407 = vpop.permute.xlu0 %406
      %410 = vset.pattern.permute.xlu0 0
      %411 = vperm.xlu0 %410, %v350
      %v412 = vpop.permute.xlu0 %411
      %v414 = vmul.f32 %v407, %v394
      %v415 = vmul.f32 %v412, %v394
      %v416 = vadd.f32 %v403, %v414
      %v417 = vadd.f32 %v404, %v415
      %v418 = vmax.f32 %v397, %v416
      %v419 = vmax.f32 %v398, %v417
      %v420 = vld [vmem:[%s4] sm:$0x1]
      %v422 = vlaneseq
      %v423 = vshrl.u32 %v422, 7
      %v424 = vsub.s32 0, %v423
      %v425 = vrot.slane %v420, %v424
      %v427 = vadd.f32 %v418, %v425
      %v428 = vadd.f32 %v419, %v425
      %v429 = vmax.f32 %v427, 0.0
      %v430 = vmax.f32 %v428, 0.0
      %s431 = smul.u32 %s21, 16
      %v432 = vlaneseq
      %v433 = vshrl.u32 %v432, 7
      %v434 = vadd.s32 %v433, 8
      %v435 = vstv %s431
      %v436 = vadd.s32 %v435, %v433
      %v437 = vadd.s32 %v435, %v434
      %vm438 = vcmp.lt.s32.totalorder %v436, 31
      %vm439 = vcmp.lt.s32.totalorder %v437, 31
      %v440 = vsel %vm438, %v429, 0.0
      %v441 = vsel %vm439, %v430, 0.0
      %vm442 = vcmask 261120
      %443 = vst.msk [vmem:[%s318] sm:$0xff] %vm442, %v440
      %444 = vst.msk [vmem:[%s318 + $0x8] sm:$0xff] %vm442, %v441
      %s445 = smul.u32 2, %s21
      %p446 = scmp.lt.s32.totalorder %s20, 1
      %s447 = scalar_select %p446, %s20, 1
      %p448 = scmp.lt.s32.totalorder %s445, 3
      %s449 = scalar_select %p448, %s445, 3
      %s450 = smul.addr %s447, 4
      %s451 = sadd.s32 %s449, %s450
      %s452 = smul.addr %s451, 8
      %s453 = scalar_lea.vmem %s5, %s452
      // Predicated region
      $region41: #{cnn_forward.4} parent=39 // pred_check
        %p454 = pneg %p174
      $region42: #{cnn_forward.4} parent=39 // pred_check_branch
        %456 = sbr.rel (%p454) target = $region44
      $region43: #{cnn_forward.4} parent=39 // pred_region
        %s457 = smul.u32 2, %s21
      $region44: #{cnn_forward.4} parent=39 // pred_fallthru
        _
    $region40: #{cnn_forward.4} parent=5 // pred_fallthru
      _
    %p458 = scmp.le.s32.totalorder 2, %s11
    // Predicated region
    $region45: #{cnn_forward.4} parent=5 // pred_check
      %p459 = pneg %p458
    $region46: #{cnn_forward.4} parent=5 // pred_check_branch
      %461 = sbr.rel (%p459) target = $region48
    $region47: #{cnn_forward.4} parent=5 // pred_region
      %s462 = ssub.s32 %s11, 2
      // Predicated region
      $region49: #{cnn_forward.4} parent=47 // pred_check
        %p463 = pneg %p180
      $region50: #{cnn_forward.4} parent=47 // pred_check_branch
        %465 = sbr.rel (%p463) target = $region52
      $region51: #{cnn_forward.4} parent=47 // pred_region
        %s466 = smul.u32 2, %s23
        %p467 = scmp.lt.s32.totalorder %s22, 1
        %s468 = scalar_select %p467, %s22, 1
        %p469 = scmp.lt.s32.totalorder %s466, 3
        %s470 = scalar_select %p469, %s466, 3
        %s471 = smul.addr %s468, 4
        %s472 = sadd.s32 %s470, %s471
        %s473 = smul.addr %s472, 8
        %s474 = scalar_lea.vmem %s5, %s473
      $region52: #{cnn_forward.4} parent=47 // pred_fallthru
        _
    $region48: #{cnn_forward.4} parent=5 // pred_fallthru
      _
  $region6: #{cnn_forward.4} parent=0 // loop_footer
    %s15 = sadd.s32 1, %s11
  $region7: #{cnn_forward.4} parent=0 // loop_footer_branch
    %10 = sbr.rel target = $region3
  $region8: #{cnn_forward.4} parent=0 // loop_exit
    _

// kernel: cnn_forward.6
$region0: #{cnn_forward.6}
  #allocation0 [shape = 'u32[]', space=smem, size = 0x4, offset = 0x4, fixed_abs, tag = 'smem constant byte address 0x4 - core index']
  #allocation1 [shape = 'u32[144,128]{1,0:T(1,128)}', space=vmem, size = 0x12000, scoped, tag = 'internal scratch']
  %s0 = inlined_call_operand.vmem [shape: f32[2,16,64], index: 0, kind: input, shape index: {}]
  %s1 = inlined_call_operand.vmem [shape: f32[2,1,1,64], index: 1, kind: input, shape index: {}, may-alias: {1,2}]
  %s2 = inlined_call_operand.vmem [shape: f32[2,1,1,64], index: 2, kind: input, shape index: {}, may-alias: {1,2}]
  %s3 = inlined_call_operand.vmem [shape: f32[192,128], index: 3, kind: input, shape index: {}]
  %s4 = inlined_call_operand.vmem [shape: f32[1,128], index: 4, kind: input, shape index: {}]
  %s5 = inlined_call_operand.vmem [shape: f32[2,8,128], index: 5, kind: output, shape index: {}]
  %s6 = sld [smem:[#allocation0]]
  $region53: #{cnn_forward.6} parent=0
    _
  %s8 = ssub.s32 1, %s6
  %s9 = scalar_select 0, %s8, %s6
  loop: start=0, step=1, limit=4
  $region2: #{cnn_forward.6} parent=0 // loop_pre_header
    _
  $region3: #{cnn_forward.6} parent=0 // loop_header
    %s11 = sphi 0, %s15
    %p12 = scmp.ge.s32.totalorder %s11, 4
    %s18 = sphi 0, %s30
    %s19 = sphi 0, %s26
    %s20 = sphi 0, %s18
    %s21 = sphi 0, %s19
    %s22 = sphi 0, %s20
    %s23 = sphi 0, %s21
    %s35 = sphi 0, %s37
    %s38 = sphi 0, %s35
    %s39 = sphi 0, %s38
    %s55 = sphi 0, %s39
    %s63 = sphi 0, %s65
    %s66 = sphi 0, %s63
    %s67 = sphi 0, %s66
    %s83 = sphi 0, %s67
    %s91 = sphi 0, %s93
    %s94 = sphi 0, %s91
    %s95 = sphi 0, %s94
    %s111 = sphi 0, %s95
    %s115 = sphi 0, %s115
    %s117 = sphi 0, %s115
    %s118 = sphi 0, %s117
    %s132 = sphi 0, %s118
    %s136 = sphi 0, %s136
    %s138 = sphi 0, %s136
    %s139 = sphi 0, %s138
    %s153 = sphi 0, %s139
    %s161 = sphi 0, %s163
    %s164 = sphi 0, %s161
    %s165 = sphi 0, %s164
    %s181 = sphi 0, %s165
  $region4: #{cnn_forward.6} parent=0 // loop_header_branch
    %14 = sbr.rel (%p12) target = $region8
  $region5: #{cnn_forward.6} parent=0 // loop_body
    %s16 = ssub.s32 %s11, 1
    %s17 = ssub.s32 %s11, 2
    %s24 = sadd.s32 1, %s19
    %p25 = scmp.ge.s32.totalorder %s24, 1
    %s26 = scalar_select %p25, 0, %s24
    %s27 = sadd.s32 1, %s18
    %s28 = scalar_select %p25, %s27, %s18
    %p29 = scmp.ge.s32.totalorder %s28, 2
    %s30 = scalar_select %p29, 0, %s28
    %s31 = ssub.s32 %s18, %s30
    %s32 = ssub.s32 %s19, %s26
    %s33 = sor.u32 %s31, %s32
    %p34 = scmp.eq.s32.totalorder %s33, 0
    %s36 = sadd.s32 %s35, 1
    %s37 = scalar_select %p34, %s35, %s36
    %p40 = pneg %p34
    %p41 = scmp.eq.s32.totalorder %s11, 1
    %p42 = por %p40, %p41
    %p43 = scmp.ne.s32.totalorder %s35, %s38
    %p44 = scmp.eq.s32.totalorder %s11, 0
    %p45 = por %p43, %p44
    %p46 = scmp.ne.s32.totalorder %s35, %s38
    %p47 = scmp.eq.s32.totalorder %s16, 1
    %p48 = por %p46, %p47
    %p49 = scmp.ne.s32.totalorder %s38, %s39
    %p50 = scmp.eq.s32.totalorder %s16, 0
    %p51 = por %p49, %p50
    %p52 = scmp.ne.s32.totalorder %s38, %s39
    %p53 = scmp.eq.s32.totalorder %s17, 1
    %p54 = por %p52, %p53
    %p56 = scmp.ne.s32.totalorder %s39, %s55
    %p57 = scmp.eq.s32.totalorder %s17, 0
    %p58 = por %p56, %p57
    %s59 = ssub.s32 %s18, %s30
    %s60 = ssub.s32 %s19, %s26
    %s61 = sor.u32 %s59, %s60
    %p62 = scmp.eq.s32.totalorder %s61, 0
    %s64 = sadd.s32 %s63, 1
    %s65 = scalar_select %p62, %s63, %s64
    %p68 = pneg %p62
    %p69 = scmp.eq.s32.totalorder %s11, 1
    %p70 = por %p68, %p69
    %p71 = scmp.ne.s32.totalorder %s63, %s66
    %p72 = scmp.eq.s32.totalorder %s11, 0
    %p73 = por %p71, %p72
    %p74 = scmp.ne.s32.totalorder %s63, %s66
    %p75 = scmp.eq.s32.totalorder %s16, 1
    %p76 = por %p74, %p75
    %p77 = scmp.ne.s32.totalorder %s66, %s67
    %p78 = scmp.eq.s32.totalorder %s16, 0
    %p79 = por %p77, %p78
    %p80 = scmp.ne.s32.totalorder %s66, %s67
    %p81 = scmp.eq.s32.totalorder %s17, 1
    %p82 = por %p80, %p81
    %p84 = scmp.ne.s32.totalorder %s67, %s83
    %p85 = scmp.eq.s32.totalorder %s17, 0
    %p86 = por %p84, %p85
    %s87 = ssub.s32 %s18, %s30
    %s88 = ssub.s32 %s19, %s26
    %s89 = sor.u32 %s87, %s88
    %p90 = scmp.eq.s32.totalorder %s89, 0
    %s92 = sadd.s32 %s91, 1
    %s93 = scalar_select %p90, %s91, %s92
    %p96 = pneg %p90
    %p97 = scmp.eq.s32.totalorder %s11, 1
    %p98 = por %p96, %p97
    %p99 = scmp.ne.s32.totalorder %s91, %s94
    %p100 = scmp.eq.s32.totalorder %s11, 0
    %p101 = por %p99, %p100
    %p102 = scmp.ne.s32.totalorder %s91, %s94
    %p103 = scmp.eq.s32.totalorder %s16, 1
    %p104 = por %p102, %p103
    %p105 = scmp.ne.s32.totalorder %s94, %s95
    %p106 = scmp.eq.s32.totalorder %s16, 0
    %p107 = por %p105, %p106
    %p108 = scmp.ne.s32.totalorder %s94, %s95
    %p109 = scmp.eq.s32.totalorder %s17, 1
    %p110 = por %p108, %p109
    %p112 = scmp.ne.s32.totalorder %s95, %s111
    %p113 = scmp.eq.s32.totalorder %s17, 0
    %p114 = por %p112, %p113
    %s116 = sadd.s32 %s115, 1
    %p119 = scmp.eq.s32.totalorder %s11, 1
    %p120 = scmp.ne.s32.totalorder %s115, %s117
    %p121 = scmp.eq.s32.totalorder %s11, 0
    %p122 = por %p120, %p121
    %p123 = scmp.ne.s32.totalorder %s115, %s117
    %p124 = scmp.eq.s32.totalorder %s16, 1
    %p125 = por %p123, %p124
    %p126 = scmp.ne.s32.totalorder %s117, %s118
    %p127 = scmp.eq.s32.totalorder %s16, 0
    %p128 = por %p126, %p127
    %p129 = scmp.ne.s32.totalorder %s117, %s118
    %p130 = scmp.eq.s32.totalorder %s17, 1
    %p131 = por %p129, %p130
    %p133 = scmp.ne.s32.totalorder %s118, %s132
    %p134 = scmp.eq.s32.totalorder %s17, 0
    %p135 = por %p133, %p134
    %s137 = sadd.s32 %s136, 1
    %p140 = scmp.eq.s32.totalorder %s11, 1
    %p141 = scmp.ne.s32.totalorder %s136, %s138
    %p142 = scmp.eq.s32.totalorder %s11, 0
    %p143 = por %p141, %p142
    %p144 = scmp.ne.s32.totalorder %s136, %s138
    %p145 = scmp.eq.s32.totalorder %s16, 1
    %p146 = por %p144, %p145
    %p147 = scmp.ne.s32.totalorder %s138, %s139
    %p148 = scmp.eq.s32.totalorder %s16, 0
    %p149 = por %p147, %p148
    %p150 = scmp.ne.s32.totalorder %s138, %s139
    %p151 = scmp.eq.s32.totalorder %s17, 1
    %p152 = por %p150, %p151
    %p154 = scmp.ne.s32.totalorder %s139, %s153
    %p155 = scmp.eq.s32.totalorder %s17, 0
    %p156 = por %p154, %p155
    %s157 = ssub.s32 %s18, %s30
    %s158 = ssub.s32 %s19, %s26
    %s159 = sor.u32 %s157, %s158
    %p160 = scmp.eq.s32.totalorder %s159, 0
    %s162 = sadd.s32 %s161, 1
    %s163 = scalar_select %p160, %s161, %s162
    %p166 = pneg %p160
    %p167 = scmp.eq.s32.totalorder %s11, 1
    %p168 = por %p166, %p167
    %p169 = scmp.ne.s32.totalorder %s161, %s164
    %p170 = scmp.eq.s32.totalorder %s11, 0
    %p171 = por %p169, %p170
    %p172 = scmp.ne.s32.totalorder %s161, %s164
    %p173 = scmp.eq.s32.totalorder %s16, 1
    %p174 = por %p172, %p173
    %p175 = scmp.ne.s32.totalorder %s164, %s165
    %p176 = scmp.eq.s32.totalorder %s16, 0
    %p177 = por %p175, %p176
    %p178 = scmp.ne.s32.totalorder %s164, %s165
    %p179 = scmp.eq.s32.totalorder %s17, 1
    %p180 = por %p178, %p179
    %p182 = scmp.ne.s32.totalorder %s165, %s181
    %p183 = scmp.eq.s32.totalorder %s17, 0
    %p184 = por %p182, %p183
    %p185 = scmp.le.s32.totalorder 1, %s11
    %p186 = scmp.lt.s32.totalorder %s11, 3
    %p187 = pnand %p185, %p186
    %p188 = pneg %p187
    // Predicated region
    $region9: #{cnn_forward.6} parent=5 // pred_check
      _
    $region10: #{cnn_forward.6} parent=5 // pred_check_branch
      %190 = sbr.rel (%p187) target = $region12
    $region11: #{cnn_forward.6} parent=5 // pred_region
      %s191 = ssub.s32 %s11, 1
      // Predicated region
      $region13: #{cnn_forward.6} parent=11 // pred_check
        %p192 = pneg %p128
      $region14: #{cnn_forward.6} parent=11 // pred_check_branch
        %194 = sbr.rel (%p192) target = $region16
      $region15: #{cnn_forward.6} parent=11 // pred_region
        _
      $region16: #{cnn_forward.6} parent=11 // pred_fallthru
        _
      // Predicated region
      $region17: #{cnn_forward.6} parent=11 // pred_check
        %p195 = pneg %p149
      $region18: #{cnn_forward.6} parent=11 // pred_check_branch
        %197 = sbr.rel (%p195) target = $region20
      $region19: #{cnn_forward.6} parent=11 // pred_region
        _
      $region20: #{cnn_forward.6} parent=11 // pred_fallthru
        _
    $region12: #{cnn_forward.6} parent=5 // pred_fallthru
      _
    %p198 = scmp.lt.s32.totalorder %s11, 2
    // Predicated region
    $region21: #{cnn_forward.6} parent=5 // pred_check
      %p199 = pneg %p198
    $region22: #{cnn_forward.6} parent=5 // pred_check_branch
      %201 = sbr.rel (%p199) target = $region24
    $region23: #{cnn_forward.6} parent=5 // pred_region
      // Predicated region
      $region25: #{cnn_forward.6} parent=23 // pred_check
        %p202 = pneg %p45
      $region26: #{cnn_forward.6} parent=23 // pred_check_branch
        %204 = sbr.rel (%p202) target = $region28
      $region27: #{cnn_forward.6} parent=23 // pred_region
        %s205 = smul.u32 2, %s19
        %p206 = scmp.lt.s32.totalorder %s18, 1
        %s207 = scalar_select %p206, %s18, 1
        %p208 = scmp.lt.s32.totalorder %s205, 1
        %s209 = scalar_select %p208, %s205, 1
        %s210 = smul.addr %s207, 2
        %s211 = sadd.s32 %s209, %s210
        %s212 = smul.addr %s211, 8
        %s213 = scalar_lea.vmem %s0, %s212
        %s214 = smul.u32 2, %s19
      $region28: #{cnn_forward.6} parent=23 // pred_fallthru
        _
      // Predicated region
      $region29: #{cnn_forward.6} parent=23 // pred_check
        %p215 = pneg %p73
      $region30: #{cnn_forward.6} parent=23 // pred_check_branch
        %217 = sbr.rel (%p215) target = $region32
      $region31: #{cnn_forward.6} parent=23 // pred_region
        %p218 = scmp.lt.s32.totalorder %s18, 1
        %s219 = scalar_select %p218, %s18, 1
        %p220 = scmp.lt.s32.totalorder %s19, 0
        %s221 = scalar_select %p220, %s19, 0
        %s222 = sadd.s32 %s221, %s219
        %s223 = scalar_lea.vmem %s1, %s222
      $region32: #{cnn_forward.6} parent=23 // pred_fallthru
        _
      // Predicated region
      $region33: #{cnn_forward.6} parent=23 // pred_check
        %p224 = pneg %p101
      $region34: #{cnn_forward.6} parent=23 // pred_check_branch
        %226 = sbr.rel (%p224) target = $region36
      $region35: #{cnn_forward.6} parent=23 // pred_region
        %p227 = scmp.lt.s32.totalorder %s18, 1
        %s228 = scalar_select %p227, %s18, 1
        %p229 = scmp.lt.s32.totalorder %s19, 0
        %s230 = scalar_select %p229, %s19, 0
        %s231 = sadd.s32 %s230, %s228
        %s232 = scalar_lea.vmem %s2, %s231
      $region36: #{cnn_forward.6} parent=23 // pred_fallthru
        _
    $region24: #{cnn_forward.6} parent=5 // pred_fallthru
      _
    %p233 = scmp.le.s32.totalorder 1, %s11
    %p234 = scmp.lt.s32.totalorder %s11, 3
    %p235 = pnand %p233, %p234
    %p236 = pneg %p235
    // Predicated region
    $region37: #{cnn_forward.6} parent=5 // pred_check
      _
    $region38: #{cnn_forward.6} parent=5 // pred_check_branch
      %238 = sbr.rel (%p235) target = $region40
    $region39: #{cnn_forward.6} parent=5 // pred_region
      %s239 = ssub.s32 %s11, 1
      %s240 = smul.u32 2, %s21
      %p241 = scmp.lt.s32.totalorder %s20, 1
      %s242 = scalar_select %p241, %s20, 1
      %p243 = scmp.lt.s32.totalorder %s240, 1
      %s244 = scalar_select %p243, %s240, 1
      %s245 = smul.addr %s242, 2
      %s246 = sadd.s32 %s244, %s245
      %s247 = smul.addr %s246, 8
      %s248 = scalar_lea.vmem %s0, %s247
      %p249 = pneg %p51
      %p250 = pneg %p48
      %p251 = scmp.lt.s32.totalorder %s20, 1
      %s252 = scalar_select %p251, %s20, 1
      %p253 = scmp.lt.s32.totalorder %s21, 0
      %s254 = scalar_select %p253, %s21, 0
      %s255 = sadd.s32 %s254, %s252
      %s256 = scalar_lea.vmem %s1, %s255
      %p257 = pneg %p79
      %p258 = pneg %p76
      %p259 = scmp.lt.s32.totalorder %s20, 1
      %s260 = scalar_select %p259, %s20, 1
      %p261 = scmp.lt.s32.totalorder %s21, 0
      %s262 = scalar_select %p261, %s21, 0
      %s263 = sadd.s32 %s262, %s260
      %s264 = scalar_lea.vmem %s2, %s263
      %p265 = pneg %p107
      %p266 = pneg %p104
      %p267 = pneg %p128
      %p268 = pneg %p125
      %p269 = pneg %p149
      %p270 = pneg %p146
      %p271 = pneg %p177
      %p272 = pneg %p174
      %p273 = scmp.lt.s32.totalorder %s20, 1
      %s274 = scalar_select %p273, %s20, 1
      %p275 = scmp.lt.s32.totalorder %s21, 0
      %s276 = scalar_select %p275, %s21, 0
      %s277 = sadd.s32 %s276, %s274
      %s278 = smul.addr %s277, 8
      %s279 = scalar_lea.vmem %s5, %s278
      %s280 = smul.u32 2, %s21
      %p281 = scmp.lt.s32.totalorder %s20, 1
      %s282 = scalar_select %p281, %s20, 1
      %p283 = scmp.lt.s32.totalorder %s280, 1
      %s284 = scalar_select %p283, %s280, 1
      %s285 = smul.addr %s282, 2
      %s286 = sadd.s32 %s284, %s285
      %s287 = smul.addr %s286, 8
      %s288 = scalar_lea.vmem %s0, %s287
      %s289 = smul.u32 2, %s21
      %p290 = scmp.lt.s32.totalorder %s20, 1
      %s291 = scalar_select %p290, %s20, 1
      %p292 = scmp.lt.s32.totalorder %s21, 0
      %s293 = scalar_select %p292, %s21, 0
      %s294 = sadd.s32 %s293, %s291
      %s295 = scalar_lea.vmem %s1, %s294
      %p296 = scmp.lt.s32.totalorder %s20, 1
      %s297 = scalar_select %p296, %s20, 1
      %p298 = scmp.lt.s32.totalorder %s21, 0
      %s299 = scalar_select %p298, %s21, 0
      %s300 = sadd.s32 %s299, %s297
      %s301 = scalar_lea.vmem %s2, %s300
      %p302 = scmp.lt.s32.totalorder %s20, 1
      %s303 = scalar_select %p302, %s20, 1
      %p304 = scmp.lt.s32.totalorder %s21, 0
      %s305 = scalar_select %p304, %s21, 0
      %s306 = sadd.s32 %s305, %s303
      %s307 = smul.addr %s306, 8
      %s308 = scalar_lea.vmem %s5, %s307
      %v309 = vld [vmem:[%s288] ss:$2 sm:$0xff]
      %s310 = scalar_lea.vmem %s288, 1
      %v311 = vld [vmem:[%s310] ss:$2 sm:$0xff]
      %v312 = vld [vmem:[%s295] sm:$0x1]
      %v314 = vrot.slane %v311, 7
      %vm316 = vcmask 1040384
      %v317 = vsel %vm316, %v312, %v314
      %v318 = vld [vmem:[%s301] sm:$0x1]
      %v320 = vrot.slane %v309, 1
      %v323 = vlaneseq
      %v324 = vshrl.u32 %v323, 7
      %v325 = vsub.s32 0, %v324
      %v326 = vrot.slane %v318, %v325
      %vm328 = vcmask 1046528
      %v329 = vsel %vm328, %v320, %v326
      %v330 = vld [vmem:[%s3] sm:$0xff]
      %v331 = vld [vmem:[%s3 + $0x8] sm:$0xff]
      %v332 = vld [vmem:[%s3 + $0x10] sm:$0xff]
      %v333 = vld [vmem:[%s3 + $0x18] sm:$0xff]
      %v334 = vld [vmem:[%s3 + $0x20] sm:$0xff]
      %v335 = vld [vmem:[%s3 + $0x28] sm:$0xff]
      %v336 = vld [vmem:[%s3 + $0x30] sm:$0xff]
      %v337 = vld [vmem:[%s3 + $0x38] sm:$0xff]
      %v338 = vld [vmem:[%s3 + $0x40] sm:$0xff]
      %v339 = vld [vmem:[%s3 + $0x48] sm:$0xff]
      %v340 = vld [vmem:[%s3 + $0x50] sm:$0xff]
      %v341 = vld [vmem:[%s3 + $0x58] sm:$0xff]
      %v342 = vld [vmem:[%s3 + $0x60] sm:$0xff]
      %v343 = vld [vmem:[%s3 + $0x68] sm:$0xff]
      %v344 = vld [vmem:[%s3 + $0x70] sm:$0xff]
      %v345 = vld [vmem:[%s3 + $0x78] sm:$0xff]
      %v346 = vld [vmem:[%s3 + $0x80] sm:$0xff]
      %v347 = vld [vmem:[%s3 + $0x88] sm:$0xff]
      %v348 = vld [vmem:[%s3 + $0x90] sm:$0xff]
      %v349 = vld [vmem:[%s3 + $0x98] sm:$0xff]
      %v350 = vld [vmem:[%s3 + $0xa0] sm:$0xff]
      %v351 = vld [vmem:[%s3 + $0xa8] sm:$0xff]
      %v352 = vld [vmem:[%s3 + $0xb0] sm:$0xff]
      %v353 = vld [vmem:[%s3 + $0xb8] sm:$0xff]
      %vm354 = vcmask 523264
      %v355 = vsel %vm354, %v309, 0
      %357 = vmatprep.subr.mxu0 0.0
      %358 = vmatpush1.msra.mxu0 %v338
      %359 = vmatprep.subr.mxu0 0.0
      %360 = vmatpush1.msra.mxu0 %v339
      %361 = vmatprep.subr.mxu0 0.0
      %362 = vmatpush1.msra.mxu0 %v340
      %363 = vmatprep.subr.mxu0 0.0
      %364 = vmatpush1.msra.mxu0 %v341
      %365 = vmatprep.subr.mxu0 0.0
      %366 = vmatpush1.msra.mxu0 %v342
      %367 = vmatprep.subr.mxu0 0.0
      %368 = vmatpush1.msra.mxu0 %v343
      %369 = vmatprep.subr.mxu0 0.0
      %370 = vmatpush1.msra.mxu0 %v344
      %371 = vmatprep.subr.mxu0 0.0
      %372 = vmatpush1.msra.mxu0 %v345
      %373 = vmatprep.subr.mxu0 0.0
      %374 = vmatpush1.msra.mxu0 0.0
      %375 = vmatprep.subr.mxu0 0.0
      %376 = vmatpush1.msra.mxu0 0.0
      %377 = vmatprep.subr.mxu0 0.0
      %378 = vmatpush1.msra.mxu0 0.0
      %379 = vmatprep.subr.mxu0 0.0
      %380 = vmatpush1.msra.mxu0 0.0
      %381 = vmatprep.subr.mxu0 0.0
      %382 = vmatpush1.msra.mxu0 0.0
      %383 = vmatprep.subr.mxu0 0.0
      %384 = vmatpush1.msra.mxu0 0.0
      %385 = vmatprep.subr.mxu0 0.0
      %386 = vmatpush1.msra.mxu0 0.0
      %387 = vmatprep.subr.mxu0 0.0
      %388 = vmatpush1.msra.mxu0 0.0
      %389 = vmatprep.subr.mxu0 0.0
      %390 = vmatpush1.msra.mxu0 0.0
      %391 = vmatprep.subr.mxu0 0.0
      %392 = vmatpush1.msra.mxu0 0.0
      %393 = vmatprep.subr.mxu0 0.0
      %394 = vmatpush1.msra.mxu0 0.0
      %395 = vmatprep.subr.mxu0 0.0
      %396 = vmatpush1.msra.mxu0 0.0
      %397 = vmatprep.subr.mxu0 0.0
      %398 = vmatpush1.msra.mxu0 0.0
      %399 = vmatprep.subr.mxu0 0.0
      %400 = vmatpush1.msra.mxu0 0.0
      %401 = vmatprep.subr.mxu0 0.0
      %402 = vmatpush1.msra.mxu0 0.0
      %403 = vmatprep.subr.mxu0 0.0
      %404 = vmatpush1.msra.mxu0 0.0
      %405 = vmatprep.subr.mxu0 0.0
      %406 = vmatpush1.msra.mxu0 0.0
      %407 = vmatprep.subr.mxu0 0.0
      %408 = vmatpush1.msra.mxu0 0.0
      %409 = vmatprep.subr.mxu0 0.0
      %410 = vmatpush1.msra.mxu0 0.0
      %411 = vmatprep.subr.mxu0 0.0
      %412 = vmatpush1.msra.mxu0 0.0
      %413 = vmatprep.subr.mxu0 0.0
      %414 = vmatpush1.msra.mxu0 0.0
      %415 = vmatprep.subr.mxu0 0.0
      %416 = vmatpush1.msra.mxu0 0.0
      %417 = vmatprep.subr.mxu0 0.0
      %418 = vmatpush1.msra.mxu0 0.0
      %419 = vmatprep.subr.mxu0 0.0
      %420 = vmatpush1.msra.mxu0 0.0
      %421 = vmatprep.mubr.f32.mxu0 0.0
      %422 = vmatmul.mubr.f32.gmra.mrb[0].mxu0 %v355
      %v423 = vpop.f32.mrb[0].mxu0
      %v424 = vadd.f32 0.0, %v423
      %v425 = vpop.f32.mrb[0].mxu0
      %426 = vdwg.mxu0
      %v428 = vsel %vm354, %v317, 0
      %430 = vmatprep.subr.mxu0 0.0
      %431 = vmatpush1.msra.mxu0 %v330
      %432 = vmatprep.subr.mxu0 0.0
      %433 = vmatpush1.msra.mxu0 %v331
      %434 = vmatprep.subr.mxu0 0.0
      %435 = vmatpush1.msra.mxu0 %v332
      %436 = vmatprep.subr.mxu0 0.0
      %437 = vmatpush1.msra.mxu0 %v333
      %438 = vmatprep.subr.mxu0 0.0
      %439 = vmatpush1.msra.mxu0 %v334
      %440 = vmatprep.subr.mxu0 0.0
      %441 = vmatpush1.msra.mxu0 %v335
      %442 = vmatprep.subr.mxu0 0.0
      %443 = vmatpush1.msra.mxu0 %v336
      %444 = vmatprep.subr.mxu0 0.0
      %445 = vmatpush1.msra.mxu0 %v337
      %446 = vmatprep.subr.mxu0 0.0
      %447 = vmatpush1.msra.mxu0 0.0
      %448 = vmatprep.subr.mxu0 0.0
      %449 = vmatpush1.msra.mxu0 0.0
      %450 = vmatprep.subr.mxu0 0.0
      %451 = vmatpush1.msra.mxu0 0.0
      %452 = vmatprep.subr.mxu0 0.0
      %453 = vmatpush1.msra.mxu0 0.0
      %454 = vmatprep.subr.mxu0 0.0
      %455 = vmatpush1.msra.mxu0 0.0
      %456 = vmatprep.subr.mxu0 0.0
      %457 = vmatpush1.msra.mxu0 0.0
      %458 = vmatprep.subr.mxu0 0.0
      %459 = vmatpush1.msra.mxu0 0.0
      %460 = vmatprep.subr.mxu0 0.0
      %461 = vmatpush1.msra.mxu0 0.0
      %462 = vmatprep.subr.mxu0 0.0
      %463 = vmatpush1.msra.mxu0 0.0
      %464 = vmatprep.subr.mxu0 0.0
      %465 = vmatpush1.msra.mxu0 0.0
      %466 = vmatprep.subr.mxu0 0.0
      %467 = vmatpush1.msra.mxu0 0.0
      %468 = vmatprep.subr.mxu0 0.0
      %469 = vmatpush1.msra.mxu0 0.0
      %470 = vmatprep.subr.mxu0 0.0
      %471 = vmatpush1.msra.mxu0 0.0
      %472 = vmatprep.subr.mxu0 0.0
      %473 = vmatpush1.msra.mxu0 0.0
      %474 = vmatprep.subr.mxu0 0.0
      %475 = vmatpush1.msra.mxu0 0.0
      %476 = vmatprep.subr.mxu0 0.0
      %477 = vmatpush1.msra.mxu0 0.0
      %478 = vmatprep.subr.mxu0 0.0
      %479 = vmatpush1.msra.mxu0 0.0
      %480 = vmatprep.subr.mxu0 0.0
      %481 = vmatpush1.msra.mxu0 0.0
      %482 = vmatprep.subr.mxu0 0.0
      %483 = vmatpush1.msra.mxu0 0.0
      %484 = vmatprep.subr.mxu0 0.0
      %485 = vmatpush1.msra.mxu0 0.0
      %486 = vmatprep.subr.mxu0 0.0
      %487 = vmatpush1.msra.mxu0 0.0
      %488 = vmatprep.subr.mxu0 0.0
      %489 = vmatpush1.msra.mxu0 0.0
      %490 = vmatprep.subr.mxu0 0.0
      %491 = vmatpush1.msra.mxu0 0.0
      %492 = vmatprep.subr.mxu0 0.0
      %493 = vmatpush1.msra.mxu0 0.0
      %494 = vmatprep.mubr.f32.mxu0 0.0
      %495 = vmatmul.mubr.f32.gmra.mrb[0].mxu0 %v428
      %v496 = vpop.f32.mrb[0].mxu0
      %v497 = vadd.f32 %v424, %v496
      %v498 = vpop.f32.mrb[0].mxu0
      %499 = vdwg.mxu0
      %v500 = vsel %vm354, %v311, 0
      %502 = vmatprep.subr.mxu0 0.0
      %503 = vmatpush1.msra.mxu0 %v346
      %504 = vmatprep.subr.mxu0 0.0
      %505 = vmatpush1.msra.mxu0 %v347
      %506 = vmatprep.subr.mxu0 0.0
      %507 = vmatpush1.msra.mxu0 %v348
      %508 = vmatprep.subr.mxu0 0.0
      %509 = vmatpush1.msra.mxu0 %v349
      %510 = vmatprep.subr.mxu0 0.0
      %511 = vmatpush1.msra.mxu0 %v350
      %512 = vmatprep.subr.mxu0 0.0
      %513 = vmatpush1.msra.mxu0 %v351
      %514 = vmatprep.subr.mxu0 0.0
      %515 = vmatpush1.msra.mxu0 %v352
      %516 = vmatprep.subr.mxu0 0.0
      %517 = vmatpush1.msra.mxu0 %v353
      %518 = vmatprep.subr.mxu0 0.0
      %519 = vmatpush1.msra.mxu0 0.0
      %520 = vmatprep.subr.mxu0 0.0
      %521 = vmatpush1.msra.mxu0 0.0
      %522 = vmatprep.subr.mxu0 0.0
      %523 = vmatpush1.msra.mxu0 0.0
      %524 = vmatprep.subr.mxu0 0.0
      %525 = vmatpush1.msra.mxu0 0.0
      %526 = vmatprep.subr.mxu0 0.0
      %527 = vmatpush1.msra.mxu0 0.0
      %528 = vmatprep.subr.mxu0 0.0
      %529 = vmatpush1.msra.mxu0 0.0
      %530 = vmatprep.subr.mxu0 0.0
      %531 = vmatpush1.msra.mxu0 0.0
      %532 = vmatprep.subr.mxu0 0.0
      %533 = vmatpush1.msra.mxu0 0.0
      %534 = vmatprep.subr.mxu0 0.0
      %535 = vmatpush1.msra.mxu0 0.0
      %536 = vmatprep.subr.mxu0 0.0
      %537 = vmatpush1.msra.mxu0 0.0
      %538 = vmatprep.subr.mxu0 0.0
      %539 = vmatpush1.msra.mxu0 0.0
      %540 = vmatprep.subr.mxu0 0.0
      %541 = vmatpush1.msra.mxu0 0.0
      %542 = vmatprep.subr.mxu0 0.0
      %543 = vmatpush1.msra.mxu0 0.0
      %544 = vmatprep.subr.mxu0 0.0
      %545 = vmatpush1.msra.mxu0 0.0
      %546 = vmatprep.subr.mxu0 0.0
      %547 = vmatpush1.msra.mxu0 0.0
      %548 = vmatprep.subr.mxu0 0.0
      %549 = vmatpush1.msra.mxu0 0.0
      %550 = vmatprep.subr.mxu0 0.0
      %551 = vmatpush1.msra.mxu0 0.0
      %552 = vmatprep.subr.mxu0 0.0
      %553 = vmatpush1.msra.mxu0 0.0
      %554 = vmatprep.subr.mxu0 0.0
      %555 = vmatpush1.msra.mxu0 0.0
      %556 = vmatprep.subr.mxu0 0.0
      %557 = vmatpush1.msra.mxu0 0.0
      %558 = vmatprep.subr.mxu0 0.0
      %559 = vmatpush1.msra.mxu0 0.0
      %560 = vmatprep.subr.mxu0 0.0
      %561 = vmatpush1.msra.mxu0 0.0
      %562 = vmatprep.subr.mxu0 0.0
      %563 = vmatpush1.msra.mxu0 0.0
      %564 = vmatprep.subr.mxu0 0.0
      %565 = vmatpush1.msra.mxu0 0.0
      %566 = vmatprep.mubr.f32.mxu0 0.0
      %567 = vmatmul.mubr.f32.gmra.mrb[0].mxu0 %v500
      %v568 = vpop.f32.mrb[0].mxu0
      %v569 = vadd.f32 0.0, %v568
      %v570 = vpop.f32.mrb[0].mxu0
      %571 = vdwg.mxu0
      %v572 = vadd.f32 %v497, %v569
      %573 = vmatprep.subr.mxu0 0.0
      %574 = vmatpush1.msra.mxu0 %v338
      %575 = vmatprep.subr.mxu0 0.0
      %576 = vmatpush1.msra.mxu0 %v339
      %577 = vmatprep.subr.mxu0 0.0
      %578 = vmatpush1.msra.mxu0 %v340
      %579 = vmatprep.subr.mxu0 0.0
      %580 = vmatpush1.msra.mxu0 %v341
      %581 = vmatprep.subr.mxu0 0.0
      %582 = vmatpush1.msra.mxu0 %v342
      %583 = vmatprep.subr.mxu0 0.0
      %584 = vmatpush1.msra.mxu0 %v343
      %585 = vmatprep.subr.mxu0 0.0
      %586 = vmatpush1.msra.mxu0 %v344
      %587 = vmatprep.subr.mxu0 0.0
      %588 = vmatpush1.msra.mxu0 %v345
      %589 = vmatprep.subr.mxu0 0.0
      %590 = vmatpush1.msra.mxu0 0.0
      %591 = vmatprep.subr.mxu0 0.0
      %592 = vmatpush1.msra.mxu0 0.0
      %593 = vmatprep.subr.mxu0 0.0
      %594 = vmatpush1.msra.mxu0 0.0
      %595 = vmatprep.subr.mxu0 0.0
      %596 = vmatpush1.msra.mxu0 0.0
      %597 = vmatprep.subr.mxu0 0.0
      %598 = vmatpush1.msra.mxu0 0.0
      %599 = vmatprep.subr.mxu0 0.0
      %600 = vmatpush1.msra.mxu0 0.0
      %601 = vmatprep.subr.mxu0 0.0
      %602 = vmatpush1.msra.mxu0 0.0
      %603 = vmatprep.subr.mxu0 0.0
      %604 = vmatpush1.msra.mxu0 0.0
      %605 = vmatprep.subr.mxu0 0.0
      %606 = vmatpush1.msra.mxu0 0.0
      %607 = vmatprep.subr.mxu0 0.0
      %608 = vmatpush1.msra.mxu0 0.0
      %609 = vmatprep.subr.mxu0 0.0
      %610 = vmatpush1.msra.mxu0 0.0
      %611 = vmatprep.subr.mxu0 0.0
      %612 = vmatpush1.msra.mxu0 0.0
      %613 = vmatprep.subr.mxu0 0.0
      %614 = vmatpush1.msra.mxu0 0.0
      %615 = vmatprep.subr.mxu0 0.0
      %616 = vmatpush1.msra.mxu0 0.0
      %617 = vmatprep.subr.mxu0 0.0
      %618 = vmatpush1.msra.mxu0 0.0
      %619 = vmatprep.subr.mxu0 0.0
      %620 = vmatpush1.msra.mxu0 0.0
      %621 = vmatprep.subr.mxu0 0.0
      %622 = vmatpush1.msra.mxu0 0.0
      %623 = vmatprep.subr.mxu0 0.0
      %624 = vmatpush1.msra.mxu0 0.0
      %625 = vmatprep.subr.mxu0 0.0
      %626 = vmatpush1.msra.mxu0 0.0
      %627 = vmatprep.subr.mxu0 0.0
      %628 = vmatpush1.msra.mxu0 0.0
      %629 = vmatprep.subr.mxu0 0.0
      %630 = vmatpush1.msra.mxu0 0.0
      %631 = vmatprep.subr.mxu0 0.0
      %632 = vmatpush1.msra.mxu0 0.0
      %633 = vmatprep.subr.mxu0 0.0
      %634 = vmatpush1.msra.mxu0 0.0
      %635 = vmatprep.subr.mxu0 0.0
      %636 = vmatpush1.msra.mxu0 0.0
      %637 = vmatprep.mubr.f32.mxu0 0.0
      %638 = vmatmul.mubr.f32.gmra.mrb[0].mxu0 %v500
      %v639 = vpop.f32.mrb[0].mxu0
      %v640 = vadd.f32 0.0, %v639
      %v641 = vpop.f32.mrb[0].mxu0
      %642 = vdwg.mxu0
      %643 = vmatprep.subr.mxu0 0.0
      %644 = vmatpush1.msra.mxu0 %v330
      %645 = vmatprep.subr.mxu0 0.0
      %646 = vmatpush1.msra.mxu0 %v331
      %647 = vmatprep.subr.mxu0 0.0
      %648 = vmatpush1.msra.mxu0 %v332
      %649 = vmatprep.subr.mxu0 0.0
      %650 = vmatpush1.msra.mxu0 %v333
      %651 = vmatprep.subr.mxu0 0.0
      %652 = vmatpush1.msra.mxu0 %v334
      %653 = vmatprep.subr.mxu0 0.0
      %654 = vmatpush1.msra.mxu0 %v335
      %655 = vmatprep.subr.mxu0 0.0
      %656 = vmatpush1.msra.mxu0 %v336
      %657 = vmatprep.subr.mxu0 0.0
      %658 = vmatpush1.msra.mxu0 %v337
      %659 = vmatprep.subr.mxu0 0.0
      %660 = vmatpush1.msra.mxu0 0.0
      %661 = vmatprep.subr.mxu0 0.0
      %662 = vmatpush1.msra.mxu0 0.0
      %663 = vmatprep.subr.mxu0 0.0
      %664 = vmatpush1.msra.mxu0 0.0
      %665 = vmatprep.subr.mxu0 0.0
      %666 = vmatpush1.msra.mxu0 0.0
      %667 = vmatprep.subr.mxu0 0.0
      %668 = vmatpush1.msra.mxu0 0.0
      %669 = vmatprep.subr.mxu0 0.0
      %670 = vmatpush1.msra.mxu0 0.0
      %671 = vmatprep.subr.mxu0 0.0
      %672 = vmatpush1.msra.mxu0 0.0
      %673 = vmatprep.subr.mxu0 0.0
      %674 = vmatpush1.msra.mxu0 0.0
      %675 = vmatprep.subr.mxu0 0.0
      %676 = vmatpush1.msra.mxu0 0.0
      %677 = vmatprep.subr.mxu0 0.0
      %678 = vmatpush1.msra.mxu0 0.0
      %679 = vmatprep.subr.mxu0 0.0
      %680 = vmatpush1.msra.mxu0 0.0
      %681 = vmatprep.subr.mxu0 0.0
      %682 = vmatpush1.msra.mxu0 0.0
      %683 = vmatprep.subr.mxu0 0.0
      %684 = vmatpush1.msra.mxu0 0.0
      %685 = vmatprep.subr.mxu0 0.0
      %686 = vmatpush1.msra.mxu0 0.0
      %687 = vmatprep.subr.mxu0 0.0
      %688 = vmatpush1.msra.mxu0 0.0
      %689 = vmatprep.subr.mxu0 0.0
      %690 = vmatpush1.msra.mxu0 0.0
      %691 = vmatprep.subr.mxu0 0.0
      %692 = vmatpush1.msra.mxu0 0.0
      %693 = vmatprep.subr.mxu0 0.0
      %694 = vmatpush1.msra.mxu0 0.0
      %695 = vmatprep.subr.mxu0 0.0
      %696 = vmatpush1.msra.mxu0 0.0
      %697 = vmatprep.subr.mxu0 0.0
      %698 = vmatpush1.msra.mxu0 0.0
      %699 = vmatprep.subr.mxu0 0.0
      %700 = vmatpush1.msra.mxu0 0.0
      %701 = vmatprep.subr.mxu0 0.0
      %702 = vmatpush1.msra.mxu0 0.0
      %703 = vmatprep.subr.mxu0 0.0
      %704 = vmatpush1.msra.mxu0 0.0
      %705 = vmatprep.subr.mxu0 0.0
      %706 = vmatpush1.msra.mxu0 0.0
      %707 = vmatprep.mubr.f32.mxu0 0.0
      %708 = vmatmul.mubr.f32.gmra.mrb[0].mxu0 %v355
      %v709 = vpop.f32.mrb[0].mxu0
      %v710 = vadd.f32 %v640, %v709
      %v711 = vpop.f32.mrb[0].mxu0
      %712 = vdwg.mxu0
      %v714 = vsel %vm354, %v329, 0
      %716 = vmatprep.subr.mxu0 0.0
      %717 = vmatpush1.msra.mxu0 %v346
      %718 = vmatprep.subr.mxu0 0.0
      %719 = vmatpush1.msra.mxu0 %v347
      %720 = vmatprep.subr.mxu0 0.0
      %721 = vmatpush1.msra.mxu0 %v348
      %722 = vmatprep.subr.mxu0 0.0
      %723 = vmatpush1.msra.mxu0 %v349
      %724 = vmatprep.subr.mxu0 0.0
      %725 = vmatpush1.msra.mxu0 %v350
      %726 = vmatprep.subr.mxu0 0.0
      %727 = vmatpush1.msra.mxu0 %v351
      %728 = vmatprep.subr.mxu0 0.0
      %729 = vmatpush1.msra.mxu0 %v352
      %730 = vmatprep.subr.mxu0 0.0
      %731 = vmatpush1.msra.mxu0 %v353
      %732 = vmatprep.subr.mxu0 0.0
      %733 = vmatpush1.msra.mxu0 0.0
      %734 = vmatprep.subr.mxu0 0.0
      %735 = vmatpush1.msra.mxu0 0.0
      %736 = vmatprep.subr.mxu0 0.0
      %737 = vmatpush1.msra.mxu0 0.0
      %738 = vmatprep.subr.mxu0 0.0
      %739 = vmatpush1.msra.mxu0 0.0
      %740 = vmatprep.subr.mxu0 0.0
      %741 = vmatpush1.msra.mxu0 0.0
      %742 = vmatprep.subr.mxu0 0.0
      %743 = vmatpush1.msra.mxu0 0.0
      %744 = vmatprep.subr.mxu0 0.0
      %745 = vmatpush1.msra.mxu0 0.0
      %746 = vmatprep.subr.mxu0 0.0
      %747 = vmatpush1.msra.mxu0 0.0
      %748 = vmatprep.subr.mxu0 0.0
      %749 = vmatpush1.msra.mxu0 0.0
      %750 = vmatprep.subr.mxu0 0.0
      %751 = vmatpush1.msra.mxu0 0.0
      %752 = vmatprep.subr.mxu0 0.0
      %753 = vmatpush1.msra.mxu0 0.0
      %754 = vmatprep.subr.mxu0 0.0
      %755 = vmatpush1.msra.mxu0 0.0
      %756 = vmatprep.subr.mxu0 0.0
      %757 = vmatpush1.msra.mxu0 0.0
      %758 = vmatprep.subr.mxu0 0.0
      %759 = vmatpush1.msra.mxu0 0.0
      %760 = vmatprep.subr.mxu0 0.0
      %761 = vmatpush1.msra.mxu0 0.0
      %762 = vmatprep.subr.mxu0 0.0
      %763 = vmatpush1.msra.mxu0 0.0
      %764 = vmatprep.subr.mxu0 0.0
      %765 = vmatpush1.msra.mxu0 0.0
      %766 = vmatprep.subr.mxu0 0.0
      %767 = vmatpush1.msra.mxu0 0.0
      %768 = vmatprep.subr.mxu0 0.0
      %769 = vmatpush1.msra.mxu0 0.0
      %770 = vmatprep.subr.mxu0 0.0
      %771 = vmatpush1.msra.mxu0 0.0
      %772 = vmatprep.subr.mxu0 0.0
      %773 = vmatpush1.msra.mxu0 0.0
      %774 = vmatprep.subr.mxu0 0.0
      %775 = vmatpush1.msra.mxu0 0.0
      %776 = vmatprep.subr.mxu0 0.0
      %777 = vmatpush1.msra.mxu0 0.0
      %778 = vmatprep.subr.mxu0 0.0
      %779 = vmatpush1.msra.mxu0 0.0
      %780 = vmatprep.mubr.f32.mxu0 0.0
      %781 = vmatmul.mubr.f32.gmra.mrb[0].mxu0 %v714
      %v782 = vpop.f32.mrb[0].mxu0
      %v783 = vadd.f32 0.0, %v782
      %v784 = vpop.f32.mrb[0].mxu0
      %785 = vdwg.mxu0
      %v786 = vadd.f32 %v710, %v783
      %v787 = vmax.f32 %v572, %v786
      %v788 = vld [vmem:[%s4] sm:$0x1]
      %v790 = vlaneseq
      %v791 = vshrl.u32 %v790, 7
      %v792 = vsub.s32 0, %v791
      %v793 = vrot.slane %v788, %v792
      %v795 = vadd.f32 %v787, %v793
      %v796 = vmax.f32 %v795, 0.0
      %s797 = smul.u32 %s21, 8
      %v798 = vlaneseq
      %v799 = vshrl.u32 %v798, 7
      %v800 = vstv %s797
      %v801 = vadd.s32 %v800, %v799
      %vm802 = vcmp.lt.s32.totalorder %v801, 7
      %v803 = vsel %vm802, %v796, 0.0
      %804 = vst [vmem:[%s308] sm:$0xff] %v803
      %p805 = scmp.lt.s32.totalorder %s20, 1
      %s806 = scalar_select %p805, %s20, 1
      %p807 = scmp.lt.s32.totalorder %s21, 0
      %s808 = scalar_select %p807, %s21, 0
      %s809 = sadd.s32 %s808, %s806
      %s810 = smul.addr %s809, 8
      %s811 = scalar_lea.vmem %s5, %s810
      // Predicated region
      $region41: #{cnn_forward.6} parent=39 // pred_check
        %p812 = pneg %p174
      $region42: #{cnn_forward.6} parent=39 // pred_check_branch
        %814 = sbr.rel (%p812) target = $region44
      $region43: #{cnn_forward.6} parent=39 // pred_region
        _
      $region44: #{cnn_forward.6} parent=39 // pred_fallthru
        _
    $region40: #{cnn_forward.6} parent=5 // pred_fallthru
      _
    %p815 = scmp.le.s32.totalorder 2, %s11
    // Predicated region
    $region45: #{cnn_forward.6} parent=5 // pred_check
      %p816 = pneg %p815
    $region46: #{cnn_forward.6} parent=5 // pred_check_branch
      %818 = sbr.rel (%p816) target = $region48
    $region47: #{cnn_forward.6} parent=5 // pred_region
      %s819 = ssub.s32 %s11, 2
      // Predicated region
      $region49: #{cnn_forward.6} parent=47 // pred_check
        %p820 = pneg %p180
      $region50: #{cnn_forward.6} parent=47 // pred_check_branch
        %822 = sbr.rel (%p820) target = $region52
      $region51: #{cnn_forward.6} parent=47 // pred_region
        %p823 = scmp.lt.s32.totalorder %s22, 1
        %s824 = scalar_select %p823, %s22, 1
        %p825 = scmp.lt.s32.totalorder %s23, 0
        %s826 = scalar_select %p825, %s23, 0
        %s827 = sadd.s32 %s826, %s824
        %s828 = smul.addr %s827, 8
        %s829 = scalar_lea.vmem %s5, %s828
      $region52: #{cnn_forward.6} parent=47 // pred_fallthru
        _
    $region48: #{cnn_forward.6} parent=5 // pred_fallthru
      _
  $region6: #{cnn_forward.6} parent=0 // loop_footer
    %s15 = sadd.s32 1, %s11
  $region7: #{cnn_forward.6} parent=0 // loop_footer_branch
    %10 = sbr.rel target = $region3
  $region8: #{cnn_forward.6} parent=0 // loop_exit
    _

// kernel: cnn_forward.5
$region0: #{cnn_forward.5}
  #allocation0 [shape = 'u32[]', space=smem, size = 0x4, offset = 0x4, fixed_abs, tag = 'smem constant byte address 0x4 - core index']
  #allocation1 [shape = 'u32[144,128]{1,0:T(1,128)}', space=vmem, size = 0x12000, scoped, tag = 'internal scratch']
  %s0 = inlined_call_operand.vmem [shape: f32[2,32,32], index: 0, kind: input, shape index: {}]
  %s1 = inlined_call_operand.vmem [shape: f32[2,1,1,32], index: 1, kind: input, shape index: {}, may-alias: {1,2}]
  %s2 = inlined_call_operand.vmem [shape: f32[2,1,1,32], index: 2, kind: input, shape index: {}, may-alias: {1,2}]
  %s3 = inlined_call_operand.vmem [shape: f32[96,64], index: 3, kind: input, shape index: {}]
  %s4 = inlined_call_operand.vmem [shape: f32[1,64], index: 4, kind: input, shape index: {}]
  %s5 = inlined_call_operand.vmem [shape: f32[2,16,64], index: 5, kind: output, shape index: {}]
  %s6 = sld [smem:[#allocation0]]
  $region53: #{cnn_forward.5} parent=0
    _
  %s8 = ssub.s32 1, %s6
  %s9 = scalar_select 0, %s8, %s6
  loop: start=0, step=1, limit=4
  $region2: #{cnn_forward.5} parent=0 // loop_pre_header
    _
  $region3: #{cnn_forward.5} parent=0 // loop_header
    %s11 = sphi 0, %s15
    %p12 = scmp.ge.s32.totalorder %s11, 4
    %s18 = sphi 0, %s30
    %s19 = sphi 0, %s26
    %s20 = sphi 0, %s18
    %s21 = sphi 0, %s19
    %s22 = sphi 0, %s20
    %s23 = sphi 0, %s21
    %s35 = sphi 0, %s37
    %s38 = sphi 0, %s35
    %s39 = sphi 0, %s38
    %s55 = sphi 0, %s39
    %s63 = sphi 0, %s65
    %s66 = sphi 0, %s63
    %s67 = sphi 0, %s66
    %s83 = sphi 0, %s67
    %s91 = sphi 0, %s93
    %s94 = sphi 0, %s91
    %s95 = sphi 0, %s94
    %s111 = sphi 0, %s95
    %s115 = sphi 0, %s115
    %s117 = sphi 0, %s115
    %s118 = sphi 0, %s117
    %s132 = sphi 0, %s118
    %s136 = sphi 0, %s136
    %s138 = sphi 0, %s136
    %s139 = sphi 0, %s138
    %s153 = sphi 0, %s139
    %s161 = sphi 0, %s163
    %s164 = sphi 0, %s161
    %s165 = sphi 0, %s164
    %s181 = sphi 0, %s165
  $region4: #{cnn_forward.5} parent=0 // loop_header_branch
    %14 = sbr.rel (%p12) target = $region8
  $region5: #{cnn_forward.5} parent=0 // loop_body
    %s16 = ssub.s32 %s11, 1
    %s17 = ssub.s32 %s11, 2
    %s24 = sadd.s32 1, %s19
    %p25 = scmp.ge.s32.totalorder %s24, 1
    %s26 = scalar_select %p25, 0, %s24
    %s27 = sadd.s32 1, %s18
    %s28 = scalar_select %p25, %s27, %s18
    %p29 = scmp.ge.s32.totalorder %s28, 2
    %s30 = scalar_select %p29, 0, %s28
    %s31 = ssub.s32 %s18, %s30
    %s32 = ssub.s32 %s19, %s26
    %s33 = sor.u32 %s31, %s32
    %p34 = scmp.eq.s32.totalorder %s33, 0
    %s36 = sadd.s32 %s35, 1
    %s37 = scalar_select %p34, %s35, %s36
    %p40 = pneg %p34
    %p41 = scmp.eq.s32.totalorder %s11, 1
    %p42 = por %p40, %p41
    %p43 = scmp.ne.s32.totalorder %s35, %s38
    %p44 = scmp.eq.s32.totalorder %s11, 0
    %p45 = por %p43, %p44
    %p46 = scmp.ne.s32.totalorder %s35, %s38
    %p47 = scmp.eq.s32.totalorder %s16, 1
    %p48 = por %p46, %p47
    %p49 = scmp.ne.s32.totalorder %s38, %s39
    %p50 = scmp.eq.s32.totalorder %s16, 0
    %p51 = por %p49, %p50
    %p52 = scmp.ne.s32.totalorder %s38, %s39
    %p53 = scmp.eq.s32.totalorder %s17, 1
    %p54 = por %p52, %p53
    %p56 = scmp.ne.s32.totalorder %s39, %s55
    %p57 = scmp.eq.s32.totalorder %s17, 0
    %p58 = por %p56, %p57
    %s59 = ssub.s32 %s18, %s30
    %s60 = ssub.s32 %s19, %s26
    %s61 = sor.u32 %s59, %s60
    %p62 = scmp.eq.s32.totalorder %s61, 0
    %s64 = sadd.s32 %s63, 1
    %s65 = scalar_select %p62, %s63, %s64
    %p68 = pneg %p62
    %p69 = scmp.eq.s32.totalorder %s11, 1
    %p70 = por %p68, %p69
    %p71 = scmp.ne.s32.totalorder %s63, %s66
    %p72 = scmp.eq.s32.totalorder %s11, 0
    %p73 = por %p71, %p72
    %p74 = scmp.ne.s32.totalorder %s63, %s66
    %p75 = scmp.eq.s32.totalorder %s16, 1
    %p76 = por %p74, %p75
    %p77 = scmp.ne.s32.totalorder %s66, %s67
    %p78 = scmp.eq.s32.totalorder %s16, 0
    %p79 = por %p77, %p78
    %p80 = scmp.ne.s32.totalorder %s66, %s67
    %p81 = scmp.eq.s32.totalorder %s17, 1
    %p82 = por %p80, %p81
    %p84 = scmp.ne.s32.totalorder %s67, %s83
    %p85 = scmp.eq.s32.totalorder %s17, 0
    %p86 = por %p84, %p85
    %s87 = ssub.s32 %s18, %s30
    %s88 = ssub.s32 %s19, %s26
    %s89 = sor.u32 %s87, %s88
    %p90 = scmp.eq.s32.totalorder %s89, 0
    %s92 = sadd.s32 %s91, 1
    %s93 = scalar_select %p90, %s91, %s92
    %p96 = pneg %p90
    %p97 = scmp.eq.s32.totalorder %s11, 1
    %p98 = por %p96, %p97
    %p99 = scmp.ne.s32.totalorder %s91, %s94
    %p100 = scmp.eq.s32.totalorder %s11, 0
    %p101 = por %p99, %p100
    %p102 = scmp.ne.s32.totalorder %s91, %s94
    %p103 = scmp.eq.s32.totalorder %s16, 1
    %p104 = por %p102, %p103
    %p105 = scmp.ne.s32.totalorder %s94, %s95
    %p106 = scmp.eq.s32.totalorder %s16, 0
    %p107 = por %p105, %p106
    %p108 = scmp.ne.s32.totalorder %s94, %s95
    %p109 = scmp.eq.s32.totalorder %s17, 1
    %p110 = por %p108, %p109
    %p112 = scmp.ne.s32.totalorder %s95, %s111
    %p113 = scmp.eq.s32.totalorder %s17, 0
    %p114 = por %p112, %p113
    %s116 = sadd.s32 %s115, 1
    %p119 = scmp.eq.s32.totalorder %s11, 1
    %p120 = scmp.ne.s32.totalorder %s115, %s117
    %p121 = scmp.eq.s32.totalorder %s11, 0
    %p122 = por %p120, %p121
    %p123 = scmp.ne.s32.totalorder %s115, %s117
    %p124 = scmp.eq.s32.totalorder %s16, 1
    %p125 = por %p123, %p124
    %p126 = scmp.ne.s32.totalorder %s117, %s118
    %p127 = scmp.eq.s32.totalorder %s16, 0
    %p128 = por %p126, %p127
    %p129 = scmp.ne.s32.totalorder %s117, %s118
    %p130 = scmp.eq.s32.totalorder %s17, 1
    %p131 = por %p129, %p130
    %p133 = scmp.ne.s32.totalorder %s118, %s132
    %p134 = scmp.eq.s32.totalorder %s17, 0
    %p135 = por %p133, %p134
    %s137 = sadd.s32 %s136, 1
    %p140 = scmp.eq.s32.totalorder %s11, 1
    %p141 = scmp.ne.s32.totalorder %s136, %s138
    %p142 = scmp.eq.s32.totalorder %s11, 0
    %p143 = por %p141, %p142
    %p144 = scmp.ne.s32.totalorder %s136, %s138
    %p145 = scmp.eq.s32.totalorder %s16, 1
    %p146 = por %p144, %p145
    %p147 = scmp.ne.s32.totalorder %s138, %s139
    %p148 = scmp.eq.s32.totalorder %s16, 0
    %p149 = por %p147, %p148
    %p150 = scmp.ne.s32.totalorder %s138, %s139
    %p151 = scmp.eq.s32.totalorder %s17, 1
    %p152 = por %p150, %p151
    %p154 = scmp.ne.s32.totalorder %s139, %s153
    %p155 = scmp.eq.s32.totalorder %s17, 0
    %p156 = por %p154, %p155
    %s157 = ssub.s32 %s18, %s30
    %s158 = ssub.s32 %s19, %s26
    %s159 = sor.u32 %s157, %s158
    %p160 = scmp.eq.s32.totalorder %s159, 0
    %s162 = sadd.s32 %s161, 1
    %s163 = scalar_select %p160, %s161, %s162
    %p166 = pneg %p160
    %p167 = scmp.eq.s32.totalorder %s11, 1
    %p168 = por %p166, %p167
    %p169 = scmp.ne.s32.totalorder %s161, %s164
    %p170 = scmp.eq.s32.totalorder %s11, 0
    %p171 = por %p169, %p170
    %p172 = scmp.ne.s32.totalorder %s161, %s164
    %p173 = scmp.eq.s32.totalorder %s16, 1
    %p174 = por %p172, %p173
    %p175 = scmp.ne.s32.totalorder %s164, %s165
    %p176 = scmp.eq.s32.totalorder %s16, 0
    %p177 = por %p175, %p176
    %p178 = scmp.ne.s32.totalorder %s164, %s165
    %p179 = scmp.eq.s32.totalorder %s17, 1
    %p180 = por %p178, %p179
    %p182 = scmp.ne.s32.totalorder %s165, %s181
    %p183 = scmp.eq.s32.totalorder %s17, 0
    %p184 = por %p182, %p183
    %p185 = scmp.le.s32.totalorder 1, %s11
    %p186 = scmp.lt.s32.totalorder %s11, 3
    %p187 = pnand %p185, %p186
    %p188 = pneg %p187
    // Predicated region
    $region9: #{cnn_forward.5} parent=5 // pred_check
      _
    $region10: #{cnn_forward.5} parent=5 // pred_check_branch
      %190 = sbr.rel (%p187) target = $region12
    $region11: #{cnn_forward.5} parent=5 // pred_region
      %s191 = ssub.s32 %s11, 1
      // Predicated region
      $region13: #{cnn_forward.5} parent=11 // pred_check
        %p192 = pneg %p128
      $region14: #{cnn_forward.5} parent=11 // pred_check_branch
        %194 = sbr.rel (%p192) target = $region16
      $region15: #{cnn_forward.5} parent=11 // pred_region
        _
      $region16: #{cnn_forward.5} parent=11 // pred_fallthru
        _
      // Predicated region
      $region17: #{cnn_forward.5} parent=11 // pred_check
        %p195 = pneg %p149
      $region18: #{cnn_forward.5} parent=11 // pred_check_branch
        %197 = sbr.rel (%p195) target = $region20
      $region19: #{cnn_forward.5} parent=11 // pred_region
        _
      $region20: #{cnn_forward.5} parent=11 // pred_fallthru
        _
    $region12: #{cnn_forward.5} parent=5 // pred_fallthru
      _
    %p198 = scmp.lt.s32.totalorder %s11, 2
    // Predicated region
    $region21: #{cnn_forward.5} parent=5 // pred_check
      %p199 = pneg %p198
    $region22: #{cnn_forward.5} parent=5 // pred_check_branch
      %201 = sbr.rel (%p199) target = $region24
    $region23: #{cnn_forward.5} parent=5 // pred_region
      // Predicated region
      $region25: #{cnn_forward.5} parent=23 // pred_check
        %p202 = pneg %p45
      $region26: #{cnn_forward.5} parent=23 // pred_check_branch
        %204 = sbr.rel (%p202) target = $region28
      $region27: #{cnn_forward.5} parent=23 // pred_region
        %s205 = smul.u32 4, %s19
        %p206 = scmp.lt.s32.totalorder %s18, 1
        %s207 = scalar_select %p206, %s18, 1
        %p208 = scmp.lt.s32.totalorder %s205, 3
        %s209 = scalar_select %p208, %s205, 3
        %s210 = smul.addr %s207, 4
        %s211 = sadd.s32 %s209, %s210
        %s212 = smul.addr %s211, 8
        %s213 = scalar_lea.vmem %s0, %s212
        %s214 = smul.u32 4, %s19
      $region28: #{cnn_forward.5} parent=23 // pred_fallthru
        _
      // Predicated region
      $region29: #{cnn_forward.5} parent=23 // pred_check
        %p215 = pneg %p73
      $region30: #{cnn_forward.5} parent=23 // pred_check_branch
        %217 = sbr.rel (%p215) target = $region32
      $region31: #{cnn_forward.5} parent=23 // pred_region
        %p218 = scmp.lt.s32.totalorder %s18, 1
        %s219 = scalar_select %p218, %s18, 1
        %p220 = scmp.lt.s32.totalorder %s19, 0
        %s221 = scalar_select %p220, %s19, 0
        %s222 = sadd.s32 %s221, %s219
        %s223 = scalar_lea.vmem %s1, %s222
      $region32: #{cnn_forward.5} parent=23 // pred_fallthru
        _
      // Predicated region
      $region33: #{cnn_forward.5} parent=23 // pred_check
        %p224 = pneg %p101
      $region34: #{cnn_forward.5} parent=23 // pred_check_branch
        %226 = sbr.rel (%p224) target = $region36
      $region35: #{cnn_forward.5} parent=23 // pred_region
        %p227 = scmp.lt.s32.totalorder %s18, 1
        %s228 = scalar_select %p227, %s18, 1
        %p229 = scmp.lt.s32.totalorder %s19, 0
        %s230 = scalar_select %p229, %s19, 0
        %s231 = sadd.s32 %s230, %s228
        %s232 = scalar_lea.vmem %s2, %s231
      $region36: #{cnn_forward.5} parent=23 // pred_fallthru
        _
    $region24: #{cnn_forward.5} parent=5 // pred_fallthru
      _
    %p233 = scmp.le.s32.totalorder 1, %s11
    %p234 = scmp.lt.s32.totalorder %s11, 3
    %p235 = pnand %p233, %p234
    %p236 = pneg %p235
    // Predicated region
    $region37: #{cnn_forward.5} parent=5 // pred_check
      _
    $region38: #{cnn_forward.5} parent=5 // pred_check_branch
      %238 = sbr.rel (%p235) target = $region40
    $region39: #{cnn_forward.5} parent=5 // pred_region
      %s239 = ssub.s32 %s11, 1
      %s240 = smul.u32 4, %s21
      %p241 = scmp.lt.s32.totalorder %s20, 1
      %s242 = scalar_select %p241, %s20, 1
      %p243 = scmp.lt.s32.totalorder %s240, 3
      %s244 = scalar_select %p243, %s240, 3
      %s245 = smul.addr %s242, 4
      %s246 = sadd.s32 %s244, %s245
      %s247 = smul.addr %s246, 8
      %s248 = scalar_lea.vmem %s0, %s247
      %p249 = pneg %p51
      %p250 = pneg %p48
      %p251 = scmp.lt.s32.totalorder %s20, 1
      %s252 = scalar_select %p251, %s20, 1
      %p253 = scmp.lt.s32.totalorder %s21, 0
      %s254 = scalar_select %p253, %s21, 0
      %s255 = sadd.s32 %s254, %s252
      %s256 = scalar_lea.vmem %s1, %s255
      %p257 = pneg %p79
      %p258 = pneg %p76
      %p259 = scmp.lt.s32.totalorder %s20, 1
      %s260 = scalar_select %p259, %s20, 1
      %p261 = scmp.lt.s32.totalorder %s21, 0
      %s262 = scalar_select %p261, %s21, 0
      %s263 = sadd.s32 %s262, %s260
      %s264 = scalar_lea.vmem %s2, %s263
      %p265 = pneg %p107
      %p266 = pneg %p104
      %p267 = pneg %p128
      %p268 = pneg %p125
      %p269 = pneg %p149
      %p270 = pneg %p146
      %p271 = pneg %p177
      %p272 = pneg %p174
      %s273 = smul.u32 2, %s21
      %p274 = scmp.lt.s32.totalorder %s20, 1
      %s275 = scalar_select %p274, %s20, 1
      %p276 = scmp.lt.s32.totalorder %s273, 1
      %s277 = scalar_select %p276, %s273, 1
      %s278 = smul.addr %s275, 2
      %s279 = sadd.s32 %s277, %s278
      %s280 = smul.addr %s279, 8
      %s281 = scalar_lea.vmem %s5, %s280
      %s282 = smul.u32 4, %s21
      %p283 = scmp.lt.s32.totalorder %s20, 1
      %s284 = scalar_select %p283, %s20, 1
      %p285 = scmp.lt.s32.totalorder %s282, 3
      %s286 = scalar_select %p285, %s282, 3
      %s287 = smul.addr %s284, 4
      %s288 = sadd.s32 %s286, %s287
      %s289 = smul.addr %s288, 8
      %s290 = scalar_lea.vmem %s0, %s289
      %s291 = smul.u32 4, %s21
      %p292 = scmp.lt.s32.totalorder %s20, 1
      %s293 = scalar_select %p292, %s20, 1
      %p294 = scmp.lt.s32.totalorder %s21, 0
      %s295 = scalar_select %p294, %s21, 0
      %s296 = sadd.s32 %s295, %s293
      %s297 = scalar_lea.vmem %s1, %s296
      %p298 = scmp.lt.s32.totalorder %s20, 1
      %s299 = scalar_select %p298, %s20, 1
      %p300 = scmp.lt.s32.totalorder %s21, 0
      %s301 = scalar_select %p300, %s21, 0
      %s302 = sadd.s32 %s301, %s299
      %s303 = scalar_lea.vmem %s2, %s302
      %s304 = smul.u32 2, %s21
      %p305 = scmp.lt.s32.totalorder %s20, 1
      %s306 = scalar_select %p305, %s20, 1
      %p307 = scmp.lt.s32.totalorder %s304, 1
      %s308 = scalar_select %p307, %s304, 1
      %s309 = smul.addr %s306, 2
      %s310 = sadd.s32 %s308, %s309
      %s311 = smul.addr %s310, 8
      %s312 = scalar_lea.vmem %s5, %s311
      %s313 = smul.u32 2, %s21
      %v314 = vld [vmem:[%s290] ss:$2 sm:$0xff]
      %s315 = scalar_lea.vmem %s290, 16
      %v316 = vld [vmem:[%s315] ss:$2 sm:$0xff]
      %s317 = scalar_lea.vmem %s290, 1
      %v318 = vld [vmem:[%s317] ss:$2 sm:$0xff]
      %s319 = scalar_lea.vmem %s290, 17
      %v320 = vld [vmem:[%s319] ss:$2 sm:$0xff]
      %v321 = vld [vmem:[%s297] sm:$0x1]
      %vm324 = vcmask 1040384
      %v325 = vrot.slane %v318, 7
      %v326 = vrot.slane %v320, 7
      %v327 = vsel %vm324, %v325, %v326
      %v329 = vsel %vm324, %v321, %v325
      %v330 = vld [vmem:[%s303] sm:$0x1]
      %vm333 = vcmask 1046528
      %v334 = vrot.slane %v314, 1
      %v335 = vrot.slane %v316, 1
      %v336 = vsel %vm333, %v334, %v335
      %v339 = vlaneseq
      %v340 = vshrl.u32 %v339, 7
      %v341 = vsub.s32 0, %v340
      %v342 = vrot.slane %v330, %v341
      %v344 = vsel %vm333, %v335, %v342
      %v345 = vld [vmem:[%s3] sm:$0xff]
      %v346 = vld [vmem:[%s3 + $0x8] sm:$0xff]
      %v347 = vld [vmem:[%s3 + $0x10] sm:$0xff]
      %v348 = vld [vmem:[%s3 + $0x18] sm:$0xff]
      %v349 = vld [vmem:[%s3 + $0x20] sm:$0xff]
      %v350 = vld [vmem:[%s3 + $0x28] sm:$0xff]
      %v351 = vld [vmem:[%s3 + $0x30] sm:$0xff]
      %v352 = vld [vmem:[%s3 + $0x38] sm:$0xff]
      %v353 = vld [vmem:[%s3 + $0x40] sm:$0xff]
      %v354 = vld [vmem:[%s3 + $0x48] sm:$0xff]
      %v355 = vld [vmem:[%s3 + $0x50] sm:$0xff]
      %v356 = vld [vmem:[%s3 + $0x58] sm:$0xff]
      %vm357 = vcmask 261120
      %v358 = vsel %vm357, %v314, 0
      %v360 = vsel %vm357, %v316, 0
      %362 = vmatprep.subr.mxu0 0.0
      %363 = vmatpush1.msra.mxu0 %v349
      %364 = vmatprep.subr.mxu0 0.0
      %365 = vmatpush1.msra.mxu0 %v350
      %366 = vmatprep.subr.mxu0 0.0
      %367 = vmatpush1.msra.mxu0 %v351
      %368 = vmatprep.subr.mxu0 0.0
      %369 = vmatpush1.msra.mxu0 %v352
      %370 = vmatprep.subr.mxu0 0.0
      %371 = vmatpush1.msra.mxu0 0.0
      %372 = vmatprep.subr.mxu0 0.0
      %373 = vmatpush1.msra.mxu0 0.0
      %374 = vmatprep.subr.mxu0 0.0
      %375 = vmatpush1.msra.mxu0 0.0
      %376 = vmatprep.subr.mxu0 0.0
      %377 = vmatpush1.msra.mxu0 0.0
      %378 = vmatprep.subr.mxu0 0.0
      %379 = vmatpush1.msra.mxu0 0.0
      %380 = vmatprep.subr.mxu0 0.0
      %381 = vmatpush1.msra.mxu0 0.0
      %382 = vmatprep.subr.mxu0 0.0
      %383 = vmatpush1.msra.mxu0 0.0
      %384 = vmatprep.subr.mxu0 0.0
      %385 = vmatpush1.msra.mxu0 0.0
      %386 = vmatprep.subr.mxu0 0.0
      %387 = vmatpush1.msra.mxu0 0.0
      %388 = vmatprep.subr.mxu0 0.0
      %389 = vmatpush1.msra.mxu0 0.0
      %390 = vmatprep.subr.mxu0 0.0
      %391 = vmatpush1.msra.mxu0 0.0
      %392 = vmatprep.subr.mxu0 0.0
      %393 = vmatpush1.msra.mxu0 0.0
      %394 = vmatprep.subr.mxu0 0.0
      %395 = vmatpush1.msra.mxu0 0.0
      %396 = vmatprep.subr.mxu0 0.0
      %397 = vmatpush1.msra.mxu0 0.0
      %398 = vmatprep.subr.mxu0 0.0
      %399 = vmatpush1.msra.mxu0 0.0
      %400 = vmatprep.subr.mxu0 0.0
      %401 = vmatpush1.msra.mxu0 0.0
      %402 = vmatprep.subr.mxu0 0.0
      %403 = vmatpush1.msra.mxu0 0.0
      %404 = vmatprep.subr.mxu0 0.0
      %405 = vmatpush1.msra.mxu0 0.0
      %406 = vmatprep.subr.mxu0 0.0
      %407 = vmatpush1.msra.mxu0 0.0
      %408 = vmatprep.subr.mxu0 0.0
      %409 = vmatpush1.msra.mxu0 0.0
      %410 = vmatprep.subr.mxu0 0.0
      %411 = vmatpush1.msra.mxu0 0.0
      %412 = vmatprep.subr.mxu0 0.0
      %413 = vmatpush1.msra.mxu0 0.0
      %414 = vmatprep.subr.mxu0 0.0
      %415 = vmatpush1.msra.mxu0 0.0
      %416 = vmatprep.subr.mxu0 0.0
      %417 = vmatpush1.msra.mxu0 0.0
      %418 = vmatprep.subr.mxu0 0.0
      %419 = vmatpush1.msra.mxu0 0.0
      %420 = vmatprep.subr.mxu0 0.0
      %421 = vmatpush1.msra.mxu0 0.0
      %422 = vmatprep.subr.mxu0 0.0
      %423 = vmatpush1.msra.mxu0 0.0
      %424 = vmatprep.subr.mxu0 0.0
      %425 = vmatpush1.msra.mxu0 0.0
      %426 = vmatprep.mubr.f32.mxu0 0.0
      %427 = vmatmul.mubr.f32.gmra.mrb[0].mxu0 %v358
      %v428 = vpop.f32.mrb[0].mxu0
      %v429 = vadd.f32 0.0, %v428
      %v430 = vpop.f32.mrb[0].mxu0
      %431 = vmatprep.mubr.f32.mxu0 0.0
      %432 = vmatmul.mubr.f32.gmra.mrb[0].mxu0 %v360
      %v433 = vpop.f32.mrb[0].mxu0
      %v434 = vadd.f32 0.0, %v433
      %v435 = vpop.f32.mrb[0].mxu0
      %436 = vdwg.mxu0
      %v438 = vsel %vm357, %v329, 0
      %v440 = vsel %vm357, %v327, 0
      %442 = vmatprep.subr.mxu0 0.0
      %443 = vmatpush1.msra.mxu0 %v345
      %444 = vmatprep.subr.mxu0 0.0
      %445 = vmatpush1.msra.mxu0 %v346
      %446 = vmatprep.subr.mxu0 0.0
      %447 = vmatpush1.msra.mxu0 %v347
      %448 = vmatprep.subr.mxu0 0.0
      %449 = vmatpush1.msra.mxu0 %v348
      %450 = vmatprep.subr.mxu0 0.0
      %451 = vmatpush1.msra.mxu0 0.0
      %452 = vmatprep.subr.mxu0 0.0
      %453 = vmatpush1.msra.mxu0 0.0
      %454 = vmatprep.subr.mxu0 0.0
      %455 = vmatpush1.msra.mxu0 0.0
      %456 = vmatprep.subr.mxu0 0.0
      %457 = vmatpush1.msra.mxu0 0.0
      %458 = vmatprep.subr.mxu0 0.0
      %459 = vmatpush1.msra.mxu0 0.0
      %460 = vmatprep.subr.mxu0 0.0
      %461 = vmatpush1.msra.mxu0 0.0
      %462 = vmatprep.subr.mxu0 0.0
      %463 = vmatpush1.msra.mxu0 0.0
      %464 = vmatprep.subr.mxu0 0.0
      %465 = vmatpush1.msra.mxu0 0.0
      %466 = vmatprep.subr.mxu0 0.0
      %467 = vmatpush1.msra.mxu0 0.0
      %468 = vmatprep.subr.mxu0 0.0
      %469 = vmatpush1.msra.mxu0 0.0
      %470 = vmatprep.subr.mxu0 0.0
      %471 = vmatpush1.msra.mxu0 0.0
      %472 = vmatprep.subr.mxu0 0.0
      %473 = vmatpush1.msra.mxu0 0.0
      %474 = vmatprep.subr.mxu0 0.0
      %475 = vmatpush1.msra.mxu0 0.0
      %476 = vmatprep.subr.mxu0 0.0
      %477 = vmatpush1.msra.mxu0 0.0
      %478 = vmatprep.subr.mxu0 0.0
      %479 = vmatpush1.msra.mxu0 0.0
      %480 = vmatprep.subr.mxu0 0.0
      %481 = vmatpush1.msra.mxu0 0.0
      %482 = vmatprep.subr.mxu0 0.0
      %483 = vmatpush1.msra.mxu0 0.0
      %484 = vmatprep.subr.mxu0 0.0
      %485 = vmatpush1.msra.mxu0 0.0
      %486 = vmatprep.subr.mxu0 0.0
      %487 = vmatpush1.msra.mxu0 0.0
      %488 = vmatprep.subr.mxu0 0.0
      %489 = vmatpush1.msra.mxu0 0.0
      %490 = vmatprep.subr.mxu0 0.0
      %491 = vmatpush1.msra.mxu0 0.0
      %492 = vmatprep.subr.mxu0 0.0
      %493 = vmatpush1.msra.mxu0 0.0
      %494 = vmatprep.subr.mxu0 0.0
      %495 = vmatpush1.msra.mxu0 0.0
      %496 = vmatprep.subr.mxu0 0.0
      %497 = vmatpush1.msra.mxu0 0.0
      %498 = vmatprep.subr.mxu0 0.0
      %499 = vmatpush1.msra.mxu0 0.0
      %500 = vmatprep.subr.mxu0 0.0
      %501 = vmatpush1.msra.mxu0 0.0
      %502 = vmatprep.subr.mxu0 0.0
      %503 = vmatpush1.msra.mxu0 0.0
      %504 = vmatprep.subr.mxu0 0.0
      %505 = vmatpush1.msra.mxu0 0.0
      %506 = vmatprep.mubr.f32.mxu0 0.0
      %507 = vmatmul.mubr.f32.gmra.mrb[0].mxu0 %v438
      %v508 = vpop.f32.mrb[0].mxu0
      %v509 = vadd.f32 %v429, %v508
      %v510 = vpop.f32.mrb[0].mxu0
      %511 = vmatprep.mubr.f32.mxu0 0.0
      %512 = vmatmul.mubr.f32.gmra.mrb[0].mxu0 %v440
      %v513 = vpop.f32.mrb[0].mxu0
      %v514 = vadd.f32 %v434, %v513
      %v515 = vpop.f32.mrb[0].mxu0
      %516 = vdwg.mxu0
      %v517 = vsel %vm357, %v318, 0
      %v519 = vsel %vm357, %v320, 0
      %521 = vmatprep.subr.mxu0 0.0
      %522 = vmatpush1.msra.mxu0 %v353
      %523 = vmatprep.subr.mxu0 0.0
      %524 = vmatpush1.msra.mxu0 %v354
      %525 = vmatprep.subr.mxu0 0.0
      %526 = vmatpush1.msra.mxu0 %v355
      %527 = vmatprep.subr.mxu0 0.0
      %528 = vmatpush1.msra.mxu0 %v356
      %529 = vmatprep.subr.mxu0 0.0
      %530 = vmatpush1.msra.mxu0 0.0
      %531 = vmatprep.subr.mxu0 0.0
      %532 = vmatpush1.msra.mxu0 0.0
      %533 = vmatprep.subr.mxu0 0.0
      %534 = vmatpush1.msra.mxu0 0.0
      %535 = vmatprep.subr.mxu0 0.0
      %536 = vmatpush1.msra.mxu0 0.0
      %537 = vmatprep.subr.mxu0 0.0
      %538 = vmatpush1.msra.mxu0 0.0
      %539 = vmatprep.subr.mxu0 0.0
      %540 = vmatpush1.msra.mxu0 0.0
      %541 = vmatprep.subr.mxu0 0.0
      %542 = vmatpush1.msra.mxu0 0.0
      %543 = vmatprep.subr.mxu0 0.0
      %544 = vmatpush1.msra.mxu0 0.0
      %545 = vmatprep.subr.mxu0 0.0
      %546 = vmatpush1.msra.mxu0 0.0
      %547 = vmatprep.subr.mxu0 0.0
      %548 = vmatpush1.msra.mxu0 0.0
      %549 = vmatprep.subr.mxu0 0.0
      %550 = vmatpush1.msra.mxu0 0.0
      %551 = vmatprep.subr.mxu0 0.0
      %552 = vmatpush1.msra.mxu0 0.0
      %553 = vmatprep.subr.mxu0 0.0
      %554 = vmatpush1.msra.mxu0 0.0
      %555 = vmatprep.subr.mxu0 0.0
      %556 = vmatpush1.msra.mxu0 0.0
      %557 = vmatprep.subr.mxu0 0.0
      %558 = vmatpush1.msra.mxu0 0.0
      %559 = vmatprep.subr.mxu0 0.0
      %560 = vmatpush1.msra.mxu0 0.0
      %561 = vmatprep.subr.mxu0 0.0
      %562 = vmatpush1.msra.mxu0 0.0
      %563 = vmatprep.subr.mxu0 0.0
      %564 = vmatpush1.msra.mxu0 0.0
      %565 = vmatprep.subr.mxu0 0.0
      %566 = vmatpush1.msra.mxu0 0.0
      %567 = vmatprep.subr.mxu0 0.0
      %568 = vmatpush1.msra.mxu0 0.0
      %569 = vmatprep.subr.mxu0 0.0
      %570 = vmatpush1.msra.mxu0 0.0
      %571 = vmatprep.subr.mxu0 0.0
      %572 = vmatpush1.msra.mxu0 0.0
      %573 = vmatprep.subr.mxu0 0.0
      %574 = vmatpush1.msra.mxu0 0.0
      %575 = vmatprep.subr.mxu0 0.0
      %576 = vmatpush1.msra.mxu0 0.0
      %577 = vmatprep.subr.mxu0 0.0
      %578 = vmatpush1.msra.mxu0 0.0
      %579 = vmatprep.subr.mxu0 0.0
      %580 = vmatpush1.msra.mxu0 0.0
      %581 = vmatprep.subr.mxu0 0.0
      %582 = vmatpush1.msra.mxu0 0.0
      %583 = vmatprep.subr.mxu0 0.0
      %584 = vmatpush1.msra.mxu0 0.0
      %585 = vmatprep.mubr.f32.mxu0 0.0
      %586 = vmatmul.mubr.f32.gmra.mrb[0].mxu0 %v517
      %v587 = vpop.f32.mrb[0].mxu0
      %v588 = vadd.f32 0.0, %v587
      %v589 = vpop.f32.mrb[0].mxu0
      %590 = vmatprep.mubr.f32.mxu0 0.0
      %591 = vmatmul.mubr.f32.gmra.mrb[0].mxu0 %v519
      %v592 = vpop.f32.mrb[0].mxu0
      %v593 = vadd.f32 0.0, %v592
      %v594 = vpop.f32.mrb[0].mxu0
      %595 = vdwg.mxu0
      %v596 = vadd.f32 %v509, %v588
      %v597 = vadd.f32 %v514, %v593
      %598 = vmatprep.subr.mxu0 0.0
      %599 = vmatpush1.msra.mxu0 %v349
      %600 = vmatprep.subr.mxu0 0.0
      %601 = vmatpush1.msra.mxu0 %v350
      %602 = vmatprep.subr.mxu0 0.0
      %603 = vmatpush1.msra.mxu0 %v351
      %604 = vmatprep.subr.mxu0 0.0
      %605 = vmatpush1.msra.mxu0 %v352
      %606 = vmatprep.subr.mxu0 0.0
      %607 = vmatpush1.msra.mxu0 0.0
      %608 = vmatprep.subr.mxu0 0.0
      %609 = vmatpush1.msra.mxu0 0.0
      %610 = vmatprep.subr.mxu0 0.0
      %611 = vmatpush1.msra.mxu0 0.0
      %612 = vmatprep.subr.mxu0 0.0
      %613 = vmatpush1.msra.mxu0 0.0
      %614 = vmatprep.subr.mxu0 0.0
      %615 = vmatpush1.msra.mxu0 0.0
      %616 = vmatprep.subr.mxu0 0.0
      %617 = vmatpush1.msra.mxu0 0.0
      %618 = vmatprep.subr.mxu0 0.0
      %619 = vmatpush1.msra.mxu0 0.0
      %620 = vmatprep.subr.mxu0 0.0
      %621 = vmatpush1.msra.mxu0 0.0
      %622 = vmatprep.subr.mxu0 0.0
      %623 = vmatpush1.msra.mxu0 0.0
      %624 = vmatprep.subr.mxu0 0.0
      %625 = vmatpush1.msra.mxu0 0.0
      %626 = vmatprep.subr.mxu0 0.0
      %627 = vmatpush1.msra.mxu0 0.0
      %628 = vmatprep.subr.mxu0 0.0
      %629 = vmatpush1.msra.mxu0 0.0
      %630 = vmatprep.subr.mxu0 0.0
      %631 = vmatpush1.msra.mxu0 0.0
      %632 = vmatprep.subr.mxu0 0.0
      %633 = vmatpush1.msra.mxu0 0.0
      %634 = vmatprep.subr.mxu0 0.0
      %635 = vmatpush1.msra.mxu0 0.0
      %636 = vmatprep.subr.mxu0 0.0
      %637 = vmatpush1.msra.mxu0 0.0
      %638 = vmatprep.subr.mxu0 0.0
      %639 = vmatpush1.msra.mxu0 0.0
      %640 = vmatprep.subr.mxu0 0.0
      %641 = vmatpush1.msra.mxu0 0.0
      %642 = vmatprep.subr.mxu0 0.0
      %643 = vmatpush1.msra.mxu0 0.0
      %644 = vmatprep.subr.mxu0 0.0
      %645 = vmatpush1.msra.mxu0 0.0
      %646 = vmatprep.subr.mxu0 0.0
      %647 = vmatpush1.msra.mxu0 0.0
      %648 = vmatprep.subr.mxu0 0.0
      %649 = vmatpush1.msra.mxu0 0.0
      %650 = vmatprep.subr.mxu0 0.0
      %651 = vmatpush1.msra.mxu0 0.0
      %652 = vmatprep.subr.mxu0 0.0
      %653 = vmatpush1.msra.mxu0 0.0
      %654 = vmatprep.subr.mxu0 0.0
      %655 = vmatpush1.msra.mxu0 0.0
      %656 = vmatprep.subr.mxu0 0.0
      %657 = vmatpush1.msra.mxu0 0.0
      %658 = vmatprep.subr.mxu0 0.0
      %659 = vmatpush1.msra.mxu0 0.0
      %660 = vmatprep.subr.mxu0 0.0
      %661 = vmatpush1.msra.mxu0 0.0
      %662 = vmatprep.mubr.f32.mxu0 0.0
      %663 = vmatmul.mubr.f32.gmra.mrb[0].mxu0 %v517
      %v664 = vpop.f32.mrb[0].mxu0
      %v665 = vadd.f32 0.0, %v664
      %v666 = vpop.f32.mrb[0].mxu0
      %667 = vmatprep.mubr.f32.mxu0 0.0
      %668 = vmatmul.mubr.f32.gmra.mrb[0].mxu0 %v519
      %v669 = vpop.f32.mrb[0].mxu0
      %v670 = vadd.f32 0.0, %v669
      %v671 = vpop.f32.mrb[0].mxu0
      %672 = vdwg.mxu0
      %673 = vmatprep.subr.mxu0 0.0
      %674 = vmatpush1.msra.mxu0 %v345
      %675 = vmatprep.subr.mxu0 0.0
      %676 = vmatpush1.msra.mxu0 %v346
      %677 = vmatprep.subr.mxu0 0.0
      %678 = vmatpush1.msra.mxu0 %v347
      %679 = vmatprep.subr.mxu0 0.0
      %680 = vmatpush1.msra.mxu0 %v348
      %681 = vmatprep.subr.mxu0 0.0
      %682 = vmatpush1.msra.mxu0 0.0
      %683 = vmatprep.subr.mxu0 0.0
      %684 = vmatpush1.msra.mxu0 0.0
      %685 = vmatprep.subr.mxu0 0.0
      %686 = vmatpush1.msra.mxu0 0.0
      %687 = vmatprep.subr.mxu0 0.0
      %688 = vmatpush1.msra.mxu0 0.0
      %689 = vmatprep.subr.mxu0 0.0
      %690 = vmatpush1.msra.mxu0 0.0
      %691 = vmatprep.subr.mxu0 0.0
      %692 = vmatpush1.msra.mxu0 0.0
      %693 = vmatprep.subr.mxu0 0.0
      %694 = vmatpush1.msra.mxu0 0.0
      %695 = vmatprep.subr.mxu0 0.0
      %696 = vmatpush1.msra.mxu0 0.0
      %697 = vmatprep.subr.mxu0 0.0
      %698 = vmatpush1.msra.mxu0 0.0
      %699 = vmatprep.subr.mxu0 0.0
      %700 = vmatpush1.msra.mxu0 0.0
      %701 = vmatprep.subr.mxu0 0.0
      %702 = vmatpush1.msra.mxu0 0.0
      %703 = vmatprep.subr.mxu0 0.0
      %704 = vmatpush1.msra.mxu0 0.0
      %705 = vmatprep.subr.mxu0 0.0
      %706 = vmatpush1.msra.mxu0 0.0
      %707 = vmatprep.subr.mxu0 0.0
      %708 = vmatpush1.msra.mxu0 0.0
      %709 = vmatprep.subr.mxu0 0.0
      %710 = vmatpush1.msra.mxu0 0.0
      %711 = vmatprep.subr.mxu0 0.0
      %712 = vmatpush1.msra.mxu0 0.0
      %713 = vmatprep.subr.mxu0 0.0
      %714 = vmatpush1.msra.mxu0 0.0
      %715 = vmatprep.subr.mxu0 0.0
      %716 = vmatpush1.msra.mxu0 0.0
      %717 = vmatprep.subr.mxu0 0.0
      %718 = vmatpush1.msra.mxu0 0.0
      %719 = vmatprep.subr.mxu0 0.0
      %720 = vmatpush1.msra.mxu0 0.0
      %721 = vmatprep.subr.mxu0 0.0
      %722 = vmatpush1.msra.mxu0 0.0
      %723 = vmatprep.subr.mxu0 0.0
      %724 = vmatpush1.msra.mxu0 0.0
      %725 = vmatprep.subr.mxu0 0.0
      %726 = vmatpush1.msra.mxu0 0.0
      %727 = vmatprep.subr.mxu0 0.0
      %728 = vmatpush1.msra.mxu0 0.0
      %729 = vmatprep.subr.mxu0 0.0
      %730 = vmatpush1.msra.mxu0 0.0
      %731 = vmatprep.subr.mxu0 0.0
      %732 = vmatpush1.msra.mxu0 0.0
      %733 = vmatprep.subr.mxu0 0.0
      %734 = vmatpush1.msra.mxu0 0.0
      %735 = vmatprep.subr.mxu0 0.0
      %736 = vmatpush1.msra.mxu0 0.0
      %737 = vmatprep.mubr.f32.mxu0 0.0
      %738 = vmatmul.mubr.f32.gmra.mrb[0].mxu0 %v358
      %v739 = vpop.f32.mrb[0].mxu0
      %v740 = vadd.f32 %v665, %v739
      %v741 = vpop.f32.mrb[0].mxu0
      %742 = vmatprep.mubr.f32.mxu0 0.0
      %743 = vmatmul.mubr.f32.gmra.mrb[0].mxu0 %v360
      %v744 = vpop.f32.mrb[0].mxu0
      %v745 = vadd.f32 %v670, %v744
      %v746 = vpop.f32.mrb[0].mxu0
      %747 = vdwg.mxu0
      %v748 = vsel %vm357, %v336, 0
      %v751 = vsel %vm357, %v344, 0
      %753 = vmatprep.subr.mxu0 0.0
      %754 = vmatpush1.msra.mxu0 %v353
      %755 = vmatprep.subr.mxu0 0.0
      %756 = vmatpush1.msra.mxu0 %v354
      %757 = vmatprep.subr.mxu0 0.0
      %758 = vmatpush1.msra.mxu0 %v355
      %759 = vmatprep.subr.mxu0 0.0
      %760 = vmatpush1.msra.mxu0 %v356
      %761 = vmatprep.subr.mxu0 0.0
      %762 = vmatpush1.msra.mxu0 0.0
      %763 = vmatprep.subr.mxu0 0.0
      %764 = vmatpush1.msra.mxu0 0.0
      %765 = vmatprep.subr.mxu0 0.0
      %766 = vmatpush1.msra.mxu0 0.0
      %767 = vmatprep.subr.mxu0 0.0
      %768 = vmatpush1.msra.mxu0 0.0
      %769 = vmatprep.subr.mxu0 0.0
      %770 = vmatpush1.msra.mxu0 0.0
      %771 = vmatprep.subr.mxu0 0.0
      %772 = vmatpush1.msra.mxu0 0.0
      %773 = vmatprep.subr.mxu0 0.0
      %774 = vmatpush1.msra.mxu0 0.0
      %775 = vmatprep.subr.mxu0 0.0
      %776 = vmatpush1.msra.mxu0 0.0
      %777 = vmatprep.subr.mxu0 0.0
      %778 = vmatpush1.msra.mxu0 0.0
      %779 = vmatprep.subr.mxu0 0.0
      %780 = vmatpush1.msra.mxu0 0.0
      %781 = vmatprep.subr.mxu0 0.0
      %782 = vmatpush1.msra.mxu0 0.0
      %783 = vmatprep.subr.mxu0 0.0
      %784 = vmatpush1.msra.mxu0 0.0
      %785 = vmatprep.subr.mxu0 0.0
      %786 = vmatpush1.msra.mxu0 0.0
      %787 = vmatprep.subr.mxu0 0.0
      %788 = vmatpush1.msra.mxu0 0.0
      %789 = vmatprep.subr.mxu0 0.0
      %790 = vmatpush1.msra.mxu0 0.0
      %791 = vmatprep.subr.mxu0 0.0
      %792 = vmatpush1.msra.mxu0 0.0
      %793 = vmatprep.subr.mxu0 0.0
      %794 = vmatpush1.msra.mxu0 0.0
      %795 = vmatprep.subr.mxu0 0.0
      %796 = vmatpush1.msra.mxu0 0.0
      %797 = vmatprep.subr.mxu0 0.0
      %798 = vmatpush1.msra.mxu0 0.0
      %799 = vmatprep.subr.mxu0 0.0
      %800 = vmatpush1.msra.mxu0 0.0
      %801 = vmatprep.subr.mxu0 0.0
      %802 = vmatpush1.msra.mxu0 0.0
      %803 = vmatprep.subr.mxu0 0.0
      %804 = vmatpush1.msra.mxu0 0.0
      %805 = vmatprep.subr.mxu0 0.0
      %806 = vmatpush1.msra.mxu0 0.0
      %807 = vmatprep.subr.mxu0 0.0
      %808 = vmatpush1.msra.mxu0 0.0
      %809 = vmatprep.subr.mxu0 0.0
      %810 = vmatpush1.msra.mxu0 0.0
      %811 = vmatprep.subr.mxu0 0.0
      %812 = vmatpush1.msra.mxu0 0.0
      %813 = vmatprep.subr.mxu0 0.0
      %814 = vmatpush1.msra.mxu0 0.0
      %815 = vmatprep.subr.mxu0 0.0
      %816 = vmatpush1.msra.mxu0 0.0
      %817 = vmatprep.mubr.f32.mxu0 0.0
      %818 = vmatmul.mubr.f32.gmra.mrb[0].mxu0 %v748
      %v819 = vpop.f32.mrb[0].mxu0
      %v820 = vadd.f32 0.0, %v819
      %v821 = vpop.f32.mrb[0].mxu0
      %822 = vmatprep.mubr.f32.mxu0 0.0
      %823 = vmatmul.mubr.f32.gmra.mrb[0].mxu0 %v751
      %v824 = vpop.f32.mrb[0].mxu0
      %v825 = vadd.f32 0.0, %v824
      %v826 = vpop.f32.mrb[0].mxu0
      %827 = vdwg.mxu0
      %v828 = vadd.f32 %v740, %v820
      %v829 = vadd.f32 %v745, %v825
      %v830 = vmax.f32 %v596, %v828
      %v831 = vmax.f32 %v597, %v829
      %v832 = vld [vmem:[%s4] sm:$0x1]
      %v834 = vlaneseq
      %v835 = vshrl.u32 %v834, 7
      %v836 = vsub.s32 0, %v835
      %v837 = vrot.slane %v832, %v836
      %v839 = vadd.f32 %v830, %v837
      %v840 = vadd.f32 %v831, %v837
      %v841 = vmax.f32 %v839, 0.0
      %v842 = vmax.f32 %v840, 0.0
      %s843 = smul.u32 %s21, 16
      %v844 = vlaneseq
      %v845 = vshrl.u32 %v844, 7
      %v846 = vadd.s32 %v845, 8
      %v847 = vstv %s843
      %v848 = vadd.s32 %v847, %v845
      %v849 = vadd.s32 %v847, %v846
      %vm850 = vcmp.lt.s32.totalorder %v848, 15
      %vm851 = vcmp.lt.s32.totalorder %v849, 15
      %v852 = vsel %vm850, %v841, 0.0
      %v853 = vsel %vm851, %v842, 0.0
      %vm854 = vcmask 523264
      %855 = vst.msk [vmem:[%s312] sm:$0xff] %vm854, %v852
      %856 = vst.msk [vmem:[%s312 + $0x8] sm:$0xff] %vm854, %v853
      %s857 = smul.u32 2, %s21
      %p858 = scmp.lt.s32.totalorder %s20, 1
      %s859 = scalar_select %p858, %s20, 1
      %p860 = scmp.lt.s32.totalorder %s857, 1
      %s861 = scalar_select %p860, %s857, 1
      %s862 = smul.addr %s859, 2
      %s863 = sadd.s32 %s861, %s862
      %s864 = smul.addr %s863, 8
      %s865 = scalar_lea.vmem %s5, %s864
      // Predicated region
      $region41: #{cnn_forward.5} parent=39 // pred_check
        %p866 = pneg %p174
      $region42: #{cnn_forward.5} parent=39 // pred_check_branch
        %868 = sbr.rel (%p866) target = $region44
      $region43: #{cnn_forward.5} parent=39 // pred_region
        %s869 = smul.u32 2, %s21
      $region44: #{cnn_forward.5} parent=39 // pred_fallthru
        _
    $region40: #{cnn_forward.5} parent=5 // pred_fallthru
      _
    %p870 = scmp.le.s32.totalorder 2, %s11
    // Predicated region
    $region45: #{cnn_forward.5} parent=5 // pred_check
      %p871 = pneg %p870
    $region46: #{cnn_forward.5} parent=5 // pred_check_branch
      %873 = sbr.rel (%p871) target = $region48
    $region47: #{cnn_forward.5} parent=5 // pred_region
      %s874 = ssub.s32 %s11, 2
      // Predicated region
      $region49: #{cnn_forward.5} parent=47 // pred_check
        %p875 = pneg %p180
      $region50: #{cnn_forward.5} parent=47 // pred_check_branch
        %877 = sbr.rel (%p875) target = $region52
      $region51: #{cnn_forward.5} parent=47 // pred_region
        %s878 = smul.u32 2, %s23
        %p879 = scmp.lt.s32.totalorder %s22, 1
        %s880 = scalar_select %p879, %s22, 1
        %p881 = scmp.lt.s32.totalorder %s878, 1
        %s882 = scalar_select %p881, %s878, 1
        %s883 = smul.addr %s880, 2
        %s884 = sadd.s32 %s882, %s883
        %s885 = smul.addr %s884, 8
        %s886 = scalar_lea.vmem %s5, %s885
      $region52: #{cnn_forward.5} parent=47 // pred_fallthru
        _
    $region48: #{cnn_forward.5} parent=5 // pred_fallthru
      _
  $region6: #{cnn_forward.5} parent=0 // loop_footer
    %s15 = sadd.s32 1, %s11
  $region7: #{cnn_forward.5} parent=0 // loop_footer_branch
    %10 = sbr.rel target = $region3
  $region8: #{cnn_forward.5} parent=0 // loop_exit
    _

// kernel: cnn_forward.7
$region0: #{cnn_forward.7}
  #allocation0 [shape = 'u32[]', space=smem, size = 0x4, offset = 0x4, fixed_abs, tag = 'smem constant byte address 0x4 - core index']
  #allocation1 [shape = 'u32[144,128]{1,0:T(1,128)}', space=vmem, size = 0x12000, scoped, tag = 'internal scratch']
  #allocation2 [shape = 'f32[2,128]{1,0:T(2,128)}', space=vmem, size = 0x400, scoped, tag = 'scratch operand']
  %s0 = inlined_call_operand.vmem [shape: bf16[2,1024], index: 0, kind: input, shape index: {}]
  %s1 = inlined_call_operand.vmem [shape: bf16[1024,256], index: 1, kind: input, shape index: {}]
  %s2 = inlined_call_operand.vmem [shape: f32[1,256], index: 2, kind: input, shape index: {}]
  %s3 = inlined_call_operand.vmem [shape: f32[256,5], index: 3, kind: input, shape index: {}]
  %s4 = inlined_call_operand.vmem [shape: f32[1,5], index: 4, kind: input, shape index: {}]
  %s5 = inlined_call_operand.vmem [shape: f32[2,2,5], index: 5, kind: output, shape index: {}]
  %s6 = sld [smem:[#allocation0]]
  $region102: #{cnn_forward.7} parent=0
    _
  %s8 = ssub.s32 1, %s6
  %s9 = scalar_select 0, %s8, %s6
  $region1: #{cnn_forward.7} parent=0
    #allocation3 [shape = 'u8[131072]{0}', space=vmem, size = 0x20000, scoped, tag = 'input window, operand 1']
    loop: start=0, step=1, limit=10
    $region2: #{cnn_forward.7} parent=1 // loop_pre_header
      _
    $region3: #{cnn_forward.7} parent=1 // loop_header
      %s11 = sphi 0, %s15
      %p12 = scmp.ge.s32.totalorder %s11, 10
      %s18 = sphi 0, %s30
      %s19 = sphi 0, %s26
      %s20 = sphi 0, %s18
      %s21 = sphi 0, %s19
      %s22 = sphi 0, %s20
      %s23 = sphi 0, %s21
      %s33 = sphi 0, %s35
      %s36 = sphi 0, %s33
      %s37 = sphi 0, %s36
      %s53 = sphi 0, %s37
      %s61 = sphi 0, %s63
      %s64 = sphi 0, %s61
      %s65 = sphi 0, %s64
      %s81 = sphi 0, %s65
      %s87 = sphi 0, %s89
      %s90 = sphi 0, %s87
      %s91 = sphi 0, %s90
      %s107 = sphi 0, %s91
      %s113 = sphi 0, %s115
      %s116 = sphi 0, %s113
      %s117 = sphi 0, %s116
      %s133 = sphi 0, %s117
      %s137 = sphi 0, %s137
      %s139 = sphi 0, %s137
      %s140 = sphi 0, %s139
      %s154 = sphi 0, %s140
      %s160 = sphi 0, %s162
      %s163 = sphi 0, %s160
      %s164 = sphi 0, %s163
      %s180 = sphi 0, %s164
    $region4: #{cnn_forward.7} parent=1 // loop_header_branch
      %14 = sbr.rel (%p12) target = $region8
    $region5: #{cnn_forward.7} parent=1 // loop_body
      %s16 = ssub.s32 %s11, 1
      %s17 = ssub.s32 %s11, 2
      %s24 = sadd.s32 1, %s19
      %p25 = scmp.ge.s32.totalorder %s24, 4
      %s26 = scalar_select %p25, 0, %s24
      %s27 = sadd.s32 1, %s18
      %s28 = scalar_select %p25, %s27, %s18
      %p29 = scmp.ge.s32.totalorder %s28, 2
      %s30 = scalar_select %p29, 0, %s28
      %s31 = ssub.s32 %s19, %s26
      %p32 = scmp.eq.s32.totalorder %s31, 0
      %s34 = sadd.s32 %s33, 1
      %s35 = scalar_select %p32, %s33, %s34
      %p38 = pneg %p32
      %p39 = scmp.eq.s32.totalorder %s11, 7
      %p40 = por %p38, %p39
      %p41 = scmp.ne.s32.totalorder %s33, %s36
      %p42 = scmp.eq.s32.totalorder %s11, 0
      %p43 = por %p41, %p42
      %p44 = scmp.ne.s32.totalorder %s33, %s36
      %p45 = scmp.eq.s32.totalorder %s16, 7
      %p46 = por %p44, %p45
      %p47 = scmp.ne.s32.totalorder %s36, %s37
      %p48 = scmp.eq.s32.totalorder %s16, 0
      %p49 = por %p47, %p48
      %p50 = scmp.ne.s32.totalorder %s36, %s37
      %p51 = scmp.eq.s32.totalorder %s17, 7
      %p52 = por %p50, %p51
      %p54 = scmp.ne.s32.totalorder %s37, %s53
      %p55 = scmp.eq.s32.totalorder %s17, 0
      %p56 = por %p54, %p55
      %s57 = ssub.s32 %s19, %s26
      %s58 = ssub.s32 %s18, %s30
      %s59 = sor.u32 %s57, %s58
      %p60 = scmp.eq.s32.totalorder %s59, 0
      %s62 = sadd.s32 %s61, 1
      %s63 = scalar_select %p60, %s61, %s62
      %p66 = pneg %p60
      %p67 = scmp.eq.s32.totalorder %s11, 7
      %p68 = por %p66, %p67
      %p69 = scmp.ne.s32.totalorder %s61, %s64
      %p70 = scmp.eq.s32.totalorder %s11, 0
      %p71 = por %p69, %p70
      %p72 = scmp.ne.s32.totalorder %s61, %s64
      %p73 = scmp.eq.s32.totalorder %s16, 7
      %p74 = por %p72, %p73
      %p75 = scmp.ne.s32.totalorder %s64, %s65
      %p76 = scmp.eq.s32.totalorder %s16, 0
      %p77 = por %p75, %p76
      %p78 = scmp.ne.s32.totalorder %s64, %s65
      %p79 = scmp.eq.s32.totalorder %s17, 7
      %p80 = por %p78, %p79
      %p82 = scmp.ne.s32.totalorder %s65, %s81
      %p83 = scmp.eq.s32.totalorder %s17, 0
      %p84 = por %p82, %p83
      %s85 = ssub.s32 %s18, %s30
      %p86 = scmp.eq.s32.totalorder %s85, 0
      %s88 = sadd.s32 %s87, 1
      %s89 = scalar_select %p86, %s87, %s88
      %p92 = pneg %p86
      %p93 = scmp.eq.s32.totalorder %s11, 7
      %p94 = por %p92, %p93
      %p95 = scmp.ne.s32.totalorder %s87, %s90
      %p96 = scmp.eq.s32.totalorder %s11, 0
      %p97 = por %p95, %p96
      %p98 = scmp.ne.s32.totalorder %s87, %s90
      %p99 = scmp.eq.s32.totalorder %s16, 7
      %p100 = por %p98, %p99
      %p101 = scmp.ne.s32.totalorder %s90, %s91
      %p102 = scmp.eq.s32.totalorder %s16, 0
      %p103 = por %p101, %p102
      %p104 = scmp.ne.s32.totalorder %s90, %s91
      %p105 = scmp.eq.s32.totalorder %s17, 7
      %p106 = por %p104, %p105
      %p108 = scmp.ne.s32.totalorder %s91, %s107
      %p109 = scmp.eq.s32.totalorder %s17, 0
      %p110 = por %p108, %p109
      %s111 = ssub.s32 %s18, %s30
      %p112 = scmp.eq.s32.totalorder %s111, 0
      %s114 = sadd.s32 %s113, 1
      %s115 = scalar_select %p112, %s113, %s114
      %p118 = pneg %p112
      %p119 = scmp.eq.s32.totalorder %s11, 7
      %p120 = por %p118, %p119
      %p121 = scmp.ne.s32.totalorder %s113, %s116
      %p122 = scmp.eq.s32.totalorder %s11, 0
      %p123 = por %p121, %p122
      %p124 = scmp.ne.s32.totalorder %s113, %s116
      %p125 = scmp.eq.s32.totalorder %s16, 7
      %p126 = por %p124, %p125
      %p127 = scmp.ne.s32.totalorder %s116, %s117
      %p128 = scmp.eq.s32.totalorder %s16, 0
      %p129 = por %p127, %p128
      %p130 = scmp.ne.s32.totalorder %s116, %s117
      %p131 = scmp.eq.s32.totalorder %s17, 7
      %p132 = por %p130, %p131
      %p134 = scmp.ne.s32.totalorder %s117, %s133
      %p135 = scmp.eq.s32.totalorder %s17, 0
      %p136 = por %p134, %p135
      %s138 = sadd.s32 %s137, 1
      %p141 = scmp.eq.s32.totalorder %s11, 7
      %p142 = scmp.ne.s32.totalorder %s137, %s139
      %p143 = scmp.eq.s32.totalorder %s11, 0
      %p144 = por %p142, %p143
      %p145 = scmp.ne.s32.totalorder %s137, %s139
      %p146 = scmp.eq.s32.totalorder %s16, 7
      %p147 = por %p145, %p146
      %p148 = scmp.ne.s32.totalorder %s139, %s140
      %p149 = scmp.eq.s32.totalorder %s16, 0
      %p150 = por %p148, %p149
      %p151 = scmp.ne.s32.totalorder %s139, %s140
      %p152 = scmp.eq.s32.totalorder %s17, 7
      %p153 = por %p151, %p152
      %p155 = scmp.ne.s32.totalorder %s140, %s154
      %p156 = scmp.eq.s32.totalorder %s17, 0
      %p157 = por %p155, %p156
      %s158 = ssub.s32 %s18, %s30
      %p159 = scmp.eq.s32.totalorder %s158, 0
      %s161 = sadd.s32 %s160, 1
      %s162 = scalar_select %p159, %s160, %s161
      %p165 = pneg %p159
      %p166 = scmp.eq.s32.totalorder %s11, 7
      %p167 = por %p165, %p166
      %p168 = scmp.ne.s32.totalorder %s160, %s163
      %p169 = scmp.eq.s32.totalorder %s11, 0
      %p170 = por %p168, %p169
      %p171 = scmp.ne.s32.totalorder %s160, %s163
      %p172 = scmp.eq.s32.totalorder %s16, 7
      %p173 = por %p171, %p172
      %p174 = scmp.ne.s32.totalorder %s163, %s164
      %p175 = scmp.eq.s32.totalorder %s16, 0
      %p176 = por %p174, %p175
      %p177 = scmp.ne.s32.totalorder %s163, %s164
      %p178 = scmp.eq.s32.totalorder %s17, 7
      %p179 = por %p177, %p178
      %p181 = scmp.ne.s32.totalorder %s164, %s180
      %p182 = scmp.eq.s32.totalorder %s17, 0
      %p183 = por %p181, %p182
      %p184 = scmp.le.s32.totalorder 1, %s11
      %p185 = scmp.lt.s32.totalorder %s11, 9
      %p186 = pnand %p184, %p185
      %p187 = pneg %p186
      // Predicated region
      $region9: #{cnn_forward.7} parent=5 // pred_check
        _
      $region10: #{cnn_forward.7} parent=5 // pred_check_branch
        %189 = sbr.rel (%p186) target = $region12
      $region11: #{cnn_forward.7} parent=5 // pred_region
        %s190 = ssub.s32 %s11, 1
        // Predicated region
        $region13: #{cnn_forward.7} parent=11 // pred_check
          %p191 = pneg %p150
        $region14: #{cnn_forward.7} parent=11 // pred_check_branch
          %193 = sbr.rel (%p191) target = $region16
        $region15: #{cnn_forward.7} parent=11 // pred_region
          _
        $region16: #{cnn_forward.7} parent=11 // pred_fallthru
          _
      $region12: #{cnn_forward.7} parent=5 // pred_fallthru
        _
      %p194 = scmp.lt.s32.totalorder %s11, 8
      // Predicated region
      $region17: #{cnn_forward.7} parent=5 // pred_check
        %p195 = pneg %p194
      $region18: #{cnn_forward.7} parent=5 // pred_check_branch
        %197 = sbr.rel (%p195) target = $region20
      $region19: #{cnn_forward.7} parent=5 // pred_region
        // Predicated region
        $region21: #{cnn_forward.7} parent=19 // pred_check
          %p198 = pneg %p43
        $region22: #{cnn_forward.7} parent=19 // pred_check_branch
          %200 = sbr.rel (%p198) target = $region24
        $region23: #{cnn_forward.7} parent=19 // pred_region
          %s201 = smul.u32 2, %s19
          %p202 = scmp.lt.s32.totalorder %s201, 7
          %s203 = scalar_select %p202, %s201, 7
          %s204 = scalar_lea.vmem %s0, %s203
          %s205 = smul.u32 2, %s19
        $region24: #{cnn_forward.7} parent=19 // pred_fallthru
          _
        // Predicated region
        $region25: #{cnn_forward.7} parent=19 // pred_check
          %p206 = pneg %p71
        $region26: #{cnn_forward.7} parent=19 // pred_check_branch
          %208 = sbr.rel (%p206) target = $region28
        $region27: #{cnn_forward.7} parent=19 // pred_region
          %s209 = sand.u32 %s61, 1
          %s210 = sand.u32 %s61, 1
          %s211 = smul.addr %s210, 128
          %s212 = scalar_lea.vmem [#allocation3], %s211
          %s213 = smul.u32 32, %s19
          %s214 = smul.addr %s213, 2
          %s215 = sadd.s32 %s18, %s214
          %s216 = smul.addr %s215, 4
          %s217 = scalar_lea.vmem %s1, %s216
          // Predicated region
          $region29: #{cnn_forward.7} parent=27 // pred_check
            _
          $region30: #{cnn_forward.7} parent=27 // pred_check_branch
            %219 = sbr.rel (0) target = $region32
          $region31: #{cnn_forward.7} parent=27 // pred_region
            // Predicated region
            $region33: #{cnn_forward.7} parent=31 // pred_check
              _
            $region34: #{cnn_forward.7} parent=31 // pred_check_branch
              %221 = sbr.rel target = $region36
            $region35: #{cnn_forward.7} parent=31 // pred_region
              // Predicated region
              $region48: #{cnn_forward.7} parent=35 // pred_check
                _
              $region49: #{cnn_forward.7} parent=35 // pred_check_branch
                %298 = sbr.rel (0) target = $region51
              $region50: #{cnn_forward.7} parent=35 // pred_region
                loop: start=0, step=1, limit=1
                $region52: #{cnn_forward.7} parent=50 // loop_pre_header
                  _
                $region53: #{cnn_forward.7} parent=50 // loop_header
                  %s300 = sphi 0, %s304
                  %p301 = scmp.ge.s32.totalorder %s300, 1
                  %s305 = sphi %s217, %s217
                  %s306 = sphi %s212, %s212
                $region54: #{cnn_forward.7} parent=50 // loop_header_branch
                  %303 = sbr.rel (%p301) target = $region58
                $region55: #{cnn_forward.7} parent=50 // loop_body
                  _
                $region56: #{cnn_forward.7} parent=50 // loop_footer
                  %s304 = sadd.s32 1, %s300
                $region57: #{cnn_forward.7} parent=50 // loop_footer_branch
                  %299 = sbr.rel target = $region53
                $region58: #{cnn_forward.7} parent=50 // loop_exit
                  _
                loop: start=0, step=1, limit=1
                $region59: #{cnn_forward.7} parent=50 // loop_pre_header
                  _
                $region60: #{cnn_forward.7} parent=50 // loop_header
                  %s309 = sphi 0, %s313
                  %p310 = scmp.ge.s32.totalorder %s309, 1
                  %s314 = sphi %s217, %s217
                  %s315 = sphi %s212, %s212
                $region61: #{cnn_forward.7} parent=50 // loop_header_branch
                  %312 = sbr.rel (%p310) target = $region65
                $region62: #{cnn_forward.7} parent=50 // loop_body
                  %v316 = vld [vmem:[%s314] sm:$0xf]
                  %317 = vst [vmem:[%s315] sm:$0xf] %v316
                  %v318 = vld [vmem:[%s314 + $0x8] sm:$0xf]
                  %319 = vst [vmem:[%s315 + $0x4] sm:$0xf] %v318
                  %v320 = vld [vmem:[%s314 + $0x10] sm:$0xf]
                  %321 = vst [vmem:[%s315 + $0x8] sm:$0xf] %v320
                  %v322 = vld [vmem:[%s314 + $0x18] sm:$0xf]
                  %323 = vst [vmem:[%s315 + $0xc] sm:$0xf] %v322
                  %v324 = vld [vmem:[%s314 + $0x20] sm:$0xf]
                  %325 = vst [vmem:[%s315 + $0x10] sm:$0xf] %v324
                  %v326 = vld [vmem:[%s314 + $0x28] sm:$0xf]
                  %327 = vst [vmem:[%s315 + $0x14] sm:$0xf] %v326
                  %v328 = vld [vmem:[%s314 + $0x30] sm:$0xf]
                  %329 = vst [vmem:[%s315 + $0x18] sm:$0xf] %v328
                  %v330 = vld [vmem:[%s314 + $0x38] sm:$0xf]
                  %331 = vst [vmem:[%s315 + $0x1c] sm:$0xf] %v330
                  %v332 = vld [vmem:[%s314 + $0x40] sm:$0xf]
                  %333 = vst [vmem:[%s315 + $0x20] sm:$0xf] %v332
                  %v334 = vld [vmem:[%s314 + $0x48] sm:$0xf]
                  %335 = vst [vmem:[%s315 + $0x24] sm:$0xf] %v334
                  %v336 = vld [vmem:[%s314 + $0x50] sm:$0xf]
                  %337 = vst [vmem:[%s315 + $0x28] sm:$0xf] %v336
                  %v338 = vld [vmem:[%s314 + $0x58] sm:$0xf]
                  %339 = vst [vmem:[%s315 + $0x2c] sm:$0xf] %v338
                  %v340 = vld [vmem:[%s314 + $0x60] sm:$0xf]
                  %341 = vst [vmem:[%s315 + $0x30] sm:$0xf] %v340
                  %v342 = vld [vmem:[%s314 + $0x68] sm:$0xf]
                  %343 = vst [vmem:[%s315 + $0x34] sm:$0xf] %v342
                  %v344 = vld [vmem:[%s314 + $0x70] sm:$0xf]
                  %345 = vst [vmem:[%s315 + $0x38] sm:$0xf] %v344
                  %v346 = vld [vmem:[%s314 + $0x78] sm:$0xf]
                  %347 = vst [vmem:[%s315 + $0x3c] sm:$0xf] %v346
                  %v348 = vld [vmem:[%s314 + $0x80] sm:$0xf]
                  %349 = vst [vmem:[%s315 + $0x40] sm:$0xf] %v348
                  %v350 = vld [vmem:[%s314 + $0x88] sm:$0xf]
                  %351 = vst [vmem:[%s315 + $0x44] sm:$0xf] %v350
                  %v352 = vld [vmem:[%s314 + $0x90] sm:$0xf]
                  %353 = vst [vmem:[%s315 + $0x48] sm:$0xf] %v352
                  %v354 = vld [vmem:[%s314 + $0x98] sm:$0xf]
                  %355 = vst [vmem:[%s315 + $0x4c] sm:$0xf] %v354
                  %v356 = vld [vmem:[%s314 + $0xa0] sm:$0xf]
                  %357 = vst [vmem:[%s315 + $0x50] sm:$0xf] %v356
                  %v358 = vld [vmem:[%s314 + $0xa8] sm:$0xf]
                  %359 = vst [vmem:[%s315 + $0x54] sm:$0xf] %v358
                  %v360 = vld [vmem:[%s314 + $0xb0] sm:$0xf]
                  %361 = vst [vmem:[%s315 + $0x58] sm:$0xf] %v360
                  %v362 = vld [vmem:[%s314 + $0xb8] sm:$0xf]
                  %363 = vst [vmem:[%s315 + $0x5c] sm:$0xf] %v362
                  %v364 = vld [vmem:[%s314 + $0xc0] sm:$0xf]
                  %365 = vst [vmem:[%s315 + $0x60] sm:$0xf] %v364
                  %v366 = vld [vmem:[%s314 + $0xc8] sm:$0xf]
                  %367 = vst [vmem:[%s315 + $0x64] sm:$0xf] %v366
                  %v368 = vld [vmem:[%s314 + $0xd0] sm:$0xf]
                  %369 = vst [vmem:[%s315 + $0x68] sm:$0xf] %v368
                  %v370 = vld [vmem:[%s314 + $0xd8] sm:$0xf]
                  %371 = vst [vmem:[%s315 + $0x6c] sm:$0xf] %v370
                  %v372 = vld [vmem:[%s314 + $0xe0] sm:$0xf]
                  %373 = vst [vmem:[%s315 + $0x70] sm:$0xf] %v372
                  %v374 = vld [vmem:[%s314 + $0xe8] sm:$0xf]
                  %375 = vst [vmem:[%s315 + $0x74] sm:$0xf] %v374
                  %v376 = vld [vmem:[%s314 + $0xf0] sm:$0xf]
                  %377 = vst [vmem:[%s315 + $0x78] sm:$0xf] %v376
                  %v378 = vld [vmem:[%s314 + $0xf8] sm:$0xf]
                  %379 = vst [vmem:[%s315 + $0x7c] sm:$0xf] %v378
                $region63: #{cnn_forward.7} parent=50 // loop_footer
                  %s313 = sadd.s32 1, %s309
                $region64: #{cnn_forward.7} parent=50 // loop_footer_branch
                  %308 = sbr.rel target = $region60
                $region65: #{cnn_forward.7} parent=50 // loop_exit
                  _
              $region51: #{cnn_forward.7} parent=35 // pred_fallthru
                _
            $region36: #{cnn_forward.7} parent=31 // pred_fallthru
              _
            // Predicated region
            $region37: #{cnn_forward.7} parent=31 // pred_check
              _
            $region38: #{cnn_forward.7} parent=31 // pred_check_branch
              %223 = sbr.rel (0) target = $region40
            $region39: #{cnn_forward.7} parent=31 // pred_region
              loop: start=0, step=1, limit=1
              $region41: #{cnn_forward.7} parent=39 // loop_pre_header
                _
              $region42: #{cnn_forward.7} parent=39 // loop_header
                %s226 = sphi 0, %s230
                %p227 = scmp.ge.s32.totalorder %s226, 1
                %s231 = sphi %s217, %s217
                %s232 = sphi %s212, %s212
              $region43: #{cnn_forward.7} parent=39 // loop_header_branch
                %229 = sbr.rel (%p227) target = $region47
              $region44: #{cnn_forward.7} parent=39 // loop_body
                %v233 = vld [vmem:[%s231] sm:$0xf]
                %234 = vst [vmem:[%s232] sm:$0xf] %v233
                %v235 = vld [vmem:[%s231 + $0x8] sm:$0xf]
                %236 = vst [vmem:[%s232 + $0x4] sm:$0xf] %v235
                %v237 = vld [vmem:[%s231 + $0x10] sm:$0xf]
                %238 = vst [vmem:[%s232 + $0x8] sm:$0xf] %v237
                %v239 = vld [vmem:[%s231 + $0x18] sm:$0xf]
                %240 = vst [vmem:[%s232 + $0xc] sm:$0xf] %v239
                %v241 = vld [vmem:[%s231 + $0x20] sm:$0xf]
                %242 = vst [vmem:[%s232 + $0x10] sm:$0xf] %v241
                %v243 = vld [vmem:[%s231 + $0x28] sm:$0xf]
                %244 = vst [vmem:[%s232 + $0x14] sm:$0xf] %v243
                %v245 = vld [vmem:[%s231 + $0x30] sm:$0xf]
                %246 = vst [vmem:[%s232 + $0x18] sm:$0xf] %v245
                %v247 = vld [vmem:[%s231 + $0x38] sm:$0xf]
                %248 = vst [vmem:[%s232 + $0x1c] sm:$0xf] %v247
                %v249 = vld [vmem:[%s231 + $0x40] sm:$0xf]
                %250 = vst [vmem:[%s232 + $0x20] sm:$0xf] %v249
                %v251 = vld [vmem:[%s231 + $0x48] sm:$0xf]
                %252 = vst [vmem:[%s232 + $0x24] sm:$0xf] %v251
                %v253 = vld [vmem:[%s231 + $0x50] sm:$0xf]
                %254 = vst [vmem:[%s232 + $0x28] sm:$0xf] %v253
                %v255 = vld [vmem:[%s231 + $0x58] sm:$0xf]
                %256 = vst [vmem:[%s232 + $0x2c] sm:$0xf] %v255
                %v257 = vld [vmem:[%s231 + $0x60] sm:$0xf]
                %258 = vst [vmem:[%s232 + $0x30] sm:$0xf] %v257
                %v259 = vld [vmem:[%s231 + $0x68] sm:$0xf]
                %260 = vst [vmem:[%s232 + $0x34] sm:$0xf] %v259
                %v261 = vld [vmem:[%s231 + $0x70] sm:$0xf]
                %262 = vst [vmem:[%s232 + $0x38] sm:$0xf] %v261
                %v263 = vld [vmem:[%s231 + $0x78] sm:$0xf]
                %264 = vst [vmem:[%s232 + $0x3c] sm:$0xf] %v263
                %v265 = vld [vmem:[%s231 + $0x80] sm:$0xf]
                %266 = vst [vmem:[%s232 + $0x40] sm:$0xf] %v265
                %v267 = vld [vmem:[%s231 + $0x88] sm:$0xf]
                %268 = vst [vmem:[%s232 + $0x44] sm:$0xf] %v267
                %v269 = vld [vmem:[%s231 + $0x90] sm:$0xf]
                %270 = vst [vmem:[%s232 + $0x48] sm:$0xf] %v269
                %v271 = vld [vmem:[%s231 + $0x98] sm:$0xf]
                %272 = vst [vmem:[%s232 + $0x4c] sm:$0xf] %v271
                %v273 = vld [vmem:[%s231 + $0xa0] sm:$0xf]
                %274 = vst [vmem:[%s232 + $0x50] sm:$0xf] %v273
                %v275 = vld [vmem:[%s231 + $0xa8] sm:$0xf]
                %276 = vst [vmem:[%s232 + $0x54] sm:$0xf] %v275
                %v277 = vld [vmem:[%s231 + $0xb0] sm:$0xf]
                %278 = vst [vmem:[%s232 + $0x58] sm:$0xf] %v277
                %v279 = vld [vmem:[%s231 + $0xb8] sm:$0xf]
                %280 = vst [vmem:[%s232 + $0x5c] sm:$0xf] %v279
                %v281 = vld [vmem:[%s231 + $0xc0] sm:$0xf]
                %282 = vst [vmem:[%s232 + $0x60] sm:$0xf] %v281
                %v283 = vld [vmem:[%s231 + $0xc8] sm:$0xf]
                %284 = vst [vmem:[%s232 + $0x64] sm:$0xf] %v283
                %v285 = vld [vmem:[%s231 + $0xd0] sm:$0xf]
                %286 = vst [vmem:[%s232 + $0x68] sm:$0xf] %v285
                %v287 = vld [vmem:[%s231 + $0xd8] sm:$0xf]
                %288 = vst [vmem:[%s232 + $0x6c] sm:$0xf] %v287
                %v289 = vld [vmem:[%s231 + $0xe0] sm:$0xf]
                %290 = vst [vmem:[%s232 + $0x70] sm:$0xf] %v289
                %v291 = vld [vmem:[%s231 + $0xe8] sm:$0xf]
                %292 = vst [vmem:[%s232 + $0x74] sm:$0xf] %v291
                %v293 = vld [vmem:[%s231 + $0xf0] sm:$0xf]
                %294 = vst [vmem:[%s232 + $0x78] sm:$0xf] %v293
                %v295 = vld [vmem:[%s231 + $0xf8] sm:$0xf]
                %296 = vst [vmem:[%s232 + $0x7c] sm:$0xf] %v295
              $region45: #{cnn_forward.7} parent=39 // loop_footer
                %s230 = sadd.s32 1, %s226
              $region46: #{cnn_forward.7} parent=39 // loop_footer_branch
                %225 = sbr.rel target = $region42
              $region47: #{cnn_forward.7} parent=39 // loop_exit
                _
            $region40: #{cnn_forward.7} parent=31 // pred_fallthru
              _
          $region32: #{cnn_forward.7} parent=27 // pred_fallthru
            _
          %380 = vnop
        $region28: #{cnn_forward.7} parent=19 // pred_fallthru
          _
        // Predicated region
        $region66: #{cnn_forward.7} parent=19 // pred_check
          %p381 = pneg %p97
        $region67: #{cnn_forward.7} parent=19 // pred_check_branch
          %383 = sbr.rel (%p381) target = $region69
        $region68: #{cnn_forward.7} parent=19 // pred_region
          %p384 = scmp.lt.s32.totalorder %s18, 1
          %s385 = scalar_select %p384, %s18, 1
          %s386 = scalar_lea.vmem %s2, %s385
        $region69: #{cnn_forward.7} parent=19 // pred_fallthru
          _
        // Predicated region
        $region70: #{cnn_forward.7} parent=19 // pred_check
          %p387 = pneg %p123
        $region71: #{cnn_forward.7} parent=19 // pred_check_branch
          %389 = sbr.rel (%p387) target = $region73
        $region72: #{cnn_forward.7} parent=19 // pred_region
          %s390 = smul.u32 16, %s18
          %p391 = scmp.lt.s32.totalorder %s390, 31
          %s392 = scalar_select %p391, %s390, 31
          %s393 = smul.addr %s392, 8
          %s394 = scalar_lea.vmem %s3, %s393
          %s395 = smul.u32 16, %s18
        $region73: #{cnn_forward.7} parent=19 // pred_fallthru
          _
      $region20: #{cnn_forward.7} parent=5 // pred_fallthru
        _
      %p396 = scmp.le.s32.totalorder 1, %s11
      %p397 = scmp.lt.s32.totalorder %s11, 9
      %p398 = pnand %p396, %p397
      %p399 = pneg %p398
      // Predicated region
      $region74: #{cnn_forward.7} parent=5 // pred_check
        _
      $region75: #{cnn_forward.7} parent=5 // pred_check_branch
        %401 = sbr.rel (%p398) target = $region77
      $region76: #{cnn_forward.7} parent=5 // pred_region
        %s402 = ssub.s32 %s11, 1
        %s403 = sand.u32 %s64, 1
        %s404 = sand.u32 %s64, 1
        %s405 = smul.addr %s404, 128
        %s406 = scalar_lea.vmem [#allocation3], %s405
        // Predicated region
        $region78: #{cnn_forward.7} parent=76 // pred_check
          %p407 = pneg %p77
        $region79: #{cnn_forward.7} parent=76 // pred_check_branch
          %409 = sbr.rel (%p407) target = $region81
        $region80: #{cnn_forward.7} parent=76 // pred_region
          _
        $region81: #{cnn_forward.7} parent=76 // pred_fallthru
          _
        %s410 = smul.u32 2, %s21
        %p411 = scmp.lt.s32.totalorder %s410, 7
        %s412 = scalar_select %p411, %s410, 7
        %s413 = scalar_lea.vmem %s0, %s412
        %p414 = pneg %p49
        %p415 = pneg %p46
        %s416 = sand.u32 %s64, 1
        %s417 = sand.u32 %s64, 1
        %s418 = smul.addr %s417, 128
        %s419 = scalar_lea.vmem [#allocation3], %s418
        %p420 = pneg %p77
        %p421 = pneg %p74
        %p422 = scmp.lt.s32.totalorder %s20, 1
        %s423 = scalar_select %p422, %s20, 1
        %s424 = scalar_lea.vmem %s2, %s423
        %p425 = pneg %p103
        %p426 = pneg %p100
        %s427 = smul.u32 16, %s20
        %p428 = scmp.lt.s32.totalorder %s427, 31
        %s429 = scalar_select %p428, %s427, 31
        %s430 = smul.addr %s429, 8
        %s431 = scalar_lea.vmem %s3, %s430
        %p432 = pneg %p129
        %p433 = pneg %p126
        %p434 = pneg %p150
        %p435 = pneg %p147
        %p436 = pneg %p176
        %p437 = pneg %p173
        %p438 = scmp.lt.s32.totalorder %s20, 1
        %s439 = scalar_select %p438, %s20, 1
        %s440 = smul.addr %s439, 2
        %s441 = scalar_lea.vmem %s5, %s440
        %s442 = smul.u32 2, %s21
        %p443 = scmp.lt.s32.totalorder %s442, 7
        %s444 = scalar_select %p443, %s442, 7
        %s445 = scalar_lea.vmem %s0, %s444
        %s446 = smul.u32 2, %s21
        %s447 = smul.u32 32, %s21
        %p448 = scmp.lt.s32.totalorder %s20, 1
        %s449 = scalar_select %p448, %s20, 1
        %s450 = scalar_lea.vmem %s2, %s449
        %s451 = smul.u32 16, %s20
        %p452 = scmp.lt.s32.totalorder %s451, 31
        %s453 = scalar_select %p452, %s451, 31
        %s454 = smul.addr %s453, 8
        %s455 = scalar_lea.vmem %s3, %s454
        %s456 = smul.u32 16, %s20
        %p457 = scmp.lt.s32.totalorder %s20, 1
        %s458 = scalar_select %p457, %s20, 1
        %s459 = smul.addr %s458, 2
        %s460 = scalar_lea.vmem %s5, %s459
        %p462 = scmp.eq.s32.totalorder %s21, 0
        // Predicated region
        $region82: #{cnn_forward.7} parent=76 // pred_check
          %p463 = pneg %p462
        $region83: #{cnn_forward.7} parent=76 // pred_check_branch
          %465 = sbr.rel (%p463) target = $region85
        $region84: #{cnn_forward.7} parent=76 // pred_region
          %466 = vst [vmem:[#allocation2] sm:$0x3] 0.0
        $region85: #{cnn_forward.7} parent=76 // pred_fallthru
          _
        %v467 = vld [vmem:[#allocation2] sm:$0x3]
        %v468 = vld [vmem:[%s445] sm:$0x3]
        %v469 = vld [vmem:[%s406] sm:$0xf]
        %v470 = vld [vmem:[%s406 + $0x4] sm:$0xf]
        %v471 = vld [vmem:[%s406 + $0x8] sm:$0xf]
        %v472 = vld [vmem:[%s406 + $0xc] sm:$0xf]
        %v473 = vld [vmem:[%s406 + $0x10] sm:$0xf]
        %v474 = vld [vmem:[%s406 + $0x14] sm:$0xf]
        %v475 = vld [vmem:[%s406 + $0x18] sm:$0xf]
        %v476 = vld [vmem:[%s406 + $0x1c] sm:$0xf]
        %v477 = vld [vmem:[%s406 + $0x20] sm:$0xf]
        %v478 = vld [vmem:[%s406 + $0x24] sm:$0xf]
        %v479 = vld [vmem:[%s406 + $0x28] sm:$0xf]
        %v480 = vld [vmem:[%s406 + $0x2c] sm:$0xf]
        %v481 = vld [vmem:[%s406 + $0x30] sm:$0xf]
        %v482 = vld [vmem:[%s406 + $0x34] sm:$0xf]
        %v483 = vld [vmem:[%s406 + $0x38] sm:$0xf]
        %v484 = vld [vmem:[%s406 + $0x3c] sm:$0xf]
        %v485 = vld [vmem:[%s406 + $0x40] sm:$0xf]
        %v486 = vld [vmem:[%s406 + $0x44] sm:$0xf]
        %v487 = vld [vmem:[%s406 + $0x48] sm:$0xf]
        %v488 = vld [vmem:[%s406 + $0x4c] sm:$0xf]
        %v489 = vld [vmem:[%s406 + $0x50] sm:$0xf]
        %v490 = vld [vmem:[%s406 + $0x54] sm:$0xf]
        %v491 = vld [vmem:[%s406 + $0x58] sm:$0xf]
        %v492 = vld [vmem:[%s406 + $0x5c] sm:$0xf]
        %v493 = vld [vmem:[%s406 + $0x60] sm:$0xf]
        %v494 = vld [vmem:[%s406 + $0x64] sm:$0xf]
        %v495 = vld [vmem:[%s406 + $0x68] sm:$0xf]
        %v496 = vld [vmem:[%s406 + $0x6c] sm:$0xf]
        %v497 = vld [vmem:[%s406 + $0x70] sm:$0xf]
        %v498 = vld [vmem:[%s406 + $0x74] sm:$0xf]
        %v499 = vld [vmem:[%s406 + $0x78] sm:$0xf]
        %v500 = vld [vmem:[%s406 + $0x7c] sm:$0xf]
        %v503 = vunpack.c.l.s4 1966171168
        %v504 = vunpack.c.0.s8 %v503
        %v505 = vlaneseq
        %v506 = vshrl.u32 %v505, 7
        %v507 = vsub.s32 %v504, %v506
        %v508 = vrot.slane %v468, %v507
        %v509 = vcombine.high %v508, %v508
        %v511 = vunpack.c.l.s4 1966171168
        %v512 = vunpack.c.0.s8 %v511
        %v513 = vlaneseq
        %v514 = vshrl.u32 %v513, 7
        %v515 = vsub.s32 %v512, %v514
        %v516 = vrot.slane %v508, %v515
        %v518 = vunpack.c.l.s4 1966171168
        %v519 = vunpack.c.0.s8 %v518
        %v520 = vlaneseq
        %v521 = vshrl.u32 %v520, 7
        %v522 = vsub.s32 %v519, %v521
        %v523 = vrot.slane %v509, %v522
        %v558 = vunpack.c.l.b16 %v469
        %v559 = vunpack.c.l.b16 %v470
        %v560 = vunpack.c.l.b16 %v471
        %v561 = vunpack.c.l.b16 %v472
        %v562 = vunpack.c.l.b16 %v473
        %v563 = vunpack.c.l.b16 %v474
        %v564 = vunpack.c.l.b16 %v475
        %v565 = vunpack.c.l.b16 %v476
        %v566 = vunpack.c.l.b16 %v477
        %v567 = vunpack.c.l.b16 %v478
        %v568 = vunpack.c.l.b16 %v479
        %v569 = vunpack.c.l.b16 %v480
        %v570 = vunpack.c.l.b16 %v481
        %v571 = vunpack.c.l.b16 %v482
        %v572 = vunpack.c.l.b16 %v483
        %v573 = vunpack.c.l.b16 %v484
        %v574 = vunpack.c.l.b16 %v485
        %v575 = vunpack.c.l.b16 %v486
        %v576 = vunpack.c.l.b16 %v487
        %v577 = vunpack.c.l.b16 %v488
        %v578 = vunpack.c.l.b16 %v489
        %v579 = vunpack.c.l.b16 %v490
        %v580 = vunpack.c.l.b16 %v491
        %v581 = vunpack.c.l.b16 %v492
        %v582 = vunpack.c.l.b16 %v493
        %v583 = vunpack.c.l.b16 %v494
        %v584 = vunpack.c.l.b16 %v495
        %v585 = vunpack.c.l.b16 %v496
        %v586 = vunpack.c.l.b16 %v497
        %v587 = vunpack.c.l.b16 %v498
        %v588 = vunpack.c.l.b16 %v499
        %v589 = vunpack.c.l.b16 %v500
        %v590 = vpack.c.b16 %v559, %v558
        %v591 = vpack.c.b16 %v561, %v560
        %v592 = vpack.c.b16 %v563, %v562
        %v593 = vpack.c.b16 %v565, %v564
        %v594 = vpack.c.b16 %v567, %v566
        %v595 = vpack.c.b16 %v569, %v568
        %v596 = vpack.c.b16 %v571, %v570
        %v597 = vpack.c.b16 %v573, %v572
        %v598 = vpack.c.b16 %v575, %v574
        %v599 = vpack.c.b16 %v577, %v576
        %v600 = vpack.c.b16 %v579, %v578
        %v601 = vpack.c.b16 %v581, %v580
        %v602 = vpack.c.b16 %v583, %v582
        %v603 = vpack.c.b16 %v585, %v584
        %v604 = vpack.c.b16 %v587, %v586
        %v605 = vpack.c.b16 %v589, %v588
        %622 = vmatprep.subr.bf16.mxu0 0
        %623 = vmatpush1.bf16.msra.mxu0 %v590
        %624 = vmatprep.subr.bf16.mxu0 0
        %625 = vmatpush1.bf16.msra.mxu0 %v591
        %626 = vmatprep.subr.bf16.mxu0 0
        %627 = vmatpush1.bf16.msra.mxu0 %v592
        %628 = vmatprep.subr.bf16.mxu0 0
        %629 = vmatpush1.bf16.msra.mxu0 %v593
        %630 = vmatprep.subr.bf16.mxu0 0
        %631 = vmatpush1.bf16.msra.mxu0 %v594
        %632 = vmatprep.subr.bf16.mxu0 0
        %633 = vmatpush1.bf16.msra.mxu0 %v595
        %634 = vmatprep.subr.bf16.mxu0 0
        %635 = vmatpush1.bf16.msra.mxu0 %v596
        %636 = vmatprep.subr.bf16.mxu0 0
        %637 = vmatpush1.bf16.msra.mxu0 %v597
        %638 = vmatprep.subr.bf16.mxu0 0
        %639 = vmatpush1.bf16.msra.mxu0 %v598
        %640 = vmatprep.subr.bf16.mxu0 0
        %641 = vmatpush1.bf16.msra.mxu0 %v599
        %642 = vmatprep.subr.bf16.mxu0 0
        %643 = vmatpush1.bf16.msra.mxu0 %v600
        %644 = vmatprep.subr.bf16.mxu0 0
        %645 = vmatpush1.bf16.msra.mxu0 %v601
        %646 = vmatprep.subr.bf16.mxu0 0
        %647 = vmatpush1.bf16.msra.mxu0 %v602
        %648 = vmatprep.subr.bf16.mxu0 0
        %649 = vmatpush1.bf16.msra.mxu0 %v603
        %650 = vmatprep.subr.bf16.mxu0 0
        %651 = vmatpush1.bf16.msra.mxu0 %v604
        %652 = vmatprep.subr.bf16.mxu0 0
        %653 = vmatpush1.bf16.msra.mxu0 %v605
        %654 = vmatprep.mubr.bf16.mxu0 %v523
        %655 = vmatmul.mubr.bf16.gmra.mrb[0].mxu0 %v516
        %v656 = vpop.f32.mrb[0].mxu0
        %v657 = vadd.f32 0.0, %v656
        %v658 = vpop.f32.mrb[0].mxu0
        %v659 = vpop.f32.mrb[0].mxu0
        %v660 = vpop.f32.mrb[0].mxu0
        %661 = vdwg.mxu0
        %v662 = vadd.f32 %v467, %v657
        %663 = vst [vmem:[#allocation2] sm:$0x3] %v662
        %p664 = scmp.eq.s32.totalorder %s21, 3
        // Predicated region
        $region86: #{cnn_forward.7} parent=76 // pred_check
          %p665 = pneg %p664
        $region87: #{cnn_forward.7} parent=76 // pred_check_branch
          %667 = sbr.rel (%p665) target = $region89
        $region88: #{cnn_forward.7} parent=76 // pred_region
          %v668 = vld [vmem:[#allocation2] sm:$0x3]
          %v669 = vld [vmem:[%s450] sm:$0x1]
          %v671 = vlaneseq
          %v672 = vshrl.u32 %v671, 7
          %v673 = vsub.s32 0, %v672
          %v674 = vrot.slane %v669, %v673
          %v676 = vadd.f32 %v668, %v674
          %v677 = vmax.f32 %v676, 0.0
          %v678 = vld [vmem:[%s455] sm:$0xff]
          %v679 = vld [vmem:[%s455 + $0x8] sm:$0xff]
          %v680 = vld [vmem:[%s455 + $0x10] sm:$0xff]
          %v681 = vld [vmem:[%s455 + $0x18] sm:$0xff]
          %v682 = vld [vmem:[%s455 + $0x20] sm:$0xff]
          %v683 = vld [vmem:[%s455 + $0x28] sm:$0xff]
          %v684 = vld [vmem:[%s455 + $0x30] sm:$0xff]
          %v685 = vld [vmem:[%s455 + $0x38] sm:$0xff]
          %v686 = vld [vmem:[%s455 + $0x40] sm:$0xff]
          %v687 = vld [vmem:[%s455 + $0x48] sm:$0xff]
          %v688 = vld [vmem:[%s455 + $0x50] sm:$0xff]
          %v689 = vld [vmem:[%s455 + $0x58] sm:$0xff]
          %v690 = vld [vmem:[%s455 + $0x60] sm:$0xff]
          %v691 = vld [vmem:[%s455 + $0x68] sm:$0xff]
          %v692 = vld [vmem:[%s455 + $0x70] sm:$0xff]
          %v693 = vld [vmem:[%s455 + $0x78] sm:$0xff]
          %p694 = scmp.eq.s32.totalorder %s20, 0
          %s695 = scalar_select %p694, 1.0, 0.0
          %v696 = vld [vmem:[%s4] sm:$0x1]
          %v697 = vstv %s695
          %v698 = vmul.f32 %v697, %v696
          %v700 = vlaneseq
          %v701 = vshrl.u32 %v700, 7
          %v702 = vsub.s32 0, %v701
          %v703 = vrot.slane %v698, %v702
          %705 = vmatprep.subr.mxu0 0.0
          %706 = vmatpush1.msra.mxu0 %v678
          %707 = vmatprep.subr.mxu0 0.0
          %708 = vmatpush1.msra.mxu0 %v679
          %709 = vmatprep.subr.mxu0 0.0
          %710 = vmatpush1.msra.mxu0 %v680
          %711 = vmatprep.subr.mxu0 0.0
          %712 = vmatpush1.msra.mxu0 %v681
          %713 = vmatprep.subr.mxu0 0.0
          %714 = vmatpush1.msra.mxu0 %v682
          %715 = vmatprep.subr.mxu0 0.0
          %716 = vmatpush1.msra.mxu0 %v683
          %717 = vmatprep.subr.mxu0 0.0
          %718 = vmatpush1.msra.mxu0 %v684
          %719 = vmatprep.subr.mxu0 0.0
          %720 = vmatpush1.msra.mxu0 %v685
          %721 = vmatprep.subr.mxu0 0.0
          %722 = vmatpush1.msra.mxu0 %v686
          %723 = vmatprep.subr.mxu0 0.0
          %724 = vmatpush1.msra.mxu0 %v687
          %725 = vmatprep.subr.mxu0 0.0
          %726 = vmatpush1.msra.mxu0 %v688
          %727 = vmatprep.subr.mxu0 0.0
          %728 = vmatpush1.msra.mxu0 %v689
          %729 = vmatprep.subr.mxu0 0.0
          %730 = vmatpush1.msra.mxu0 %v690
          %731 = vmatprep.subr.mxu0 0.0
          %732 = vmatpush1.msra.mxu0 %v691
          %733 = vmatprep.subr.mxu0 0.0
          %734 = vmatpush1.msra.mxu0 %v692
          %735 = vmatprep.subr.mxu0 0.0
          %736 = vmatpush1.msra.mxu0 %v693
          %737 = vmatprep.subr.mxu0 0.0
          %738 = vmatpush1.msra.mxu0 0.0
          %739 = vmatprep.subr.mxu0 0.0
          %740 = vmatpush1.msra.mxu0 0.0
          %741 = vmatprep.subr.mxu0 0.0
          %742 = vmatpush1.msra.mxu0 0.0
          %743 = vmatprep.subr.mxu0 0.0
          %744 = vmatpush1.msra.mxu0 0.0
          %745 = vmatprep.subr.mxu0 0.0
          %746 = vmatpush1.msra.mxu0 0.0
          %747 = vmatprep.subr.mxu0 0.0
          %748 = vmatpush1.msra.mxu0 0.0
          %749 = vmatprep.subr.mxu0 0.0
          %750 = vmatpush1.msra.mxu0 0.0
          %751 = vmatprep.subr.mxu0 0.0
          %752 = vmatpush1.msra.mxu0 0.0
          %753 = vmatprep.subr.mxu0 0.0
          %754 = vmatpush1.msra.mxu0 0.0
          %755 = vmatprep.subr.mxu0 0.0
          %756 = vmatpush1.msra.mxu0 0.0
          %757 = vmatprep.subr.mxu0 0.0
          %758 = vmatpush1.msra.mxu0 0.0
          %759 = vmatprep.subr.mxu0 0.0
          %760 = vmatpush1.msra.mxu0 0.0
          %761 = vmatprep.subr.mxu0 0.0
          %762 = vmatpush1.msra.mxu0 0.0
          %763 = vmatprep.subr.mxu0 0.0
          %764 = vmatpush1.msra.mxu0 0.0
          %765 = vmatprep.subr.mxu0 0.0
          %766 = vmatpush1.msra.mxu0 0.0
          %767 = vmatprep.subr.mxu0 0.0
          %768 = vmatpush1.msra.mxu0 0.0
          %769 = vmatprep.mubr.f32.mxu0 0.0
          %770 = vmatmul.mubr.f32.gmra.mrb[0].mxu0 %v677
          %v771 = vpop.f32.mrb[0].mxu0
          %v772 = vadd.f32 %v703, %v771
          %v773 = vpop.f32.mrb[0].mxu0
          %774 = vdwg.mxu0
          %vm775 = vcmask 33792
          %776 = vst.msk [vmem:[%s460] sm:$0x3] %vm775, %v772
        $region89: #{cnn_forward.7} parent=76 // pred_fallthru
          _
        %p777 = scmp.lt.s32.totalorder %s20, 1
        %s778 = scalar_select %p777, %s20, 1
        %s779 = smul.addr %s778, 2
        %s780 = scalar_lea.vmem %s5, %s779
        // Predicated region
        $region90: #{cnn_forward.7} parent=76 // pred_check
          %p781 = pneg %p173
        $region91: #{cnn_forward.7} parent=76 // pred_check_branch
          %783 = sbr.rel (%p781) target = $region93
        $region92: #{cnn_forward.7} parent=76 // pred_region
          _
        $region93: #{cnn_forward.7} parent=76 // pred_fallthru
          _
      $region77: #{cnn_forward.7} parent=5 // pred_fallthru
        _
      %p784 = scmp.le.s32.totalorder 2, %s11
      // Predicated region
      $region94: #{cnn_forward.7} parent=5 // pred_check
        %p785 = pneg %p784
      $region95: #{cnn_forward.7} parent=5 // pred_check_branch
        %787 = sbr.rel (%p785) target = $region97
      $region96: #{cnn_forward.7} parent=5 // pred_region
        %s788 = ssub.s32 %s11, 2
        // Predicated region
        $region98: #{cnn_forward.7} parent=96 // pred_check
          %p789 = pneg %p179
        $region99: #{cnn_forward.7} parent=96 // pred_check_branch
          %791 = sbr.rel (%p789) target = $region101
        $region100: #{cnn_forward.7} parent=96 // pred_region
          %p792 = scmp.lt.s32.totalorder %s22, 1
          %s793 = scalar_select %p792, %s22, 1
          %s794 = smul.addr %s793, 2
          %s795 = scalar_lea.vmem %s5, %s794
        $region101: #{cnn_forward.7} parent=96 // pred_fallthru
          _
      $region97: #{cnn_forward.7} parent=5 // pred_fallthru
        _
    $region6: #{cnn_forward.7} parent=1 // loop_footer
      %s15 = sadd.s32 1, %s11
    $region7: #{cnn_forward.7} parent=1 // loop_footer_branch
      %10 = sbr.rel target = $region3
    $region8: #{cnn_forward.7} parent=1 // loop_exit
      _

</llo_original>
